<compile_context>
chip_gen: v5e
topology: v5e:2x2
jax: 0.10.0
libtpu: 0.0.40
codegen_flags: <defaults>
</compile_context>

<pallas_src>
import functools

import jax
import jax.numpy as jnp
from jax import lax
from jax.experimental import pallas as pl
from jax.experimental.pallas import tpu as pltpu

_VMEM = pl.BlockSpec(memory_space=pltpu.MemorySpace.VMEM)


def _round_up(x, m):
    return (x + m - 1) // m * m


def _pick_vmem_limit(default=64 * 1024 * 1024):
    """Per-generation VMEM budget: ~7/8 of physical, capped at 112 MiB."""
    try:
        cap = getattr(pltpu.get_tpu_info(), "vmem_capacity_bytes", None)
    except Exception:
        cap = None
    if not cap:
        return default
    return int(min(cap * 7 // 8, 112 * 1024 * 1024))


# ---------------------------------------------------------------------------
# Fused Pallas kernel: L LSTM layers + Linear head
# ---------------------------------------------------------------------------
def _fused_lstm_fc_kernel(num_layers, T, B_pad, H_pad, unroll, *refs):
    """Ref layout:
      x_ref                                   (T*B_pad, I_pad)   bf16 (pre-flattened)
      per layer l: w_ih (in_pad, 4*H_pad) bf16, w_hh (H_pad, 4*H_pad) bf16,
                   b (1, 4*H_pad) f32          [gate order i|f|o|g, lane padded]
      wfc_ref (H_pad, C_pad) bf16, bfc_ref (1, C_pad) f32
      out_ref (L*B_pad, C_pad) f32
      act_sc  (T, B_pad, H_pad)   f32  scratch: inter-layer hidden sequence
      xw_sc   (T, B_pad, 4*H_pad) f32  scratch: hoisted per-layer input projection
      hout_sc (L*B_pad, H_pad)    f32  scratch: per-layer final h slab for the FC
    """
    x_ref = refs[0]
    layer_refs = refs[1:1 + 3 * num_layers]
    wfc_ref = refs[1 + 3 * num_layers]
    bfc_ref = refs[2 + 3 * num_layers]
    out_ref = refs[3 + 3 * num_layers]
    act_sc = refs[4 + 3 * num_layers]
    xw_sc = refs[5 + 3 * num_layers]
    hout_sc = refs[6 + 3 * num_layers]

    H3 = 3 * H_pad
    for l in range(num_layers):
        wih = layer_refs[3 * l][...]        # (in_pad, 4*H_pad) bf16
        whh = layer_refs[3 * l + 1][...]    # (H_pad, 4*H_pad)  bf16
        bias = layer_refs[3 * l + 2][...]   # (1, 4*H_pad)      f32

        # ---- Hoisted input projection: ONE big MXU matmul over all timesteps.
        if l == 0:
            inp_flat = x_ref[...]                                         # bf16
        else:
            inp_flat = act_sc[...].reshape(T * B_pad, H_pad).astype(jnp.bfloat16)
        xw = jnp.dot(inp_flat, wih, preferred_element_type=jnp.float32) + bias
        xw_sc[...] = xw.reshape(T, B_pad, 4 * H_pad)

        write_seq = l < num_layers - 1      # last layer's sequence is never consumed

        def step(t, carry, whh=whh, write_seq=write_seq):
            h, c = carry                    # f32 (B_pad, H_pad)
            gates = xw_sc[t] + jnp.dot(h.astype(jnp.bfloat16), whh,
                                       preferred_element_type=jnp.float32)
            # Gate layout [i | f | o | g], each block lane-aligned (H_pad | 128).
            # One EUP tanh covers all three sigmoid gates, one covers g.
            sig = 0.5 * jnp.tanh(0.5 * gates[:, :H3]) + 0.5
            g_g = jnp.tanh(gates[:, H3:])
            i_g = sig[:, 0:H_pad]
            f_g = sig[:, H_pad:2 * H_pad]
            o_g = sig[:, 2 * H_pad:H3]
            c_new = f_g * c + i_g * g_g
            h_new = o_g * jnp.tanh(c_new)
            if write_seq:
                act_sc[t] = h_new           # VMEM-only inter-layer handoff
            return h_new, c_new

        h0 = jnp.zeros((B_pad, H_pad), jnp.float32)
        c0 = jnp.zeros((B_pad, H_pad), jnp.float32)
        h_fin, _ = lax.fori_loop(0, T, step, (h0, c0), unroll=unroll)
        hout_sc[l * B_pad:(l + 1) * B_pad, :] = h_fin   # lane-dense slab, no concat

    # ---- Fused FC epilogue on the (L*B_pad, H_pad) final-h slab.
    out_ref[...] = (jnp.dot(hout_sc[...].astype(jnp.bfloat16), wfc_ref[...],
                            preferred_element_type=jnp.float32) + bfc_ref[...])


# ---------------------------------------------------------------------------
# Wrapper
# ---------------------------------------------------------------------------
def lstm_model_forward(x, layer_params, w_fc, b_fc):
    """x: (B, T, I) batch_first. Returns (num_layers * B, num_classes) f32."""
    B, T, I = x.shape
    L = len(layer_params)
    H = layer_params[0][1].shape[1]          # w_hh: (4H, H)
    C = w_fc.shape[0]

    B_pad = _round_up(B, 8)                  # sublane alignment
    H_pad = _round_up(H, 128)                # lane alignment
    I_pad = _round_up(I, 128)
    C_pad = _round_up(C, 128)
    # TODO(synk): on v6e/v7x pad H to a multiple of 256 for full MXU contraction fill.

    # ---- Host-side layout plumbing (all outside the kernel). ----------------
    x_tbi = jnp.transpose(x, (1, 0, 2))                          # (T, B, I)
    x_tbi = jnp.pad(x_tbi, ((0, 0), (0, B_pad - B), (0, I_pad - I)))
    x_flat = x_tbi.reshape(T * B_pad, I_pad).astype(jnp.bfloat16)

    def pack_w(w, in_dim, in_pad):
        # w: (4H, in_dim), PyTorch gate rows [i|f|g|o].  Produce the transposed,
        # gate-reordered [i|f|o|g], per-gate lane-padded (in_pad, 4*H_pad) bf16.
        wT = w.T
        blocks = (wT[:, 0:H], wT[:, H:2 * H], wT[:, 3 * H:4 * H], wT[:, 2 * H:3 * H])
        blocks = [jnp.pad(b, ((0, in_pad - in_dim), (0, H_pad - H))) for b in blocks]
        return jnp.concatenate(blocks, axis=1).astype(jnp.bfloat16)

    def pack_b(b):
        blocks = (b[:, 0:H], b[:, H:2 * H], b[:, 3 * H:4 * H], b[:, 2 * H:3 * H])
        blocks = [jnp.pad(bb, ((0, 0), (0, H_pad - H))) for bb in blocks]
        return jnp.concatenate(blocks, axis=1).astype(jnp.float32)

    flat_w = []
    for li, (w_ih, w_hh, b) in enumerate(layer_params):
        in_dim, in_pad = (I, I_pad) if li == 0 else (H, H_pad)
        flat_w += [pack_w(w_ih, in_dim, in_pad), pack_w(w_hh, H, H_pad), pack_b(b)]

    wfc_p = jnp.pad(w_fc.T, ((0, H_pad - H), (0, C_pad - C))).astype(jnp.bfloat16)
    bfc_p = jnp.pad(b_fc.astype(jnp.float32), ((0, 0), (0, C_pad - C)))

    unroll = max(1, min(8, T))               # bounded unroll: overlap w/o vreg spills
    kernel = functools.partial(_fused_lstm_fc_kernel, L, T, B_pad, H_pad, unroll)

    out_pad = pl.pallas_call(
        kernel,
        out_shape=jax.ShapeDtypeStruct((L * B_pad, C_pad), jnp.float32),
        in_specs=[_VMEM] * (3 + 3 * L),
        out_specs=_VMEM,
        scratch_shapes=[
            pltpu.VMEM((T, B_pad, H_pad), jnp.float32),       # inter-layer hidden seq
            pltpu.VMEM((T, B_pad, 4 * H_pad), jnp.float32),   # hoisted input projection
            pltpu.VMEM((L * B_pad, H_pad), jnp.float32),      # final-h slab for FC
        ],
        compiler_params=pltpu.CompilerParams(
            vmem_limit_bytes=_pick_vmem_limit()),
    )(x_flat, *flat_w, wfc_p, bfc_p)
    # TODO(synk): for long T / large B (esp. v7x: 64 MiB VMEM, 2 TCs) stream the
    # (T,B,4H) projection scratch in double-buffered time chunks, pipeline x via a
    # time-chunk BlockSpec grid axis, and add a batch grid axis with
    # dimension_semantics=("parallel",) so both v7x TensorCores are used.

    out = out_pad.reshape(L, B_pad, C_pad)[:, :B, :C].reshape(L * B, C)
    return out


# ---------------------------------------------------------------------------
# Pure-JAX reference (f32, for correctness check)
# ---------------------------------------------------------------------------
def lstm_model_ref(x, layer_params, w_fc, b_fc):
    B = x.shape[0]
    inp = x
    h_finals = []
    for (w_ih, w_hh, b) in layer_params:
        H = w_hh.shape[1]
        h = jnp.zeros((B, H), jnp.float32)
        c = jnp.zeros((B, H), jnp.float32)
        outs = []
        for t in range(inp.shape[1]):
            gates = inp[:, t, :] @ w_ih.T + h @ w_hh.T + b[0]
            i_g = jax.nn.sigmoid(gates[:, :H])
            f_g = jax.nn.sigmoid(gates[:, H:2 * H])
            g_g = jnp.tanh(gates[:, 2 * H:3 * H])
            o_g = jax.nn.sigmoid(gates[:, 3 * H:])
            c = f_g * c + i_g * g_g
            h = o_g * jnp.tanh(c)
            outs.append(h)
        inp = jnp.stack(outs, axis=1)
        h_finals.append(h)
    h_out = jnp.concatenate(h_finals, axis=0)
    return h_out @ w_fc.T + b_fc[0]


# ---------------------------------------------------------------------------
# Deterministic parameter init (PyTorch-style uniform(-1/sqrt(H), 1/sqrt(H)))
# ---------------------------------------------------------------------------
def init_params(key, num_classes, input_size, hidden_size, num_layers):
    k_lstm = 1.0 / jnp.sqrt(hidden_size)
    layer_params = []
    for l in range(num_layers):
        in_sz = input_size if l == 0 else hidden_size
        key, k1, k2, k3, k4 = jax.random.split(key, 5)
        w_ih = jax.random.uniform(k1, (4 * hidden_size, in_sz), jnp.float32,
                                  -k_lstm, k_lstm)
        w_hh = jax.random.uniform(k2, (4 * hidden_size, hidden_size), jnp.float32,
                                  -k_lstm, k_lstm)
        b_ih = jax.random.uniform(k3, (4 * hidden_size,), jnp.float32, -k_lstm, k_lstm)
        b_hh = jax.random.uniform(k4, (4 * hidden_size,), jnp.float32, -k_lstm, k_lstm)
        layer_params.append((w_ih, w_hh, (b_ih + b_hh).reshape(1, -1)))
    k_fc = 1.0 / jnp.sqrt(hidden_size)
    key, k5, k6 = jax.random.split(key, 3)
    w_fc = jax.random.uniform(k5, (num_classes, hidden_size), jnp.float32, -k_fc, k_fc)
    b_fc = jax.random.uniform(k6, (1, num_classes), jnp.float32, -k_fc, k_fc)
    return layer_params, w_fc, b_fc


if __name__ == "__main__":
    num_classes, input_size, hidden_size, num_layers = 4, 16, 32, 2
    batch, seq_len = 2, 8

    key = jax.random.PRNGKey(0)
    key, kx = jax.random.split(key)
    x = jax.random.normal(kx, (batch, seq_len, input_size), jnp.float32)

    layer_params, w_fc, b_fc = init_params(key, num_classes, input_size,
                                           hidden_size, num_layers)

    out = lstm_model_forward(x, layer_params, w_fc, b_fc)
    out = jax.block_until_ready(out)

    ref = lstm_model_ref(x, layer_params, w_fc, b_fc)
    assert out.shape == (num_layers * batch, num_classes), out.shape
    # Tolerance covers bf16 matmul operands (weights/x/h) with f32 accumulation.
    assert jnp.allclose(out, ref, atol=3e-2, rtol=3e-2), (
        f"max abs diff {jnp.max(jnp.abs(out - ref))}")

    print("KERNEL_OK")
</pallas_src>

<mosaic_0001>
module attributes {stable_mosaic.version = 11 : i64} {
  func.func @_fused_lstm_fc_kernel(%arg0: memref<64x128xbf16, #tpu.memory_space<vmem>>, %arg1: memref<128x512xbf16, #tpu.memory_space<vmem>>, %arg2: memref<128x512xbf16, #tpu.memory_space<vmem>>, %arg3: memref<1x512xf32, #tpu.memory_space<vmem>>, %arg4: memref<128x512xbf16, #tpu.memory_space<vmem>>, %arg5: memref<128x512xbf16, #tpu.memory_space<vmem>>, %arg6: memref<1x512xf32, #tpu.memory_space<vmem>>, %arg7: memref<128x128xbf16, #tpu.memory_space<vmem>>, %arg8: memref<1x128xf32, #tpu.memory_space<vmem>>, %arg9: memref<16x128xf32, #tpu.memory_space<vmem>>, %arg10: memref<8x8x128xf32, #tpu.memory_space<vmem>>, %arg11: memref<8x8x512xf32, #tpu.memory_space<vmem>>, %arg12: memref<16x128xf32, #tpu.memory_space<vmem>>) attributes {dimension_semantics = [], scalar_prefetch = 0 : i64, scratch_operands = 3 : i64, tpu.core_type = #tpu.core_type<tc>} {
    %c0 = arith.constant 0 : index
    %c0_0 = arith.constant 0 : index
    %0 = vector.load %arg1[%c0, %c0_0] : memref<128x512xbf16, #tpu.memory_space<vmem>>, vector<128x512xbf16>
    %c0_1 = arith.constant 0 : index
    %c0_2 = arith.constant 0 : index
    %1 = vector.load %arg2[%c0_1, %c0_2] : memref<128x512xbf16, #tpu.memory_space<vmem>>, vector<128x512xbf16>
    %c0_3 = arith.constant 0 : index
    %c0_4 = arith.constant 0 : index
    %2 = vector.load %arg3[%c0_3, %c0_4] : memref<1x512xf32, #tpu.memory_space<vmem>>, vector<1x512xf32>
    %c0_5 = arith.constant 0 : index
    %c0_6 = arith.constant 0 : index
    %3 = vector.load %arg0[%c0_5, %c0_6] : memref<64x128xbf16, #tpu.memory_space<vmem>>, vector<64x128xbf16>
    %cst = arith.constant dense<0.000000e+00> : vector<64x512xf32>
    %4 = tpu.matmul %3, %0, %cst {dimension_numbers = #tpu.dot_dimension_numbers<[1], [0], [0], [1], [0, 0, 1, 1], [], []>} : vector<64x128xbf16>, vector<128x512xbf16>, vector<64x512xf32> -> vector<64x512xf32>
    %5 = vector.broadcast %2 : vector<1x512xf32> to vector<64x512xf32>
    %6 = arith.addf %4, %5 : vector<64x512xf32>
    %7 = vector.shape_cast %6 : vector<64x512xf32> to vector<8x8x512xf32>
    %c0_7 = arith.constant 0 : index
    %c0_8 = arith.constant 0 : index
    %c0_9 = arith.constant 0 : index
    %8 = vector.load %arg11[%c0_7, %c0_8, %c0_9] : memref<8x8x512xf32, #tpu.memory_space<vmem>>, vector<8x8x512xf32>
    tpu.vector_store %arg11[%c0_7, %c0_8, %c0_9], %7 {strides = array<i32>} : memref<8x8x512xf32, #tpu.memory_space<vmem>>, vector<8x8x512xf32>,
    %cst_10 = arith.constant 0.000000e+00 : f32
    %9 = vector.broadcast %cst_10 : f32 to vector<8x128xf32>
    %cst_11 = arith.constant 0.000000e+00 : f32
    %10 = vector.broadcast %cst_11 : f32 to vector<8x128xf32>
    %c0_i32 = arith.constant 0 : i32
    %11 = arith.index_cast %c0_i32 : i32 to index
    %c0_12 = arith.constant 0 : index
    %c0_13 = arith.constant 0 : index
    %12 = vector.load %arg11[%11, %c0_12, %c0_13] : memref<8x8x512xf32, #tpu.memory_space<vmem>>, vector<1x8x512xf32>
    %13 = vector.shape_cast %12 : vector<1x8x512xf32> to vector<8x512xf32>
    %14 = arith.truncf %9 : vector<8x128xf32> to vector<8x128xbf16>
    %cst_14 = arith.constant dense<0.000000e+00> : vector<8x512xf32>
    %15 = tpu.matmul %14, %1, %cst_14 {dimension_numbers = #tpu.dot_dimension_numbers<[1], [0], [0], [1], [0, 0, 1, 1], [], []>} : vector<8x128xbf16>, vector<128x512xbf16>, vector<8x512xf32> -> vector<8x512xf32>
    %16 = arith.addf %13, %15 : vector<8x512xf32>
    %17 = vector.extract_strided_slice %16 {offsets = [0, 0], sizes = [8, 384], strides = [1, 1]} : vector<8x512xf32> to vector<8x384xf32>
    %cst_15 = arith.constant 5.000000e-01 : f32
    %18 = vector.broadcast %cst_15 : f32 to vector<8x384xf32>
    %19 = arith.mulf %18, %17 : vector<8x384xf32>
    %20 = math.tanh %19 : vector<8x384xf32>
    %cst_16 = arith.constant 5.000000e-01 : f32
    %21 = vector.broadcast %cst_16 : f32 to vector<8x384xf32>
    %22 = arith.mulf %21, %20 : vector<8x384xf32>
    %cst_17 = arith.constant 5.000000e-01 : f32
    %23 = vector.broadcast %cst_17 : f32 to vector<8x384xf32>
    %24 = arith.addf %22, %23 : vector<8x384xf32>
    %25 = vector.extract_strided_slice %16 {offsets = [0, 384], sizes = [8, 128], strides = [1, 1]} : vector<8x512xf32> to vector<8x128xf32>
    %26 = math.tanh %25 : vector<8x128xf32>
    %27 = vector.extract_strided_slice %24 {offsets = [0, 0], sizes = [8, 128], strides = [1, 1]} : vector<8x384xf32> to vector<8x128xf32>
    %28 = vector.extract_strided_slice %24 {offsets = [0, 128], sizes = [8, 128], strides = [1, 1]} : vector<8x384xf32> to vector<8x128xf32>
    %29 = vector.extract_strided_slice %24 {offsets = [0, 256], sizes = [8, 128], strides = [1, 1]} : vector<8x384xf32> to vector<8x128xf32>
    %30 = arith.mulf %28, %10 : vector<8x128xf32>
    %31 = arith.mulf %27, %26 : vector<8x128xf32>
    %32 = arith.addf %30, %31 : vector<8x128xf32>
    %33 = math.tanh %32 : vector<8x128xf32>
    %34 = arith.mulf %29, %33 : vector<8x128xf32>
    %35 = arith.index_cast %c0_i32 : i32 to index
    %c0_18 = arith.constant 0 : index
    %c0_19 = arith.constant 0 : index
    %36 = vector.load %arg10[%35, %c0_18, %c0_19] : memref<8x8x128xf32, #tpu.memory_space<vmem>>, vector<1x8x128xf32>
    %37 = vector.shape_cast %36 : vector<1x8x128xf32> to vector<8x128xf32>
    %38 = vector.shape_cast %34 : vector<8x128xf32> to vector<1x8x128xf32>
    tpu.vector_store %arg10[%35, %c0_18, %c0_19], %38 {strides = array<i32>} : memref<8x8x128xf32, #tpu.memory_space<vmem>>, vector<1x8x128xf32>,
    %c1_i32 = arith.constant 1 : i32
    %39 = arith.index_cast %c1_i32 : i32 to index
    %c0_20 = arith.constant 0 : index
    %c0_21 = arith.constant 0 : index
    %40 = vector.load %arg11[%39, %c0_20, %c0_21] : memref<8x8x512xf32, #tpu.memory_space<vmem>>, vector<1x8x512xf32>
    %41 = vector.shape_cast %40 : vector<1x8x512xf32> to vector<8x512xf32>
    %42 = arith.truncf %34 : vector<8x128xf32> to vector<8x128xbf16>
    %cst_22 = arith.constant dense<0.000000e+00> : vector<8x512xf32>
    %43 = tpu.matmul %42, %1, %cst_22 {dimension_numbers = #tpu.dot_dimension_numbers<[1], [0], [0], [1], [0, 0, 1, 1], [], []>} : vector<8x128xbf16>, vector<128x512xbf16>, vector<8x512xf32> -> vector<8x512xf32>
    %44 = arith.addf %41, %43 : vector<8x512xf32>
    %45 = vector.extract_strided_slice %44 {offsets = [0, 0], sizes = [8, 384], strides = [1, 1]} : vector<8x512xf32> to vector<8x384xf32>
    %cst_23 = arith.constant 5.000000e-01 : f32
    %46 = vector.broadcast %cst_23 : f32 to vector<8x384xf32>
    %47 = arith.mulf %46, %45 : vector<8x384xf32>
    %48 = math.tanh %47 : vector<8x384xf32>
    %cst_24 = arith.constant 5.000000e-01 : f32
    %49 = vector.broadcast %cst_24 : f32 to vector<8x384xf32>
    %50 = arith.mulf %49, %48 : vector<8x384xf32>
    %cst_25 = arith.constant 5.000000e-01 : f32
    %51 = vector.broadcast %cst_25 : f32 to vector<8x384xf32>
    %52 = arith.addf %50, %51 : vector<8x384xf32>
    %53 = vector.extract_strided_slice %44 {offsets = [0, 384], sizes = [8, 128], strides = [1, 1]} : vector<8x512xf32> to vector<8x128xf32>
    %54 = math.tanh %53 : vector<8x128xf32>
    %55 = vector.extract_strided_slice %52 {offsets = [0, 0], sizes = [8, 128], strides = [1, 1]} : vector<8x384xf32> to vector<8x128xf32>
    %56 = vector.extract_strided_slice %52 {offsets = [0, 128], sizes = [8, 128], strides = [1, 1]} : vector<8x384xf32> to vector<8x128xf32>
    %57 = vector.extract_strided_slice %52 {offsets = [0, 256], sizes = [8, 128], strides = [1, 1]} : vector<8x384xf32> to vector<8x128xf32>
    %58 = arith.mulf %56, %32 : vector<8x128xf32>
    %59 = arith.mulf %55, %54 : vector<8x128xf32>
    %60 = arith.addf %58, %59 : vector<8x128xf32>
    %61 = math.tanh %60 : vector<8x128xf32>
    %62 = arith.mulf %57, %61 : vector<8x128xf32>
    %63 = arith.index_cast %c1_i32 : i32 to index
    %c0_26 = arith.constant 0 : index
    %c0_27 = arith.constant 0 : index
    %64 = vector.load %arg10[%63, %c0_26, %c0_27] : memref<8x8x128xf32, #tpu.memory_space<vmem>>, vector<1x8x128xf32>
    %65 = vector.shape_cast %64 : vector<1x8x128xf32> to vector<8x128xf32>
    %66 = vector.shape_cast %62 : vector<8x128xf32> to vector<1x8x128xf32>
    tpu.vector_store %arg10[%63, %c0_26, %c0_27], %66 {strides = array<i32>} : memref<8x8x128xf32, #tpu.memory_space<vmem>>, vector<1x8x128xf32>,
    %c2_i32 = arith.constant 2 : i32
    %67 = arith.index_cast %c2_i32 : i32 to index
    %c0_28 = arith.constant 0 : index
    %c0_29 = arith.constant 0 : index
    %68 = vector.load %arg11[%67, %c0_28, %c0_29] : memref<8x8x512xf32, #tpu.memory_space<vmem>>, vector<1x8x512xf32>
    %69 = vector.shape_cast %68 : vector<1x8x512xf32> to vector<8x512xf32>
    %70 = arith.truncf %62 : vector<8x128xf32> to vector<8x128xbf16>
    %cst_30 = arith.constant dense<0.000000e+00> : vector<8x512xf32>
    %71 = tpu.matmul %70, %1, %cst_30 {dimension_numbers = #tpu.dot_dimension_numbers<[1], [0], [0], [1], [0, 0, 1, 1], [], []>} : vector<8x128xbf16>, vector<128x512xbf16>, vector<8x512xf32> -> vector<8x512xf32>
    %72 = arith.addf %69, %71 : vector<8x512xf32>
    %73 = vector.extract_strided_slice %72 {offsets = [0, 0], sizes = [8, 384], strides = [1, 1]} : vector<8x512xf32> to vector<8x384xf32>
    %cst_31 = arith.constant 5.000000e-01 : f32
    %74 = vector.broadcast %cst_31 : f32 to vector<8x384xf32>
    %75 = arith.mulf %74, %73 : vector<8x384xf32>
    %76 = math.tanh %75 : vector<8x384xf32>
    %cst_32 = arith.constant 5.000000e-01 : f32
    %77 = vector.broadcast %cst_32 : f32 to vector<8x384xf32>
    %78 = arith.mulf %77, %76 : vector<8x384xf32>
    %cst_33 = arith.constant 5.000000e-01 : f32
    %79 = vector.broadcast %cst_33 : f32 to vector<8x384xf32>
    %80 = arith.addf %78, %79 : vector<8x384xf32>
    %81 = vector.extract_strided_slice %72 {offsets = [0, 384], sizes = [8, 128], strides = [1, 1]} : vector<8x512xf32> to vector<8x128xf32>
    %82 = math.tanh %81 : vector<8x128xf32>
    %83 = vector.extract_strided_slice %80 {offsets = [0, 0], sizes = [8, 128], strides = [1, 1]} : vector<8x384xf32> to vector<8x128xf32>
    %84 = vector.extract_strided_slice %80 {offsets = [0, 128], sizes = [8, 128], strides = [1, 1]} : vector<8x384xf32> to vector<8x128xf32>
    %85 = vector.extract_strided_slice %80 {offsets = [0, 256], sizes = [8, 128], strides = [1, 1]} : vector<8x384xf32> to vector<8x128xf32>
    %86 = arith.mulf %84, %60 : vector<8x128xf32>
    %87 = arith.mulf %83, %82 : vector<8x128xf32>
    %88 = arith.addf %86, %87 : vector<8x128xf32>
    %89 = math.tanh %88 : vector<8x128xf32>
    %90 = arith.mulf %85, %89 : vector<8x128xf32>
    %91 = arith.index_cast %c2_i32 : i32 to index
    %c0_34 = arith.constant 0 : index
    %c0_35 = arith.constant 0 : index
    %92 = vector.load %arg10[%91, %c0_34, %c0_35] : memref<8x8x128xf32, #tpu.memory_space<vmem>>, vector<1x8x128xf32>
    %93 = vector.shape_cast %92 : vector<1x8x128xf32> to vector<8x128xf32>
    %94 = vector.shape_cast %90 : vector<8x128xf32> to vector<1x8x128xf32>
    tpu.vector_store %arg10[%91, %c0_34, %c0_35], %94 {strides = array<i32>} : memref<8x8x128xf32, #tpu.memory_space<vmem>>, vector<1x8x128xf32>,
    %c3_i32 = arith.constant 3 : i32
    %95 = arith.index_cast %c3_i32 : i32 to index
    %c0_36 = arith.constant 0 : index
    %c0_37 = arith.constant 0 : index
    %96 = vector.load %arg11[%95, %c0_36, %c0_37] : memref<8x8x512xf32, #tpu.memory_space<vmem>>, vector<1x8x512xf32>
    %97 = vector.shape_cast %96 : vector<1x8x512xf32> to vector<8x512xf32>
    %98 = arith.truncf %90 : vector<8x128xf32> to vector<8x128xbf16>
    %cst_38 = arith.constant dense<0.000000e+00> : vector<8x512xf32>
    %99 = tpu.matmul %98, %1, %cst_38 {dimension_numbers = #tpu.dot_dimension_numbers<[1], [0], [0], [1], [0, 0, 1, 1], [], []>} : vector<8x128xbf16>, vector<128x512xbf16>, vector<8x512xf32> -> vector<8x512xf32>
    %100 = arith.addf %97, %99 : vector<8x512xf32>
    %101 = vector.extract_strided_slice %100 {offsets = [0, 0], sizes = [8, 384], strides = [1, 1]} : vector<8x512xf32> to vector<8x384xf32>
    %cst_39 = arith.constant 5.000000e-01 : f32
    %102 = vector.broadcast %cst_39 : f32 to vector<8x384xf32>
    %103 = arith.mulf %102, %101 : vector<8x384xf32>
    %104 = math.tanh %103 : vector<8x384xf32>
    %cst_40 = arith.constant 5.000000e-01 : f32
    %105 = vector.broadcast %cst_40 : f32 to vector<8x384xf32>
    %106 = arith.mulf %105, %104 : vector<8x384xf32>
    %cst_41 = arith.constant 5.000000e-01 : f32
    %107 = vector.broadcast %cst_41 : f32 to vector<8x384xf32>
    %108 = arith.addf %106, %107 : vector<8x384xf32>
    %109 = vector.extract_strided_slice %100 {offsets = [0, 384], sizes = [8, 128], strides = [1, 1]} : vector<8x512xf32> to vector<8x128xf32>
    %110 = math.tanh %109 : vector<8x128xf32>
    %111 = vector.extract_strided_slice %108 {offsets = [0, 0], sizes = [8, 128], strides = [1, 1]} : vector<8x384xf32> to vector<8x128xf32>
    %112 = vector.extract_strided_slice %108 {offsets = [0, 128], sizes = [8, 128], strides = [1, 1]} : vector<8x384xf32> to vector<8x128xf32>
    %113 = vector.extract_strided_slice %108 {offsets = [0, 256], sizes = [8, 128], strides = [1, 1]} : vector<8x384xf32> to vector<8x128xf32>
    %114 = arith.mulf %112, %88 : vector<8x128xf32>
    %115 = arith.mulf %111, %110 : vector<8x128xf32>
    %116 = arith.addf %114, %115 : vector<8x128xf32>
    %117 = math.tanh %116 : vector<8x128xf32>
    %118 = arith.mulf %113, %117 : vector<8x128xf32>
    %119 = arith.index_cast %c3_i32 : i32 to index
    %c0_42 = arith.constant 0 : index
    %c0_43 = arith.constant 0 : index
    %120 = vector.load %arg10[%119, %c0_42, %c0_43] : memref<8x8x128xf32, #tpu.memory_space<vmem>>, vector<1x8x128xf32>
    %121 = vector.shape_cast %120 : vector<1x8x128xf32> to vector<8x128xf32>
    %122 = vector.shape_cast %118 : vector<8x128xf32> to vector<1x8x128xf32>
    tpu.vector_store %arg10[%119, %c0_42, %c0_43], %122 {strides = array<i32>} : memref<8x8x128xf32, #tpu.memory_space<vmem>>, vector<1x8x128xf32>,
    %c4_i32 = arith.constant 4 : i32
    %123 = arith.index_cast %c4_i32 : i32 to index
    %c0_44 = arith.constant 0 : index
    %c0_45 = arith.constant 0 : index
    %124 = vector.load %arg11[%123, %c0_44, %c0_45] : memref<8x8x512xf32, #tpu.memory_space<vmem>>, vector<1x8x512xf32>
    %125 = vector.shape_cast %124 : vector<1x8x512xf32> to vector<8x512xf32>
    %126 = arith.truncf %118 : vector<8x128xf32> to vector<8x128xbf16>
    %cst_46 = arith.constant dense<0.000000e+00> : vector<8x512xf32>
    %127 = tpu.matmul %126, %1, %cst_46 {dimension_numbers = #tpu.dot_dimension_numbers<[1], [0], [0], [1], [0, 0, 1, 1], [], []>} : vector<8x128xbf16>, vector<128x512xbf16>, vector<8x512xf32> -> vector<8x512xf32>
    %128 = arith.addf %125, %127 : vector<8x512xf32>
    %129 = vector.extract_strided_slice %128 {offsets = [0, 0], sizes = [8, 384], strides = [1, 1]} : vector<8x512xf32> to vector<8x384xf32>
    %cst_47 = arith.constant 5.000000e-01 : f32
    %130 = vector.broadcast %cst_47 : f32 to vector<8x384xf32>
    %131 = arith.mulf %130, %129 : vector<8x384xf32>
    %132 = math.tanh %131 : vector<8x384xf32>
    %cst_48 = arith.constant 5.000000e-01 : f32
    %133 = vector.broadcast %cst_48 : f32 to vector<8x384xf32>
    %134 = arith.mulf %133, %132 : vector<8x384xf32>
    %cst_49 = arith.constant 5.000000e-01 : f32
    %135 = vector.broadcast %cst_49 : f32 to vector<8x384xf32>
    %136 = arith.addf %134, %135 : vector<8x384xf32>
    %137 = vector.extract_strided_slice %128 {offsets = [0, 384], sizes = [8, 128], strides = [1, 1]} : vector<8x512xf32> to vector<8x128xf32>
    %138 = math.tanh %137 : vector<8x128xf32>
    %139 = vector.extract_strided_slice %136 {offsets = [0, 0], sizes = [8, 128], strides = [1, 1]} : vector<8x384xf32> to vector<8x128xf32>
    %140 = vector.extract_strided_slice %136 {offsets = [0, 128], sizes = [8, 128], strides = [1, 1]} : vector<8x384xf32> to vector<8x128xf32>
    %141 = vector.extract_strided_slice %136 {offsets = [0, 256], sizes = [8, 128], strides = [1, 1]} : vector<8x384xf32> to vector<8x128xf32>
    %142 = arith.mulf %140, %116 : vector<8x128xf32>
    %143 = arith.mulf %139, %138 : vector<8x128xf32>
    %144 = arith.addf %142, %143 : vector<8x128xf32>
    %145 = math.tanh %144 : vector<8x128xf32>
    %146 = arith.mulf %141, %145 : vector<8x128xf32>
    %147 = arith.index_cast %c4_i32 : i32 to index
    %c0_50 = arith.constant 0 : index
    %c0_51 = arith.constant 0 : index
    %148 = vector.load %arg10[%147, %c0_50, %c0_51] : memref<8x8x128xf32, #tpu.memory_space<vmem>>, vector<1x8x128xf32>
    %149 = vector.shape_cast %148 : vector<1x8x128xf32> to vector<8x128xf32>
    %150 = vector.shape_cast %146 : vector<8x128xf32> to vector<1x8x128xf32>
    tpu.vector_store %arg10[%147, %c0_50, %c0_51], %150 {strides = array<i32>} : memref<8x8x128xf32, #tpu.memory_space<vmem>>, vector<1x8x128xf32>,
    %c5_i32 = arith.constant 5 : i32
    %151 = arith.index_cast %c5_i32 : i32 to index
    %c0_52 = arith.constant 0 : index
    %c0_53 = arith.constant 0 : index
    %152 = vector.load %arg11[%151, %c0_52, %c0_53] : memref<8x8x512xf32, #tpu.memory_space<vmem>>, vector<1x8x512xf32>
    %153 = vector.shape_cast %152 : vector<1x8x512xf32> to vector<8x512xf32>
    %154 = arith.truncf %146 : vector<8x128xf32> to vector<8x128xbf16>
    %cst_54 = arith.constant dense<0.000000e+00> : vector<8x512xf32>
    %155 = tpu.matmul %154, %1, %cst_54 {dimension_numbers = #tpu.dot_dimension_numbers<[1], [0], [0], [1], [0, 0, 1, 1], [], []>} : vector<8x128xbf16>, vector<128x512xbf16>, vector<8x512xf32> -> vector<8x512xf32>
    %156 = arith.addf %153, %155 : vector<8x512xf32>
    %157 = vector.extract_strided_slice %156 {offsets = [0, 0], sizes = [8, 384], strides = [1, 1]} : vector<8x512xf32> to vector<8x384xf32>
    %cst_55 = arith.constant 5.000000e-01 : f32
    %158 = vector.broadcast %cst_55 : f32 to vector<8x384xf32>
    %159 = arith.mulf %158, %157 : vector<8x384xf32>
    %160 = math.tanh %159 : vector<8x384xf32>
    %cst_56 = arith.constant 5.000000e-01 : f32
    %161 = vector.broadcast %cst_56 : f32 to vector<8x384xf32>
    %162 = arith.mulf %161, %160 : vector<8x384xf32>
    %cst_57 = arith.constant 5.000000e-01 : f32
    %163 = vector.broadcast %cst_57 : f32 to vector<8x384xf32>
    %164 = arith.addf %162, %163 : vector<8x384xf32>
    %165 = vector.extract_strided_slice %156 {offsets = [0, 384], sizes = [8, 128], strides = [1, 1]} : vector<8x512xf32> to vector<8x128xf32>
    %166 = math.tanh %165 : vector<8x128xf32>
    %167 = vector.extract_strided_slice %164 {offsets = [0, 0], sizes = [8, 128], strides = [1, 1]} : vector<8x384xf32> to vector<8x128xf32>
    %168 = vector.extract_strided_slice %164 {offsets = [0, 128], sizes = [8, 128], strides = [1, 1]} : vector<8x384xf32> to vector<8x128xf32>
    %169 = vector.extract_strided_slice %164 {offsets = [0, 256], sizes = [8, 128], strides = [1, 1]} : vector<8x384xf32> to vector<8x128xf32>
    %170 = arith.mulf %168, %144 : vector<8x128xf32>
    %171 = arith.mulf %167, %166 : vector<8x128xf32>
    %172 = arith.addf %170, %171 : vector<8x128xf32>
    %173 = math.tanh %172 : vector<8x128xf32>
    %174 = arith.mulf %169, %173 : vector<8x128xf32>
    %175 = arith.index_cast %c5_i32 : i32 to index
    %c0_58 = arith.constant 0 : index
    %c0_59 = arith.constant 0 : index
    %176 = vector.load %arg10[%175, %c0_58, %c0_59] : memref<8x8x128xf32, #tpu.memory_space<vmem>>, vector<1x8x128xf32>
    %177 = vector.shape_cast %176 : vector<1x8x128xf32> to vector<8x128xf32>
    %178 = vector.shape_cast %174 : vector<8x128xf32> to vector<1x8x128xf32>
    tpu.vector_store %arg10[%175, %c0_58, %c0_59], %178 {strides = array<i32>} : memref<8x8x128xf32, #tpu.memory_space<vmem>>, vector<1x8x128xf32>,
    %c6_i32 = arith.constant 6 : i32
    %179 = arith.index_cast %c6_i32 : i32 to index
    %c0_60 = arith.constant 0 : index
    %c0_61 = arith.constant 0 : index
    %180 = vector.load %arg11[%179, %c0_60, %c0_61] : memref<8x8x512xf32, #tpu.memory_space<vmem>>, vector<1x8x512xf32>
    %181 = vector.shape_cast %180 : vector<1x8x512xf32> to vector<8x512xf32>
    %182 = arith.truncf %174 : vector<8x128xf32> to vector<8x128xbf16>
    %cst_62 = arith.constant dense<0.000000e+00> : vector<8x512xf32>
    %183 = tpu.matmul %182, %1, %cst_62 {dimension_numbers = #tpu.dot_dimension_numbers<[1], [0], [0], [1], [0, 0, 1, 1], [], []>} : vector<8x128xbf16>, vector<128x512xbf16>, vector<8x512xf32> -> vector<8x512xf32>
    %184 = arith.addf %181, %183 : vector<8x512xf32>
    %185 = vector.extract_strided_slice %184 {offsets = [0, 0], sizes = [8, 384], strides = [1, 1]} : vector<8x512xf32> to vector<8x384xf32>
    %cst_63 = arith.constant 5.000000e-01 : f32
    %186 = vector.broadcast %cst_63 : f32 to vector<8x384xf32>
    %187 = arith.mulf %186, %185 : vector<8x384xf32>
    %188 = math.tanh %187 : vector<8x384xf32>
    %cst_64 = arith.constant 5.000000e-01 : f32
    %189 = vector.broadcast %cst_64 : f32 to vector<8x384xf32>
    %190 = arith.mulf %189, %188 : vector<8x384xf32>
    %cst_65 = arith.constant 5.000000e-01 : f32
    %191 = vector.broadcast %cst_65 : f32 to vector<8x384xf32>
    %192 = arith.addf %190, %191 : vector<8x384xf32>
    %193 = vector.extract_strided_slice %184 {offsets = [0, 384], sizes = [8, 128], strides = [1, 1]} : vector<8x512xf32> to vector<8x128xf32>
    %194 = math.tanh %193 : vector<8x128xf32>
    %195 = vector.extract_strided_slice %192 {offsets = [0, 0], sizes = [8, 128], strides = [1, 1]} : vector<8x384xf32> to vector<8x128xf32>
    %196 = vector.extract_strided_slice %192 {offsets = [0, 128], sizes = [8, 128], strides = [1, 1]} : vector<8x384xf32> to vector<8x128xf32>
    %197 = vector.extract_strided_slice %192 {offsets = [0, 256], sizes = [8, 128], strides = [1, 1]} : vector<8x384xf32> to vector<8x128xf32>
    %198 = arith.mulf %196, %172 : vector<8x128xf32>
    %199 = arith.mulf %195, %194 : vector<8x128xf32>
    %200 = arith.addf %198, %199 : vector<8x128xf32>
    %201 = math.tanh %200 : vector<8x128xf32>
    %202 = arith.mulf %197, %201 : vector<8x128xf32>
    %203 = arith.index_cast %c6_i32 : i32 to index
    %c0_66 = arith.constant 0 : index
    %c0_67 = arith.constant 0 : index
    %204 = vector.load %arg10[%203, %c0_66, %c0_67] : memref<8x8x128xf32, #tpu.memory_space<vmem>>, vector<1x8x128xf32>
    %205 = vector.shape_cast %204 : vector<1x8x128xf32> to vector<8x128xf32>
    %206 = vector.shape_cast %202 : vector<8x128xf32> to vector<1x8x128xf32>
    tpu.vector_store %arg10[%203, %c0_66, %c0_67], %206 {strides = array<i32>} : memref<8x8x128xf32, #tpu.memory_space<vmem>>, vector<1x8x128xf32>,
    %c7_i32 = arith.constant 7 : i32
    %207 = arith.index_cast %c7_i32 : i32 to index
    %c0_68 = arith.constant 0 : index
    %c0_69 = arith.constant 0 : index
    %208 = vector.load %arg11[%207, %c0_68, %c0_69] : memref<8x8x512xf32, #tpu.memory_space<vmem>>, vector<1x8x512xf32>
    %209 = vector.shape_cast %208 : vector<1x8x512xf32> to vector<8x512xf32>
    %210 = arith.truncf %202 : vector<8x128xf32> to vector<8x128xbf16>
    %cst_70 = arith.constant dense<0.000000e+00> : vector<8x512xf32>
    %211 = tpu.matmul %210, %1, %cst_70 {dimension_numbers = #tpu.dot_dimension_numbers<[1], [0], [0], [1], [0, 0, 1, 1], [], []>} : vector<8x128xbf16>, vector<128x512xbf16>, vector<8x512xf32> -> vector<8x512xf32>
    %212 = arith.addf %209, %211 : vector<8x512xf32>
    %213 = vector.extract_strided_slice %212 {offsets = [0, 0], sizes = [8, 384], strides = [1, 1]} : vector<8x512xf32> to vector<8x384xf32>
    %cst_71 = arith.constant 5.000000e-01 : f32
    %214 = vector.broadcast %cst_71 : f32 to vector<8x384xf32>
    %215 = arith.mulf %214, %213 : vector<8x384xf32>
    %216 = math.tanh %215 : vector<8x384xf32>
    %cst_72 = arith.constant 5.000000e-01 : f32
    %217 = vector.broadcast %cst_72 : f32 to vector<8x384xf32>
    %218 = arith.mulf %217, %216 : vector<8x384xf32>
    %cst_73 = arith.constant 5.000000e-01 : f32
    %219 = vector.broadcast %cst_73 : f32 to vector<8x384xf32>
    %220 = arith.addf %218, %219 : vector<8x384xf32>
    %221 = vector.extract_strided_slice %212 {offsets = [0, 384], sizes = [8, 128], strides = [1, 1]} : vector<8x512xf32> to vector<8x128xf32>
    %222 = math.tanh %221 : vector<8x128xf32>
    %223 = vector.extract_strided_slice %220 {offsets = [0, 0], sizes = [8, 128], strides = [1, 1]} : vector<8x384xf32> to vector<8x128xf32>
    %224 = vector.extract_strided_slice %220 {offsets = [0, 128], sizes = [8, 128], strides = [1, 1]} : vector<8x384xf32> to vector<8x128xf32>
    %225 = vector.extract_strided_slice %220 {offsets = [0, 256], sizes = [8, 128], strides = [1, 1]} : vector<8x384xf32> to vector<8x128xf32>
    %226 = arith.mulf %224, %200 : vector<8x128xf32>
    %227 = arith.mulf %223, %222 : vector<8x128xf32>
    %228 = arith.addf %226, %227 : vector<8x128xf32>
    %229 = math.tanh %228 : vector<8x128xf32>
    %230 = arith.mulf %225, %229 : vector<8x128xf32>
    %231 = arith.index_cast %c7_i32 : i32 to index
    %c0_74 = arith.constant 0 : index
    %c0_75 = arith.constant 0 : index
    %232 = vector.load %arg10[%231, %c0_74, %c0_75] : memref<8x8x128xf32, #tpu.memory_space<vmem>>, vector<1x8x128xf32>
    %233 = vector.shape_cast %232 : vector<1x8x128xf32> to vector<8x128xf32>
    %234 = vector.shape_cast %230 : vector<8x128xf32> to vector<1x8x128xf32>
    tpu.vector_store %arg10[%231, %c0_74, %c0_75], %234 {strides = array<i32>} : memref<8x8x128xf32, #tpu.memory_space<vmem>>, vector<1x8x128xf32>,
    %c8_i32 = arith.constant 8 : i32
    %c0_76 = arith.constant 0 : index
    %c0_77 = arith.constant 0 : index
    %235 = vector.load %arg12[%c0_76, %c0_77] : memref<16x128xf32, #tpu.memory_space<vmem>>, vector<8x128xf32>
    tpu.vector_store %arg12[%c0_76, %c0_77], %230 {strides = array<i32>} : memref<16x128xf32, #tpu.memory_space<vmem>>, vector<8x128xf32>,
    %c0_78 = arith.constant 0 : index
    %c0_79 = arith.constant 0 : index
    %236 = vector.load %arg4[%c0_78, %c0_79] : memref<128x512xbf16, #tpu.memory_space<vmem>>, vector<128x512xbf16>
    %c0_80 = arith.constant 0 : index
    %c0_81 = arith.constant 0 : index
    %237 = vector.load %arg5[%c0_80, %c0_81] : memref<128x512xbf16, #tpu.memory_space<vmem>>, vector<128x512xbf16>
    %c0_82 = arith.constant 0 : index
    %c0_83 = arith.constant 0 : index
    %238 = vector.load %arg6[%c0_82, %c0_83] : memref<1x512xf32, #tpu.memory_space<vmem>>, vector<1x512xf32>
    %c0_84 = arith.constant 0 : index
    %c0_85 = arith.constant 0 : index
    %c0_86 = arith.constant 0 : index
    %239 = vector.load %arg10[%c0_84, %c0_85, %c0_86] : memref<8x8x128xf32, #tpu.memory_space<vmem>>, vector<8x8x128xf32>
    %240 = vector.shape_cast %239 : vector<8x8x128xf32> to vector<64x128xf32>
    %241 = arith.truncf %240 : vector<64x128xf32> to vector<64x128xbf16>
    %cst_87 = arith.constant dense<0.000000e+00> : vector<64x512xf32>
    %242 = tpu.matmul %241, %236, %cst_87 {dimension_numbers = #tpu.dot_dimension_numbers<[1], [0], [0], [1], [0, 0, 1, 1], [], []>} : vector<64x128xbf16>, vector<128x512xbf16>, vector<64x512xf32> -> vector<64x512xf32>
    %243 = vector.broadcast %238 : vector<1x512xf32> to vector<64x512xf32>
    %244 = arith.addf %242, %243 : vector<64x512xf32>
    %245 = vector.shape_cast %244 : vector<64x512xf32> to vector<8x8x512xf32>
    %c0_88 = arith.constant 0 : index
    %c0_89 = arith.constant 0 : index
    %c0_90 = arith.constant 0 : index
    %246 = vector.load %arg11[%c0_88, %c0_89, %c0_90] : memref<8x8x512xf32, #tpu.memory_space<vmem>>, vector<8x8x512xf32>
    tpu.vector_store %arg11[%c0_88, %c0_89, %c0_90], %245 {strides = array<i32>} : memref<8x8x512xf32, #tpu.memory_space<vmem>>, vector<8x8x512xf32>,
    %cst_91 = arith.constant 0.000000e+00 : f32
    %247 = vector.broadcast %cst_91 : f32 to vector<8x128xf32>
    %cst_92 = arith.constant 0.000000e+00 : f32
    %248 = vector.broadcast %cst_92 : f32 to vector<8x128xf32>
    %c0_i32_93 = arith.constant 0 : i32
    %249 = arith.index_cast %c0_i32_93 : i32 to index
    %c0_94 = arith.constant 0 : index
    %c0_95 = arith.constant 0 : index
    %250 = vector.load %arg11[%249, %c0_94, %c0_95] : memref<8x8x512xf32, #tpu.memory_space<vmem>>, vector<1x8x512xf32>
    %251 = vector.shape_cast %250 : vector<1x8x512xf32> to vector<8x512xf32>
    %252 = arith.truncf %247 : vector<8x128xf32> to vector<8x128xbf16>
    %cst_96 = arith.constant dense<0.000000e+00> : vector<8x512xf32>
    %253 = tpu.matmul %252, %237, %cst_96 {dimension_numbers = #tpu.dot_dimension_numbers<[1], [0], [0], [1], [0, 0, 1, 1], [], []>} : vector<8x128xbf16>, vector<128x512xbf16>, vector<8x512xf32> -> vector<8x512xf32>
    %254 = arith.addf %251, %253 : vector<8x512xf32>
    %255 = vector.extract_strided_slice %254 {offsets = [0, 0], sizes = [8, 384], strides = [1, 1]} : vector<8x512xf32> to vector<8x384xf32>
    %cst_97 = arith.constant 5.000000e-01 : f32
    %256 = vector.broadcast %cst_97 : f32 to vector<8x384xf32>
    %257 = arith.mulf %256, %255 : vector<8x384xf32>
    %258 = math.tanh %257 : vector<8x384xf32>
    %cst_98 = arith.constant 5.000000e-01 : f32
    %259 = vector.broadcast %cst_98 : f32 to vector<8x384xf32>
    %260 = arith.mulf %259, %258 : vector<8x384xf32>
    %cst_99 = arith.constant 5.000000e-01 : f32
    %261 = vector.broadcast %cst_99 : f32 to vector<8x384xf32>
    %262 = arith.addf %260, %261 : vector<8x384xf32>
    %263 = vector.extract_strided_slice %254 {offsets = [0, 384], sizes = [8, 128], strides = [1, 1]} : vector<8x512xf32> to vector<8x128xf32>
    %264 = math.tanh %263 : vector<8x128xf32>
    %265 = vector.extract_strided_slice %262 {offsets = [0, 0], sizes = [8, 128], strides = [1, 1]} : vector<8x384xf32> to vector<8x128xf32>
    %266 = vector.extract_strided_slice %262 {offsets = [0, 128], sizes = [8, 128], strides = [1, 1]} : vector<8x384xf32> to vector<8x128xf32>
    %267 = vector.extract_strided_slice %262 {offsets = [0, 256], sizes = [8, 128], strides = [1, 1]} : vector<8x384xf32> to vector<8x128xf32>
    %268 = arith.mulf %266, %248 : vector<8x128xf32>
    %269 = arith.mulf %265, %264 : vector<8x128xf32>
    %270 = arith.addf %268, %269 : vector<8x128xf32>
    %271 = math.tanh %270 : vector<8x128xf32>
    %272 = arith.mulf %267, %271 : vector<8x128xf32>
    %c1_i32_100 = arith.constant 1 : i32
    %273 = arith.index_cast %c1_i32_100 : i32 to index
    %c0_101 = arith.constant 0 : index
    %c0_102 = arith.constant 0 : index
    %274 = vector.load %arg11[%273, %c0_101, %c0_102] : memref<8x8x512xf32, #tpu.memory_space<vmem>>, vector<1x8x512xf32>
    %275 = vector.shape_cast %274 : vector<1x8x512xf32> to vector<8x512xf32>
    %276 = arith.truncf %272 : vector<8x128xf32> to vector<8x128xbf16>
    %cst_103 = arith.constant dense<0.000000e+00> : vector<8x512xf32>
    %277 = tpu.matmul %276, %237, %cst_103 {dimension_numbers = #tpu.dot_dimension_numbers<[1], [0], [0], [1], [0, 0, 1, 1], [], []>} : vector<8x128xbf16>, vector<128x512xbf16>, vector<8x512xf32> -> vector<8x512xf32>
    %278 = arith.addf %275, %277 : vector<8x512xf32>
    %279 = vector.extract_strided_slice %278 {offsets = [0, 0], sizes = [8, 384], strides = [1, 1]} : vector<8x512xf32> to vector<8x384xf32>
    %cst_104 = arith.constant 5.000000e-01 : f32
    %280 = vector.broadcast %cst_104 : f32 to vector<8x384xf32>
    %281 = arith.mulf %280, %279 : vector<8x384xf32>
    %282 = math.tanh %281 : vector<8x384xf32>
    %cst_105 = arith.constant 5.000000e-01 : f32
    %283 = vector.broadcast %cst_105 : f32 to vector<8x384xf32>
    %284 = arith.mulf %283, %282 : vector<8x384xf32>
    %cst_106 = arith.constant 5.000000e-01 : f32
    %285 = vector.broadcast %cst_106 : f32 to vector<8x384xf32>
    %286 = arith.addf %284, %285 : vector<8x384xf32>
    %287 = vector.extract_strided_slice %278 {offsets = [0, 384], sizes = [8, 128], strides = [1, 1]} : vector<8x512xf32> to vector<8x128xf32>
    %288 = math.tanh %287 : vector<8x128xf32>
    %289 = vector.extract_strided_slice %286 {offsets = [0, 0], sizes = [8, 128], strides = [1, 1]} : vector<8x384xf32> to vector<8x128xf32>
    %290 = vector.extract_strided_slice %286 {offsets = [0, 128], sizes = [8, 128], strides = [1, 1]} : vector<8x384xf32> to vector<8x128xf32>
    %291 = vector.extract_strided_slice %286 {offsets = [0, 256], sizes = [8, 128], strides = [1, 1]} : vector<8x384xf32> to vector<8x128xf32>
    %292 = arith.mulf %290, %270 : vector<8x128xf32>
    %293 = arith.mulf %289, %288 : vector<8x128xf32>
    %294 = arith.addf %292, %293 : vector<8x128xf32>
    %295 = math.tanh %294 : vector<8x128xf32>
    %296 = arith.mulf %291, %295 : vector<8x128xf32>
    %c2_i32_107 = arith.constant 2 : i32
    %297 = arith.index_cast %c2_i32_107 : i32 to index
    %c0_108 = arith.constant 0 : index
    %c0_109 = arith.constant 0 : index
    %298 = vector.load %arg11[%297, %c0_108, %c0_109] : memref<8x8x512xf32, #tpu.memory_space<vmem>>, vector<1x8x512xf32>
    %299 = vector.shape_cast %298 : vector<1x8x512xf32> to vector<8x512xf32>
    %300 = arith.truncf %296 : vector<8x128xf32> to vector<8x128xbf16>
    %cst_110 = arith.constant dense<0.000000e+00> : vector<8x512xf32>
    %301 = tpu.matmul %300, %237, %cst_110 {dimension_numbers = #tpu.dot_dimension_numbers<[1], [0], [0], [1], [0, 0, 1, 1], [], []>} : vector<8x128xbf16>, vector<128x512xbf16>, vector<8x512xf32> -> vector<8x512xf32>
    %302 = arith.addf %299, %301 : vector<8x512xf32>
    %303 = vector.extract_strided_slice %302 {offsets = [0, 0], sizes = [8, 384], strides = [1, 1]} : vector<8x512xf32> to vector<8x384xf32>
    %cst_111 = arith.constant 5.000000e-01 : f32
    %304 = vector.broadcast %cst_111 : f32 to vector<8x384xf32>
    %305 = arith.mulf %304, %303 : vector<8x384xf32>
    %306 = math.tanh %305 : vector<8x384xf32>
    %cst_112 = arith.constant 5.000000e-01 : f32
    %307 = vector.broadcast %cst_112 : f32 to vector<8x384xf32>
    %308 = arith.mulf %307, %306 : vector<8x384xf32>
    %cst_113 = arith.constant 5.000000e-01 : f32
    %309 = vector.broadcast %cst_113 : f32 to vector<8x384xf32>
    %310 = arith.addf %308, %309 : vector<8x384xf32>
    %311 = vector.extract_strided_slice %302 {offsets = [0, 384], sizes = [8, 128], strides = [1, 1]} : vector<8x512xf32> to vector<8x128xf32>
    %312 = math.tanh %311 : vector<8x128xf32>
    %313 = vector.extract_strided_slice %310 {offsets = [0, 0], sizes = [8, 128], strides = [1, 1]} : vector<8x384xf32> to vector<8x128xf32>
    %314 = vector.extract_strided_slice %310 {offsets = [0, 128], sizes = [8, 128], strides = [1, 1]} : vector<8x384xf32> to vector<8x128xf32>
    %315 = vector.extract_strided_slice %310 {offsets = [0, 256], sizes = [8, 128], strides = [1, 1]} : vector<8x384xf32> to vector<8x128xf32>
    %316 = arith.mulf %314, %294 : vector<8x128xf32>
    %317 = arith.mulf %313, %312 : vector<8x128xf32>
    %318 = arith.addf %316, %317 : vector<8x128xf32>
    %319 = math.tanh %318 : vector<8x128xf32>
    %320 = arith.mulf %315, %319 : vector<8x128xf32>
    %c3_i32_114 = arith.constant 3 : i32
    %321 = arith.index_cast %c3_i32_114 : i32 to index
    %c0_115 = arith.constant 0 : index
    %c0_116 = arith.constant 0 : index
    %322 = vector.load %arg11[%321, %c0_115, %c0_116] : memref<8x8x512xf32, #tpu.memory_space<vmem>>, vector<1x8x512xf32>
    %323 = vector.shape_cast %322 : vector<1x8x512xf32> to vector<8x512xf32>
    %324 = arith.truncf %320 : vector<8x128xf32> to vector<8x128xbf16>
    %cst_117 = arith.constant dense<0.000000e+00> : vector<8x512xf32>
    %325 = tpu.matmul %324, %237, %cst_117 {dimension_numbers = #tpu.dot_dimension_numbers<[1], [0], [0], [1], [0, 0, 1, 1], [], []>} : vector<8x128xbf16>, vector<128x512xbf16>, vector<8x512xf32> -> vector<8x512xf32>
    %326 = arith.addf %323, %325 : vector<8x512xf32>
    %327 = vector.extract_strided_slice %326 {offsets = [0, 0], sizes = [8, 384], strides = [1, 1]} : vector<8x512xf32> to vector<8x384xf32>
    %cst_118 = arith.constant 5.000000e-01 : f32
    %328 = vector.broadcast %cst_118 : f32 to vector<8x384xf32>
    %329 = arith.mulf %328, %327 : vector<8x384xf32>
    %330 = math.tanh %329 : vector<8x384xf32>
    %cst_119 = arith.constant 5.000000e-01 : f32
    %331 = vector.broadcast %cst_119 : f32 to vector<8x384xf32>
    %332 = arith.mulf %331, %330 : vector<8x384xf32>
    %cst_120 = arith.constant 5.000000e-01 : f32
    %333 = vector.broadcast %cst_120 : f32 to vector<8x384xf32>
    %334 = arith.addf %332, %333 : vector<8x384xf32>
    %335 = vector.extract_strided_slice %326 {offsets = [0, 384], sizes = [8, 128], strides = [1, 1]} : vector<8x512xf32> to vector<8x128xf32>
    %336 = math.tanh %335 : vector<8x128xf32>
    %337 = vector.extract_strided_slice %334 {offsets = [0, 0], sizes = [8, 128], strides = [1, 1]} : vector<8x384xf32> to vector<8x128xf32>
    %338 = vector.extract_strided_slice %334 {offsets = [0, 128], sizes = [8, 128], strides = [1, 1]} : vector<8x384xf32> to vector<8x128xf32>
    %339 = vector.extract_strided_slice %334 {offsets = [0, 256], sizes = [8, 128], strides = [1, 1]} : vector<8x384xf32> to vector<8x128xf32>
    %340 = arith.mulf %338, %318 : vector<8x128xf32>
    %341 = arith.mulf %337, %336 : vector<8x128xf32>
    %342 = arith.addf %340, %341 : vector<8x128xf32>
    %343 = math.tanh %342 : vector<8x128xf32>
    %344 = arith.mulf %339, %343 : vector<8x128xf32>
    %c4_i32_121 = arith.constant 4 : i32
    %345 = arith.index_cast %c4_i32_121 : i32 to index
    %c0_122 = arith.constant 0 : index
    %c0_123 = arith.constant 0 : index
    %346 = vector.load %arg11[%345, %c0_122, %c0_123] : memref<8x8x512xf32, #tpu.memory_space<vmem>>, vector<1x8x512xf32>
    %347 = vector.shape_cast %346 : vector<1x8x512xf32> to vector<8x512xf32>
    %348 = arith.truncf %344 : vector<8x128xf32> to vector<8x128xbf16>
    %cst_124 = arith.constant dense<0.000000e+00> : vector<8x512xf32>
    %349 = tpu.matmul %348, %237, %cst_124 {dimension_numbers = #tpu.dot_dimension_numbers<[1], [0], [0], [1], [0, 0, 1, 1], [], []>} : vector<8x128xbf16>, vector<128x512xbf16>, vector<8x512xf32> -> vector<8x512xf32>
    %350 = arith.addf %347, %349 : vector<8x512xf32>
    %351 = vector.extract_strided_slice %350 {offsets = [0, 0], sizes = [8, 384], strides = [1, 1]} : vector<8x512xf32> to vector<8x384xf32>
    %cst_125 = arith.constant 5.000000e-01 : f32
    %352 = vector.broadcast %cst_125 : f32 to vector<8x384xf32>
    %353 = arith.mulf %352, %351 : vector<8x384xf32>
    %354 = math.tanh %353 : vector<8x384xf32>
    %cst_126 = arith.constant 5.000000e-01 : f32
    %355 = vector.broadcast %cst_126 : f32 to vector<8x384xf32>
    %356 = arith.mulf %355, %354 : vector<8x384xf32>
    %cst_127 = arith.constant 5.000000e-01 : f32
    %357 = vector.broadcast %cst_127 : f32 to vector<8x384xf32>
    %358 = arith.addf %356, %357 : vector<8x384xf32>
    %359 = vector.extract_strided_slice %350 {offsets = [0, 384], sizes = [8, 128], strides = [1, 1]} : vector<8x512xf32> to vector<8x128xf32>
    %360 = math.tanh %359 : vector<8x128xf32>
    %361 = vector.extract_strided_slice %358 {offsets = [0, 0], sizes = [8, 128], strides = [1, 1]} : vector<8x384xf32> to vector<8x128xf32>
    %362 = vector.extract_strided_slice %358 {offsets = [0, 128], sizes = [8, 128], strides = [1, 1]} : vector<8x384xf32> to vector<8x128xf32>
    %363 = vector.extract_strided_slice %358 {offsets = [0, 256], sizes = [8, 128], strides = [1, 1]} : vector<8x384xf32> to vector<8x128xf32>
    %364 = arith.mulf %362, %342 : vector<8x128xf32>
    %365 = arith.mulf %361, %360 : vector<8x128xf32>
    %366 = arith.addf %364, %365 : vector<8x128xf32>
    %367 = math.tanh %366 : vector<8x128xf32>
    %368 = arith.mulf %363, %367 : vector<8x128xf32>
    %c5_i32_128 = arith.constant 5 : i32
    %369 = arith.index_cast %c5_i32_128 : i32 to index
    %c0_129 = arith.constant 0 : index
    %c0_130 = arith.constant 0 : index
    %370 = vector.load %arg11[%369, %c0_129, %c0_130] : memref<8x8x512xf32, #tpu.memory_space<vmem>>, vector<1x8x512xf32>
    %371 = vector.shape_cast %370 : vector<1x8x512xf32> to vector<8x512xf32>
    %372 = arith.truncf %368 : vector<8x128xf32> to vector<8x128xbf16>
    %cst_131 = arith.constant dense<0.000000e+00> : vector<8x512xf32>
    %373 = tpu.matmul %372, %237, %cst_131 {dimension_numbers = #tpu.dot_dimension_numbers<[1], [0], [0], [1], [0, 0, 1, 1], [], []>} : vector<8x128xbf16>, vector<128x512xbf16>, vector<8x512xf32> -> vector<8x512xf32>
    %374 = arith.addf %371, %373 : vector<8x512xf32>
    %375 = vector.extract_strided_slice %374 {offsets = [0, 0], sizes = [8, 384], strides = [1, 1]} : vector<8x512xf32> to vector<8x384xf32>
    %cst_132 = arith.constant 5.000000e-01 : f32
    %376 = vector.broadcast %cst_132 : f32 to vector<8x384xf32>
    %377 = arith.mulf %376, %375 : vector<8x384xf32>
    %378 = math.tanh %377 : vector<8x384xf32>
    %cst_133 = arith.constant 5.000000e-01 : f32
    %379 = vector.broadcast %cst_133 : f32 to vector<8x384xf32>
    %380 = arith.mulf %379, %378 : vector<8x384xf32>
    %cst_134 = arith.constant 5.000000e-01 : f32
    %381 = vector.broadcast %cst_134 : f32 to vector<8x384xf32>
    %382 = arith.addf %380, %381 : vector<8x384xf32>
    %383 = vector.extract_strided_slice %374 {offsets = [0, 384], sizes = [8, 128], strides = [1, 1]} : vector<8x512xf32> to vector<8x128xf32>
    %384 = math.tanh %383 : vector<8x128xf32>
    %385 = vector.extract_strided_slice %382 {offsets = [0, 0], sizes = [8, 128], strides = [1, 1]} : vector<8x384xf32> to vector<8x128xf32>
    %386 = vector.extract_strided_slice %382 {offsets = [0, 128], sizes = [8, 128], strides = [1, 1]} : vector<8x384xf32> to vector<8x128xf32>
    %387 = vector.extract_strided_slice %382 {offsets = [0, 256], sizes = [8, 128], strides = [1, 1]} : vector<8x384xf32> to vector<8x128xf32>
    %388 = arith.mulf %386, %366 : vector<8x128xf32>
    %389 = arith.mulf %385, %384 : vector<8x128xf32>
    %390 = arith.addf %388, %389 : vector<8x128xf32>
    %391 = math.tanh %390 : vector<8x128xf32>
    %392 = arith.mulf %387, %391 : vector<8x128xf32>
    %c6_i32_135 = arith.constant 6 : i32
    %393 = arith.index_cast %c6_i32_135 : i32 to index
    %c0_136 = arith.constant 0 : index
    %c0_137 = arith.constant 0 : index
    %394 = vector.load %arg11[%393, %c0_136, %c0_137] : memref<8x8x512xf32, #tpu.memory_space<vmem>>, vector<1x8x512xf32>
    %395 = vector.shape_cast %394 : vector<1x8x512xf32> to vector<8x512xf32>
    %396 = arith.truncf %392 : vector<8x128xf32> to vector<8x128xbf16>
    %cst_138 = arith.constant dense<0.000000e+00> : vector<8x512xf32>
    %397 = tpu.matmul %396, %237, %cst_138 {dimension_numbers = #tpu.dot_dimension_numbers<[1], [0], [0], [1], [0, 0, 1, 1], [], []>} : vector<8x128xbf16>, vector<128x512xbf16>, vector<8x512xf32> -> vector<8x512xf32>
    %398 = arith.addf %395, %397 : vector<8x512xf32>
    %399 = vector.extract_strided_slice %398 {offsets = [0, 0], sizes = [8, 384], strides = [1, 1]} : vector<8x512xf32> to vector<8x384xf32>
    %cst_139 = arith.constant 5.000000e-01 : f32
    %400 = vector.broadcast %cst_139 : f32 to vector<8x384xf32>
    %401 = arith.mulf %400, %399 : vector<8x384xf32>
    %402 = math.tanh %401 : vector<8x384xf32>
    %cst_140 = arith.constant 5.000000e-01 : f32
    %403 = vector.broadcast %cst_140 : f32 to vector<8x384xf32>
    %404 = arith.mulf %403, %402 : vector<8x384xf32>
    %cst_141 = arith.constant 5.000000e-01 : f32
    %405 = vector.broadcast %cst_141 : f32 to vector<8x384xf32>
    %406 = arith.addf %404, %405 : vector<8x384xf32>
    %407 = vector.extract_strided_slice %398 {offsets = [0, 384], sizes = [8, 128], strides = [1, 1]} : vector<8x512xf32> to vector<8x128xf32>
    %408 = math.tanh %407 : vector<8x128xf32>
    %409 = vector.extract_strided_slice %406 {offsets = [0, 0], sizes = [8, 128], strides = [1, 1]} : vector<8x384xf32> to vector<8x128xf32>
    %410 = vector.extract_strided_slice %406 {offsets = [0, 128], sizes = [8, 128], strides = [1, 1]} : vector<8x384xf32> to vector<8x128xf32>
    %411 = vector.extract_strided_slice %406 {offsets = [0, 256], sizes = [8, 128], strides = [1, 1]} : vector<8x384xf32> to vector<8x128xf32>
    %412 = arith.mulf %410, %390 : vector<8x128xf32>
    %413 = arith.mulf %409, %408 : vector<8x128xf32>
    %414 = arith.addf %412, %413 : vector<8x128xf32>
    %415 = math.tanh %414 : vector<8x128xf32>
    %416 = arith.mulf %411, %415 : vector<8x128xf32>
    %c7_i32_142 = arith.constant 7 : i32
    %417 = arith.index_cast %c7_i32_142 : i32 to index
    %c0_143 = arith.constant 0 : index
    %c0_144 = arith.constant 0 : index
    %418 = vector.load %arg11[%417, %c0_143, %c0_144] : memref<8x8x512xf32, #tpu.memory_space<vmem>>, vector<1x8x512xf32>
    %419 = vector.shape_cast %418 : vector<1x8x512xf32> to vector<8x512xf32>
    %420 = arith.truncf %416 : vector<8x128xf32> to vector<8x128xbf16>
    %cst_145 = arith.constant dense<0.000000e+00> : vector<8x512xf32>
    %421 = tpu.matmul %420, %237, %cst_145 {dimension_numbers = #tpu.dot_dimension_numbers<[1], [0], [0], [1], [0, 0, 1, 1], [], []>} : vector<8x128xbf16>, vector<128x512xbf16>, vector<8x512xf32> -> vector<8x512xf32>
    %422 = arith.addf %419, %421 : vector<8x512xf32>
    %423 = vector.extract_strided_slice %422 {offsets = [0, 0], sizes = [8, 384], strides = [1, 1]} : vector<8x512xf32> to vector<8x384xf32>
    %cst_146 = arith.constant 5.000000e-01 : f32
    %424 = vector.broadcast %cst_146 : f32 to vector<8x384xf32>
    %425 = arith.mulf %424, %423 : vector<8x384xf32>
    %426 = math.tanh %425 : vector<8x384xf32>
    %cst_147 = arith.constant 5.000000e-01 : f32
    %427 = vector.broadcast %cst_147 : f32 to vector<8x384xf32>
    %428 = arith.mulf %427, %426 : vector<8x384xf32>
    %cst_148 = arith.constant 5.000000e-01 : f32
    %429 = vector.broadcast %cst_148 : f32 to vector<8x384xf32>
    %430 = arith.addf %428, %429 : vector<8x384xf32>
    %431 = vector.extract_strided_slice %422 {offsets = [0, 384], sizes = [8, 128], strides = [1, 1]} : vector<8x512xf32> to vector<8x128xf32>
    %432 = math.tanh %431 : vector<8x128xf32>
    %433 = vector.extract_strided_slice %430 {offsets = [0, 0], sizes = [8, 128], strides = [1, 1]} : vector<8x384xf32> to vector<8x128xf32>
    %434 = vector.extract_strided_slice %430 {offsets = [0, 128], sizes = [8, 128], strides = [1, 1]} : vector<8x384xf32> to vector<8x128xf32>
    %435 = vector.extract_strided_slice %430 {offsets = [0, 256], sizes = [8, 128], strides = [1, 1]} : vector<8x384xf32> to vector<8x128xf32>
    %436 = arith.mulf %434, %414 : vector<8x128xf32>
    %437 = arith.mulf %433, %432 : vector<8x128xf32>
    %438 = arith.addf %436, %437 : vector<8x128xf32>
    %439 = math.tanh %438 : vector<8x128xf32>
    %440 = arith.mulf %435, %439 : vector<8x128xf32>
    %c8_i32_149 = arith.constant 8 : i32
    %c8 = arith.constant 8 : index
    %c0_150 = arith.constant 0 : index
    %441 = vector.load %arg12[%c8, %c0_150] : memref<16x128xf32, #tpu.memory_space<vmem>>, vector<8x128xf32>
    tpu.vector_store %arg12[%c8, %c0_150], %440 {strides = array<i32>} : memref<16x128xf32, #tpu.memory_space<vmem>>, vector<8x128xf32>,
    %c0_151 = arith.constant 0 : index
    %c0_152 = arith.constant 0 : index
    %442 = vector.load %arg12[%c0_151, %c0_152] : memref<16x128xf32, #tpu.memory_space<vmem>>, vector<16x128xf32>
    %443 = arith.truncf %442 : vector<16x128xf32> to vector<16x128xbf16>
    %c0_153 = arith.constant 0 : index
    %c0_154 = arith.constant 0 : index
    %444 = vector.load %arg7[%c0_153, %c0_154] : memref<128x128xbf16, #tpu.memory_space<vmem>>, vector<128x128xbf16>
    %cst_155 = arith.constant dense<0.000000e+00> : vector<16x128xf32>
    %445 = tpu.matmul %443, %444, %cst_155 {dimension_numbers = #tpu.dot_dimension_numbers<[1], [0], [0], [1], [0, 0, 1, 1], [], []>} : vector<16x128xbf16>, vector<128x128xbf16>, vector<16x128xf32> -> vector<16x128xf32>
    %c0_156 = arith.constant 0 : index
    %c0_157 = arith.constant 0 : index
    %446 = vector.load %arg8[%c0_156, %c0_157] : memref<1x128xf32, #tpu.memory_space<vmem>>, vector<1x128xf32>
    %447 = vector.broadcast %446 : vector<1x128xf32> to vector<16x128xf32>
    %448 = arith.addf %445, %447 : vector<16x128xf32>
    %c0_158 = arith.constant 0 : index
    %c0_159 = arith.constant 0 : index
    %449 = vector.load %arg9[%c0_158, %c0_159] : memref<16x128xf32, #tpu.memory_space<vmem>>, vector<16x128xf32>
    tpu.vector_store %arg9[%c0_158, %c0_159], %448 {strides = array<i32>} : memref<16x128xf32, #tpu.memory_space<vmem>>, vector<16x128xf32>,
    return
  }
}

</mosaic_0001>

<llo_original>
// kernel: tpu_custom_call.1
$region0: #{tpu_custom_call.1}
  #allocation0 [shape = 'u32[]', space=smem, size = 0x4, offset = 0x4, fixed_abs, tag = 'smem constant byte address 0x4 - core index']
  #allocation1 [shape = 'u32[72,128]{1,0:T(1,128)}', space=vmem, size = 0x9000, scoped, tag = 'internal scratch']
  #allocation2 [shape = 'f32[8,8,128]{2,1,0:T(8,128)}', space=vmem, size = 0x8000, scoped, tag = 'scratch operand']
  #allocation3 [shape = 'f32[8,8,512]{2,1,0:T(8,128)}', space=vmem, size = 0x20000, scoped, tag = 'scratch operand']
  #allocation4 [shape = 'f32[16,128]{1,0:T(8,128)}', space=vmem, size = 0x2000, scoped, tag = 'scratch operand']
  %s0 = inlined_call_operand.hbm [shape: bf16[64,128], index: 0, kind: input, shape index: {}]
  %s1 = inlined_call_operand.hbm [shape: bf16[128,512], index: 1, kind: input, shape index: {}]
  %s2 = inlined_call_operand.hbm [shape: bf16[128,512], index: 2, kind: input, shape index: {}]
  %s3 = inlined_call_operand.hbm [shape: f32[1,512], index: 3, kind: input, shape index: {}]
  %s4 = inlined_call_operand.hbm [shape: bf16[128,512], index: 4, kind: input, shape index: {}]
  %s5 = inlined_call_operand.hbm [shape: bf16[128,512], index: 5, kind: input, shape index: {}]
  %s6 = inlined_call_operand.vmem [shape: f32[1,512], index: 6, kind: input, shape index: {}]
  %s7 = inlined_call_operand.hbm [shape: bf16[128,128], index: 7, kind: input, shape index: {}]
  %s8 = inlined_call_operand.vmem [shape: f32[1,128], index: 8, kind: input, shape index: {}]
  %s9 = inlined_call_operand.hbm [shape: f32[16,128], index: 9, kind: output, shape index: {}]
  %s10 = sld [smem:[#allocation0]]
  $region74: #{tpu_custom_call.1} parent=0
    _
  %s12 = ssub.s32 1, %s10
  %s13 = scalar_select 0, %s12, %s10
  $region1: #{tpu_custom_call.1} parent=0
    #allocation5 [shape = 'u8[16384]{0}', space=vmem, size = 0x4000, scoped, tag = 'input window, operand 0, single buffered']
    #allocation6 [shape = 's32[1]{0}', space=sflag, size = 0x4, scoped, tag = 'scoped memory for tpu_custom_call.1']
    #allocation7 [shape = 's32[1]{0}', space=sflag, size = 0x4, scoped, tag = 'scoped memory for tpu_custom_call.1']
    #allocation8 [shape = 'u8[131072]{0}', space=vmem, size = 0x20000, scoped, tag = 'input window, operand 1, single buffered']
    #allocation9 [shape = 's32[1]{0}', space=sflag, size = 0x4, scoped, tag = 'scoped memory for tpu_custom_call.1']
    #allocation10 [shape = 'u8[131072]{0}', space=vmem, size = 0x20000, scoped, tag = 'input window, operand 2, single buffered']
    #allocation11 [shape = 'u8[2048]{0}', space=vmem, size = 0x800, scoped, tag = 'input window, operand 3, single buffered']
    #allocation12 [shape = 's32[1]{0}', space=sflag, size = 0x4, scoped, tag = 'scoped memory for tpu_custom_call.1']
    #allocation13 [shape = 'u8[131072]{0}', space=vmem, size = 0x20000, scoped, tag = 'input window, operand 4, single buffered']
    #allocation14 [shape = 'u8[131072]{0}', space=vmem, size = 0x20000, scoped, tag = 'input window, operand 5, single buffered']
    #allocation15 [shape = 's32[1]{0}', space=sflag, size = 0x4, scoped, tag = 'scoped memory for tpu_custom_call.1']
    #allocation16 [shape = 'u8[32768]{0}', space=vmem, size = 0x8000, scoped, tag = 'input window, operand 7, single buffered']
    #allocation17 [shape = 'u8[8192]{0}', space=vmem, size = 0x2000, scoped, tag = 'output window, operand 0, single buffered']
    %14 = vsyncpa [#allocation6], 0
    %15 = vsyncpa [#allocation9], 0
    %16 = vsyncpa [#allocation12], 0
    %17 = vsyncpa [#allocation15], 0
    %18 = vsyncpa [#allocation7], 0
    // Predicated region
    $region2: #{tpu_custom_call.1} parent=1 // pred_check
      _
    $region3: #{tpu_custom_call.1} parent=1 // pred_check_branch
      %20 = sbr.rel (0) target = $region5
    $region4: #{tpu_custom_call.1} parent=1 // pred_region
      %22 = vsyncadd [#allocation6], 0
      %s23 = sshll.u32 %s0, 4
      %s24 = int_to_ptr.hbm [resolvable:$true] %s23
      %s25 = sshll.u32 [#allocation5], 4
      %s26 = int_to_ptr.vmem [resolvable:$true] %s25
      %31 = dma.hbm_to_vmem [thread:$0]  %s24, 512, %s26, [#allocation6], 64, 64, 4
    $region5: #{tpu_custom_call.1} parent=1 // pred_fallthru
      _
    // Predicated region
    $region6: #{tpu_custom_call.1} parent=1 // pred_check
      _
    $region7: #{tpu_custom_call.1} parent=1 // pred_check_branch
      %33 = sbr.rel (0) target = $region9
    $region8: #{tpu_custom_call.1} parent=1 // pred_region
      %35 = vsyncadd [#allocation9], 0
      %s36 = sshll.u32 %s1, 4
      %s37 = int_to_ptr.hbm [resolvable:$true] %s36
      %s38 = sshll.u32 [#allocation8], 4
      %s39 = int_to_ptr.vmem [resolvable:$true] %s38
      %44 = dma.hbm_to_vmem [thread:$0]  %s37, 4096, %s39, [#allocation9], 256, 256, 16
    $region9: #{tpu_custom_call.1} parent=1 // pred_fallthru
      _
    // Predicated region
    $region10: #{tpu_custom_call.1} parent=1 // pred_check
      _
    $region11: #{tpu_custom_call.1} parent=1 // pred_check_branch
      %46 = sbr.rel (0) target = $region13
    $region12: #{tpu_custom_call.1} parent=1 // pred_region
      %48 = vsyncadd [#allocation9], 0
      %s49 = sshll.u32 %s2, 4
      %s50 = int_to_ptr.hbm [resolvable:$true] %s49
      %s51 = sshll.u32 [#allocation10], 4
      %s52 = int_to_ptr.vmem [resolvable:$true] %s51
      %57 = dma.hbm_to_vmem [thread:$0]  %s50, 4096, %s52, [#allocation9], 256, 256, 16
    $region13: #{tpu_custom_call.1} parent=1 // pred_fallthru
      _
    // Predicated region
    $region14: #{tpu_custom_call.1} parent=1 // pred_check
      _
    $region15: #{tpu_custom_call.1} parent=1 // pred_check_branch
      %59 = sbr.rel (0) target = $region17
    $region16: #{tpu_custom_call.1} parent=1 // pred_region
      %61 = vsyncadd [#allocation12], 0
      %s63 = sshll.u32 %s3, 4
      %s64 = int_to_ptr.hbm [resolvable:$true] %s63
      %s65 = sshll.u32 [#allocation11], 4
      %s66 = int_to_ptr.vmem [resolvable:$true] %s65
      %68 = dma.hbm_to_vmem [thread:$0]  %s64, 64, %s66, [#allocation12]
    $region17: #{tpu_custom_call.1} parent=1 // pred_fallthru
      _
    // Predicated region
    $region18: #{tpu_custom_call.1} parent=1 // pred_check
      _
    $region19: #{tpu_custom_call.1} parent=1 // pred_check_branch
      %70 = sbr.rel (0) target = $region21
    $region20: #{tpu_custom_call.1} parent=1 // pred_region
      %72 = vsyncadd [#allocation12], 0
      %s73 = sshll.u32 %s4, 4
      %s74 = int_to_ptr.hbm [resolvable:$true] %s73
      %s75 = sshll.u32 [#allocation13], 4
      %s76 = int_to_ptr.vmem [resolvable:$true] %s75
      %81 = dma.hbm_to_vmem [thread:$0]  %s74, 4096, %s76, [#allocation12], 256, 256, 16
    $region21: #{tpu_custom_call.1} parent=1 // pred_fallthru
      _
    // Predicated region
    $region22: #{tpu_custom_call.1} parent=1 // pred_check
      _
    $region23: #{tpu_custom_call.1} parent=1 // pred_check_branch
      %83 = sbr.rel (0) target = $region25
    $region24: #{tpu_custom_call.1} parent=1 // pred_region
      %85 = vsyncadd [#allocation15], 0
      %s86 = sshll.u32 %s5, 4
      %s87 = int_to_ptr.hbm [resolvable:$true] %s86
      %s88 = sshll.u32 [#allocation14], 4
      %s89 = int_to_ptr.vmem [resolvable:$true] %s88
      %94 = dma.hbm_to_vmem [thread:$0]  %s87, 4096, %s89, [#allocation15], 256, 256, 16
    $region25: #{tpu_custom_call.1} parent=1 // pred_fallthru
      _
    // Predicated region
    $region26: #{tpu_custom_call.1} parent=1 // pred_check
      _
    $region27: #{tpu_custom_call.1} parent=1 // pred_check_branch
      %96 = sbr.rel (0) target = $region29
    $region28: #{tpu_custom_call.1} parent=1 // pred_region
      _
    $region29: #{tpu_custom_call.1} parent=1 // pred_fallthru
      _
    // Predicated region
    $region30: #{tpu_custom_call.1} parent=1 // pred_check
      _
    $region31: #{tpu_custom_call.1} parent=1 // pred_check_branch
      %98 = sbr.rel (0) target = $region33
    $region32: #{tpu_custom_call.1} parent=1 // pred_region
      %100 = vsyncadd [#allocation15], 0
      %s101 = sshll.u32 %s7, 4
      %s102 = int_to_ptr.hbm [resolvable:$true] %s101
      %s103 = sshll.u32 [#allocation16], 4
      %s104 = int_to_ptr.vmem [resolvable:$true] %s103
      %109 = dma.hbm_to_vmem [thread:$0]  %s102, 1024, %s104, [#allocation15], 64, 64, 4
    $region33: #{tpu_custom_call.1} parent=1 // pred_fallthru
      _
    // Predicated region
    $region34: #{tpu_custom_call.1} parent=1 // pred_check
      _
    $region35: #{tpu_custom_call.1} parent=1 // pred_check_branch
      %111 = sbr.rel (0) target = $region37
    $region36: #{tpu_custom_call.1} parent=1 // pred_region
      _
    $region37: #{tpu_custom_call.1} parent=1 // pred_fallthru
      _
    // Predicated region
    $region38: #{tpu_custom_call.1} parent=1 // pred_check
      _
    $region39: #{tpu_custom_call.1} parent=1 // pred_check_branch
      %113 = sbr.rel (0) target = $region41
    $region40: #{tpu_custom_call.1} parent=1 // pred_region
      %115 = dma.done [#allocation6], 512
    $region41: #{tpu_custom_call.1} parent=1 // pred_fallthru
      _
    // Predicated region
    $region42: #{tpu_custom_call.1} parent=1 // pred_check
      _
    $region43: #{tpu_custom_call.1} parent=1 // pred_check_branch
      %117 = sbr.rel (0) target = $region45
    $region44: #{tpu_custom_call.1} parent=1 // pred_region
      %119 = dma.done [#allocation9], 4096
    $region45: #{tpu_custom_call.1} parent=1 // pred_fallthru
      _
    // Predicated region
    $region46: #{tpu_custom_call.1} parent=1 // pred_check
      _
    $region47: #{tpu_custom_call.1} parent=1 // pred_check_branch
      %121 = sbr.rel (0) target = $region49
    $region48: #{tpu_custom_call.1} parent=1 // pred_region
      %123 = dma.done [#allocation9], 4096
    $region49: #{tpu_custom_call.1} parent=1 // pred_fallthru
      _
    // Predicated region
    $region50: #{tpu_custom_call.1} parent=1 // pred_check
      _
    $region51: #{tpu_custom_call.1} parent=1 // pred_check_branch
      %125 = sbr.rel (0) target = $region53
    $region52: #{tpu_custom_call.1} parent=1 // pred_region
      %127 = dma.done [#allocation12], 64
    $region53: #{tpu_custom_call.1} parent=1 // pred_fallthru
      _
    // Predicated region
    $region54: #{tpu_custom_call.1} parent=1 // pred_check
      _
    $region55: #{tpu_custom_call.1} parent=1 // pred_check_branch
      %129 = sbr.rel (0) target = $region57
    $region56: #{tpu_custom_call.1} parent=1 // pred_region
      %131 = dma.done [#allocation12], 4096
    $region57: #{tpu_custom_call.1} parent=1 // pred_fallthru
      _
    // Predicated region
    $region58: #{tpu_custom_call.1} parent=1 // pred_check
      _
    $region59: #{tpu_custom_call.1} parent=1 // pred_check_branch
      %133 = sbr.rel (0) target = $region61
    $region60: #{tpu_custom_call.1} parent=1 // pred_region
      %135 = dma.done [#allocation15], 4096
    $region61: #{tpu_custom_call.1} parent=1 // pred_fallthru
      _
    // Predicated region
    $region62: #{tpu_custom_call.1} parent=1 // pred_check
      _
    $region63: #{tpu_custom_call.1} parent=1 // pred_check_branch
      %137 = sbr.rel (0) target = $region65
    $region64: #{tpu_custom_call.1} parent=1 // pred_region
      %139 = dma.done [#allocation15], 1024
    $region65: #{tpu_custom_call.1} parent=1 // pred_fallthru
      _
    %v141 = vld [vmem:[#allocation8] sm:$0xff]
    %v142 = vld [vmem:[#allocation8 + $0x8] sm:$0xff]
    %v143 = vld [vmem:[#allocation8 + $0x10] sm:$0xff]
    %v144 = vld [vmem:[#allocation8 + $0x18] sm:$0xff]
    %v145 = vld [vmem:[#allocation8 + $0x20] sm:$0xff]
    %v146 = vld [vmem:[#allocation8 + $0x28] sm:$0xff]
    %v147 = vld [vmem:[#allocation8 + $0x30] sm:$0xff]
    %v148 = vld [vmem:[#allocation8 + $0x38] sm:$0xff]
    %v149 = vld [vmem:[#allocation8 + $0x40] sm:$0xff]
    %v150 = vld [vmem:[#allocation8 + $0x48] sm:$0xff]
    %v151 = vld [vmem:[#allocation8 + $0x50] sm:$0xff]
    %v152 = vld [vmem:[#allocation8 + $0x58] sm:$0xff]
    %v153 = vld [vmem:[#allocation8 + $0x60] sm:$0xff]
    %v154 = vld [vmem:[#allocation8 + $0x68] sm:$0xff]
    %v155 = vld [vmem:[#allocation8 + $0x70] sm:$0xff]
    %v156 = vld [vmem:[#allocation8 + $0x78] sm:$0xff]
    %v157 = vld [vmem:[#allocation8 + $0x80] sm:$0xff]
    %v158 = vld [vmem:[#allocation8 + $0x88] sm:$0xff]
    %v159 = vld [vmem:[#allocation8 + $0x90] sm:$0xff]
    %v160 = vld [vmem:[#allocation8 + $0x98] sm:$0xff]
    %v161 = vld [vmem:[#allocation8 + $0xa0] sm:$0xff]
    %v162 = vld [vmem:[#allocation8 + $0xa8] sm:$0xff]
    %v163 = vld [vmem:[#allocation8 + $0xb0] sm:$0xff]
    %v164 = vld [vmem:[#allocation8 + $0xb8] sm:$0xff]
    %v165 = vld [vmem:[#allocation8 + $0xc0] sm:$0xff]
    %v166 = vld [vmem:[#allocation8 + $0xc8] sm:$0xff]
    %v167 = vld [vmem:[#allocation8 + $0xd0] sm:$0xff]
    %v168 = vld [vmem:[#allocation8 + $0xd8] sm:$0xff]
    %v169 = vld [vmem:[#allocation8 + $0xe0] sm:$0xff]
    %v170 = vld [vmem:[#allocation8 + $0xe8] sm:$0xff]
    %v171 = vld [vmem:[#allocation8 + $0xf0] sm:$0xff]
    %v172 = vld [vmem:[#allocation8 + $0xf8] sm:$0xff]
    %v173 = vld [vmem:[#allocation10] sm:$0xff]
    %v174 = vld [vmem:[#allocation10 + $0x8] sm:$0xff]
    %v175 = vld [vmem:[#allocation10 + $0x10] sm:$0xff]
    %v176 = vld [vmem:[#allocation10 + $0x18] sm:$0xff]
    %v177 = vld [vmem:[#allocation10 + $0x20] sm:$0xff]
    %v178 = vld [vmem:[#allocation10 + $0x28] sm:$0xff]
    %v179 = vld [vmem:[#allocation10 + $0x30] sm:$0xff]
    %v180 = vld [vmem:[#allocation10 + $0x38] sm:$0xff]
    %v181 = vld [vmem:[#allocation10 + $0x40] sm:$0xff]
    %v182 = vld [vmem:[#allocation10 + $0x48] sm:$0xff]
    %v183 = vld [vmem:[#allocation10 + $0x50] sm:$0xff]
    %v184 = vld [vmem:[#allocation10 + $0x58] sm:$0xff]
    %v185 = vld [vmem:[#allocation10 + $0x60] sm:$0xff]
    %v186 = vld [vmem:[#allocation10 + $0x68] sm:$0xff]
    %v187 = vld [vmem:[#allocation10 + $0x70] sm:$0xff]
    %v188 = vld [vmem:[#allocation10 + $0x78] sm:$0xff]
    %v189 = vld [vmem:[#allocation10 + $0x80] sm:$0xff]
    %v190 = vld [vmem:[#allocation10 + $0x88] sm:$0xff]
    %v191 = vld [vmem:[#allocation10 + $0x90] sm:$0xff]
    %v192 = vld [vmem:[#allocation10 + $0x98] sm:$0xff]
    %v193 = vld [vmem:[#allocation10 + $0xa0] sm:$0xff]
    %v194 = vld [vmem:[#allocation10 + $0xa8] sm:$0xff]
    %v195 = vld [vmem:[#allocation10 + $0xb0] sm:$0xff]
    %v196 = vld [vmem:[#allocation10 + $0xb8] sm:$0xff]
    %v197 = vld [vmem:[#allocation10 + $0xc0] sm:$0xff]
    %v198 = vld [vmem:[#allocation10 + $0xc8] sm:$0xff]
    %v199 = vld [vmem:[#allocation10 + $0xd0] sm:$0xff]
    %v200 = vld [vmem:[#allocation10 + $0xd8] sm:$0xff]
    %v201 = vld [vmem:[#allocation10 + $0xe0] sm:$0xff]
    %v202 = vld [vmem:[#allocation10 + $0xe8] sm:$0xff]
    %v203 = vld [vmem:[#allocation10 + $0xf0] sm:$0xff]
    %v204 = vld [vmem:[#allocation10 + $0xf8] sm:$0xff]
    %v205 = vld [vmem:[#allocation11] sm:$0xf]
    %v206 = vld [vmem:[#allocation5] sm:$0xf]
    %v207 = vld [vmem:[#allocation5 + $0x4] sm:$0xf]
    %v208 = vld [vmem:[#allocation5 + $0x8] sm:$0xf]
    %v209 = vld [vmem:[#allocation5 + $0xc] sm:$0xf]
    %v210 = vld [vmem:[#allocation5 + $0x10] sm:$0xf]
    %v211 = vld [vmem:[#allocation5 + $0x14] sm:$0xf]
    %v212 = vld [vmem:[#allocation5 + $0x18] sm:$0xf]
    %v213 = vld [vmem:[#allocation5 + $0x1c] sm:$0xf]
    %v215 = vperm.slane %v205, 0
    %v216 = vperm.slane %v205, 1
    %v217 = vperm.slane %v205, 2
    %v218 = vperm.slane %v205, 3
    %v231 = vunpack.c.l.b16 %v206
    %v232 = vunpack.c.l.b16 %v207
    %v233 = vunpack.c.l.b16 %v208
    %v234 = vunpack.c.l.b16 %v209
    %v235 = vunpack.c.l.b16 %v210
    %v236 = vunpack.c.l.b16 %v211
    %v237 = vunpack.c.l.b16 %v212
    %v238 = vunpack.c.l.b16 %v213
    %v239 = vpack.c.b16 %v232, %v231
    %v240 = vpack.c.b16 %v234, %v233
    %v241 = vpack.c.b16 %v236, %v235
    %v242 = vpack.c.b16 %v238, %v237
    %v279 = vunpack.c.l.b16 %v141
    %v280 = vunpack.c.h.b16 %v141
    %v281 = vunpack.c.l.b16 %v142
    %v282 = vunpack.c.h.b16 %v142
    %v283 = vunpack.c.l.b16 %v143
    %v284 = vunpack.c.h.b16 %v143
    %v285 = vunpack.c.l.b16 %v144
    %v286 = vunpack.c.h.b16 %v144
    %v287 = vunpack.c.l.b16 %v145
    %v288 = vunpack.c.h.b16 %v145
    %v289 = vunpack.c.l.b16 %v146
    %v290 = vunpack.c.h.b16 %v146
    %v291 = vunpack.c.l.b16 %v147
    %v292 = vunpack.c.h.b16 %v147
    %v293 = vunpack.c.l.b16 %v148
    %v294 = vunpack.c.h.b16 %v148
    %v295 = vunpack.c.l.b16 %v149
    %v296 = vunpack.c.h.b16 %v149
    %v297 = vunpack.c.l.b16 %v150
    %v298 = vunpack.c.h.b16 %v150
    %v299 = vunpack.c.l.b16 %v151
    %v300 = vunpack.c.h.b16 %v151
    %v301 = vunpack.c.l.b16 %v152
    %v302 = vunpack.c.h.b16 %v152
    %v303 = vunpack.c.l.b16 %v153
    %v304 = vunpack.c.h.b16 %v153
    %v305 = vunpack.c.l.b16 %v154
    %v306 = vunpack.c.h.b16 %v154
    %v307 = vunpack.c.l.b16 %v155
    %v308 = vunpack.c.h.b16 %v155
    %v309 = vunpack.c.l.b16 %v156
    %v310 = vunpack.c.h.b16 %v156
    %v311 = vunpack.c.l.b16 %v157
    %v312 = vunpack.c.h.b16 %v157
    %v313 = vunpack.c.l.b16 %v158
    %v314 = vunpack.c.h.b16 %v158
    %v315 = vunpack.c.l.b16 %v159
    %v316 = vunpack.c.h.b16 %v159
    %v317 = vunpack.c.l.b16 %v160
    %v318 = vunpack.c.h.b16 %v160
    %v319 = vunpack.c.l.b16 %v161
    %v320 = vunpack.c.h.b16 %v161
    %v321 = vunpack.c.l.b16 %v162
    %v322 = vunpack.c.h.b16 %v162
    %v323 = vunpack.c.l.b16 %v163
    %v324 = vunpack.c.h.b16 %v163
    %v325 = vunpack.c.l.b16 %v164
    %v326 = vunpack.c.h.b16 %v164
    %v327 = vunpack.c.l.b16 %v165
    %v328 = vunpack.c.h.b16 %v165
    %v329 = vunpack.c.l.b16 %v166
    %v330 = vunpack.c.h.b16 %v166
    %v331 = vunpack.c.l.b16 %v167
    %v332 = vunpack.c.h.b16 %v167
    %v333 = vunpack.c.l.b16 %v168
    %v334 = vunpack.c.h.b16 %v168
    %v335 = vunpack.c.l.b16 %v169
    %v336 = vunpack.c.h.b16 %v169
    %v337 = vunpack.c.l.b16 %v170
    %v338 = vunpack.c.h.b16 %v170
    %v339 = vunpack.c.l.b16 %v171
    %v340 = vunpack.c.h.b16 %v171
    %v341 = vunpack.c.l.b16 %v172
    %v342 = vunpack.c.h.b16 %v172
    %v343 = vpack.c.b16 %v283, %v279
    %v344 = vpack.c.b16 %v284, %v280
    %v345 = vpack.c.b16 %v285, %v281
    %v346 = vpack.c.b16 %v286, %v282
    %v347 = vpack.c.b16 %v291, %v287
    %v348 = vpack.c.b16 %v292, %v288
    %v349 = vpack.c.b16 %v293, %v289
    %v350 = vpack.c.b16 %v294, %v290
    %v351 = vpack.c.b16 %v299, %v295
    %v352 = vpack.c.b16 %v300, %v296
    %v353 = vpack.c.b16 %v301, %v297
    %v354 = vpack.c.b16 %v302, %v298
    %v355 = vpack.c.b16 %v307, %v303
    %v356 = vpack.c.b16 %v308, %v304
    %v357 = vpack.c.b16 %v309, %v305
    %v358 = vpack.c.b16 %v310, %v306
    %v359 = vpack.c.b16 %v315, %v311
    %v360 = vpack.c.b16 %v316, %v312
    %v361 = vpack.c.b16 %v317, %v313
    %v362 = vpack.c.b16 %v318, %v314
    %v363 = vpack.c.b16 %v323, %v319
    %v364 = vpack.c.b16 %v324, %v320
    %v365 = vpack.c.b16 %v325, %v321
    %v366 = vpack.c.b16 %v326, %v322
    %v367 = vpack.c.b16 %v331, %v327
    %v368 = vpack.c.b16 %v332, %v328
    %v369 = vpack.c.b16 %v333, %v329
    %v370 = vpack.c.b16 %v334, %v330
    %v371 = vpack.c.b16 %v339, %v335
    %v372 = vpack.c.b16 %v340, %v336
    %v373 = vpack.c.b16 %v341, %v337
    %v374 = vpack.c.b16 %v342, %v338
    %407 = vmatpush.bf16.msra.mxu0 %v371
    %408 = vmatpush.bf16.msra.mxu0 %v367
    %409 = vmatpush.bf16.msra.mxu0 %v363
    %410 = vmatpush.bf16.msra.mxu0 %v359
    %411 = vmatpush.bf16.msra.mxu0 %v355
    %412 = vmatpush.bf16.msra.mxu0 %v351
    %413 = vmatpush.bf16.msra.mxu0 %v347
    %414 = vmatpush.bf16.msra.mxu0 %v343
    %415 = vmatmul.bf16.gmra.mxu0 %v239
    %v416 = vpop.f32.mrf.mxu0
    %v417 = vadd.f32 %v215, %v416
    %v418 = vpop.f32.mrf.mxu0
    %v419 = vadd.f32 %v215, %v418
    %420 = vmatmul.bf16.gmra.mxu0 %v240
    %v421 = vpop.f32.mrf.mxu0
    %v422 = vadd.f32 %v215, %v421
    %v423 = vpop.f32.mrf.mxu0
    %v424 = vadd.f32 %v215, %v423
    %425 = vmatmul.bf16.gmra.mxu0 %v241
    %v426 = vpop.f32.mrf.mxu0
    %v427 = vadd.f32 %v215, %v426
    %v428 = vpop.f32.mrf.mxu0
    %v429 = vadd.f32 %v215, %v428
    %430 = vmatmul.bf16.gmra.mxu0 %v242
    %v431 = vpop.f32.mrf.mxu0
    %v432 = vadd.f32 %v215, %v431
    %v433 = vpop.f32.mrf.mxu0
    %v434 = vadd.f32 %v215, %v433
    %435 = vdwg.mxu0
    %436 = vmatpush.bf16.msra.mxu0 %v372
    %437 = vmatpush.bf16.msra.mxu0 %v368
    %438 = vmatpush.bf16.msra.mxu0 %v364
    %439 = vmatpush.bf16.msra.mxu0 %v360
    %440 = vmatpush.bf16.msra.mxu0 %v356
    %441 = vmatpush.bf16.msra.mxu0 %v352
    %442 = vmatpush.bf16.msra.mxu0 %v348
    %443 = vmatpush.bf16.msra.mxu0 %v344
    %444 = vmatmul.bf16.gmra.mxu0 %v239
    %v445 = vpop.f32.mrf.mxu0
    %v446 = vadd.f32 %v216, %v445
    %v447 = vpop.f32.mrf.mxu0
    %v448 = vadd.f32 %v216, %v447
    %449 = vmatmul.bf16.gmra.mxu0 %v240
    %v450 = vpop.f32.mrf.mxu0
    %v451 = vadd.f32 %v216, %v450
    %v452 = vpop.f32.mrf.mxu0
    %v453 = vadd.f32 %v216, %v452
    %454 = vmatmul.bf16.gmra.mxu0 %v241
    %v455 = vpop.f32.mrf.mxu0
    %v456 = vadd.f32 %v216, %v455
    %v457 = vpop.f32.mrf.mxu0
    %v458 = vadd.f32 %v216, %v457
    %459 = vmatmul.bf16.gmra.mxu0 %v242
    %v460 = vpop.f32.mrf.mxu0
    %v461 = vadd.f32 %v216, %v460
    %v462 = vpop.f32.mrf.mxu0
    %v463 = vadd.f32 %v216, %v462
    %464 = vdwg.mxu0
    %465 = vmatpush.bf16.msra.mxu0 %v373
    %466 = vmatpush.bf16.msra.mxu0 %v369
    %467 = vmatpush.bf16.msra.mxu0 %v365
    %468 = vmatpush.bf16.msra.mxu0 %v361
    %469 = vmatpush.bf16.msra.mxu0 %v357
    %470 = vmatpush.bf16.msra.mxu0 %v353
    %471 = vmatpush.bf16.msra.mxu0 %v349
    %472 = vmatpush.bf16.msra.mxu0 %v345
    %473 = vmatmul.bf16.gmra.mxu0 %v239
    %v474 = vpop.f32.mrf.mxu0
    %v475 = vadd.f32 %v217, %v474
    %v476 = vpop.f32.mrf.mxu0
    %v477 = vadd.f32 %v217, %v476
    %478 = vmatmul.bf16.gmra.mxu0 %v240
    %v479 = vpop.f32.mrf.mxu0
    %v480 = vadd.f32 %v217, %v479
    %v481 = vpop.f32.mrf.mxu0
    %v482 = vadd.f32 %v217, %v481
    %483 = vmatmul.bf16.gmra.mxu0 %v241
    %v484 = vpop.f32.mrf.mxu0
    %v485 = vadd.f32 %v217, %v484
    %v486 = vpop.f32.mrf.mxu0
    %v487 = vadd.f32 %v217, %v486
    %488 = vmatmul.bf16.gmra.mxu0 %v242
    %v489 = vpop.f32.mrf.mxu0
    %v490 = vadd.f32 %v217, %v489
    %v491 = vpop.f32.mrf.mxu0
    %v492 = vadd.f32 %v217, %v491
    %493 = vdwg.mxu0
    %494 = vmatpush.bf16.msra.mxu0 %v374
    %495 = vmatpush.bf16.msra.mxu0 %v370
    %496 = vmatpush.bf16.msra.mxu0 %v366
    %497 = vmatpush.bf16.msra.mxu0 %v362
    %498 = vmatpush.bf16.msra.mxu0 %v358
    %499 = vmatpush.bf16.msra.mxu0 %v354
    %500 = vmatpush.bf16.msra.mxu0 %v350
    %501 = vmatpush.bf16.msra.mxu0 %v346
    %502 = vmatmul.bf16.gmra.mxu0 %v239
    %v503 = vpop.f32.mrf.mxu0
    %v504 = vadd.f32 %v218, %v503
    %v505 = vpop.f32.mrf.mxu0
    %v506 = vadd.f32 %v218, %v505
    %507 = vmatmul.bf16.gmra.mxu0 %v240
    %v508 = vpop.f32.mrf.mxu0
    %v509 = vadd.f32 %v218, %v508
    %v510 = vpop.f32.mrf.mxu0
    %v511 = vadd.f32 %v218, %v510
    %512 = vmatmul.bf16.gmra.mxu0 %v241
    %v513 = vpop.f32.mrf.mxu0
    %v514 = vadd.f32 %v218, %v513
    %v515 = vpop.f32.mrf.mxu0
    %v516 = vadd.f32 %v218, %v515
    %517 = vmatmul.bf16.gmra.mxu0 %v242
    %v518 = vpop.f32.mrf.mxu0
    %v519 = vadd.f32 %v218, %v518
    %v520 = vpop.f32.mrf.mxu0
    %v521 = vadd.f32 %v218, %v520
    %522 = vdwg.mxu0
    %523 = vst [vmem:[#allocation3] sm:$0xff] %v417
    %524 = vst [vmem:[#allocation3 + $0x8] sm:$0xff] %v446
    %525 = vst [vmem:[#allocation3 + $0x10] sm:$0xff] %v475
    %526 = vst [vmem:[#allocation3 + $0x18] sm:$0xff] %v504
    %527 = vst [vmem:[#allocation3 + $0x20] sm:$0xff] %v419
    %528 = vst [vmem:[#allocation3 + $0x28] sm:$0xff] %v448
    %529 = vst [vmem:[#allocation3 + $0x30] sm:$0xff] %v477
    %530 = vst [vmem:[#allocation3 + $0x38] sm:$0xff] %v506
    %531 = vst [vmem:[#allocation3 + $0x40] sm:$0xff] %v422
    %532 = vst [vmem:[#allocation3 + $0x48] sm:$0xff] %v451
    %533 = vst [vmem:[#allocation3 + $0x50] sm:$0xff] %v480
    %534 = vst [vmem:[#allocation3 + $0x58] sm:$0xff] %v509
    %535 = vst [vmem:[#allocation3 + $0x60] sm:$0xff] %v424
    %536 = vst [vmem:[#allocation3 + $0x68] sm:$0xff] %v453
    %537 = vst [vmem:[#allocation3 + $0x70] sm:$0xff] %v482
    %538 = vst [vmem:[#allocation3 + $0x78] sm:$0xff] %v511
    %539 = vst [vmem:[#allocation3 + $0x80] sm:$0xff] %v427
    %540 = vst [vmem:[#allocation3 + $0x88] sm:$0xff] %v456
    %541 = vst [vmem:[#allocation3 + $0x90] sm:$0xff] %v485
    %542 = vst [vmem:[#allocation3 + $0x98] sm:$0xff] %v514
    %543 = vst [vmem:[#allocation3 + $0xa0] sm:$0xff] %v429
    %544 = vst [vmem:[#allocation3 + $0xa8] sm:$0xff] %v458
    %545 = vst [vmem:[#allocation3 + $0xb0] sm:$0xff] %v487
    %546 = vst [vmem:[#allocation3 + $0xb8] sm:$0xff] %v516
    %547 = vst [vmem:[#allocation3 + $0xc0] sm:$0xff] %v432
    %548 = vst [vmem:[#allocation3 + $0xc8] sm:$0xff] %v461
    %549 = vst [vmem:[#allocation3 + $0xd0] sm:$0xff] %v490
    %550 = vst [vmem:[#allocation3 + $0xd8] sm:$0xff] %v519
    %551 = vst [vmem:[#allocation3 + $0xe0] sm:$0xff] %v434
    %552 = vst [vmem:[#allocation3 + $0xe8] sm:$0xff] %v463
    %553 = vst [vmem:[#allocation3 + $0xf0] sm:$0xff] %v492
    %554 = vst [vmem:[#allocation3 + $0xf8] sm:$0xff] %v521
    %v555 = vld [vmem:[#allocation3] sm:$0xff]
    %v556 = vld [vmem:[#allocation3 + $0x8] sm:$0xff]
    %v557 = vld [vmem:[#allocation3 + $0x10] sm:$0xff]
    %v558 = vld [vmem:[#allocation3 + $0x18] sm:$0xff]
    %v591 = vunpack.c.l.b16 %v173
    %v592 = vunpack.c.h.b16 %v173
    %v593 = vunpack.c.l.b16 %v174
    %v594 = vunpack.c.h.b16 %v174
    %v595 = vunpack.c.l.b16 %v175
    %v596 = vunpack.c.h.b16 %v175
    %v597 = vunpack.c.l.b16 %v176
    %v598 = vunpack.c.h.b16 %v176
    %v599 = vunpack.c.l.b16 %v177
    %v600 = vunpack.c.h.b16 %v177
    %v601 = vunpack.c.l.b16 %v178
    %v602 = vunpack.c.h.b16 %v178
    %v603 = vunpack.c.l.b16 %v179
    %v604 = vunpack.c.h.b16 %v179
    %v605 = vunpack.c.l.b16 %v180
    %v606 = vunpack.c.h.b16 %v180
    %v607 = vunpack.c.l.b16 %v181
    %v608 = vunpack.c.h.b16 %v181
    %v609 = vunpack.c.l.b16 %v182
    %v610 = vunpack.c.h.b16 %v182
    %v611 = vunpack.c.l.b16 %v183
    %v612 = vunpack.c.h.b16 %v183
    %v613 = vunpack.c.l.b16 %v184
    %v614 = vunpack.c.h.b16 %v184
    %v615 = vunpack.c.l.b16 %v185
    %v616 = vunpack.c.h.b16 %v185
    %v617 = vunpack.c.l.b16 %v186
    %v618 = vunpack.c.h.b16 %v186
    %v619 = vunpack.c.l.b16 %v187
    %v620 = vunpack.c.h.b16 %v187
    %v621 = vunpack.c.l.b16 %v188
    %v622 = vunpack.c.h.b16 %v188
    %v623 = vunpack.c.l.b16 %v189
    %v624 = vunpack.c.h.b16 %v189
    %v625 = vunpack.c.l.b16 %v190
    %v626 = vunpack.c.h.b16 %v190
    %v627 = vunpack.c.l.b16 %v191
    %v628 = vunpack.c.h.b16 %v191
    %v629 = vunpack.c.l.b16 %v192
    %v630 = vunpack.c.h.b16 %v192
    %v631 = vunpack.c.l.b16 %v193
    %v632 = vunpack.c.h.b16 %v193
    %v633 = vunpack.c.l.b16 %v194
    %v634 = vunpack.c.h.b16 %v194
    %v635 = vunpack.c.l.b16 %v195
    %v636 = vunpack.c.h.b16 %v195
    %v637 = vunpack.c.l.b16 %v196
    %v638 = vunpack.c.h.b16 %v196
    %v639 = vunpack.c.l.b16 %v197
    %v640 = vunpack.c.h.b16 %v197
    %v641 = vunpack.c.l.b16 %v198
    %v642 = vunpack.c.h.b16 %v198
    %v643 = vunpack.c.l.b16 %v199
    %v644 = vunpack.c.h.b16 %v199
    %v645 = vunpack.c.l.b16 %v200
    %v646 = vunpack.c.h.b16 %v200
    %v647 = vunpack.c.l.b16 %v201
    %v648 = vunpack.c.h.b16 %v201
    %v649 = vunpack.c.l.b16 %v202
    %v650 = vunpack.c.h.b16 %v202
    %v651 = vunpack.c.l.b16 %v203
    %v652 = vunpack.c.h.b16 %v203
    %v653 = vunpack.c.l.b16 %v204
    %v654 = vunpack.c.h.b16 %v204
    %v655 = vpack.c.b16 %v595, %v591
    %v656 = vpack.c.b16 %v596, %v592
    %v657 = vpack.c.b16 %v597, %v593
    %v658 = vpack.c.b16 %v598, %v594
    %v659 = vpack.c.b16 %v603, %v599
    %v660 = vpack.c.b16 %v604, %v600
    %v661 = vpack.c.b16 %v605, %v601
    %v662 = vpack.c.b16 %v606, %v602
    %v663 = vpack.c.b16 %v611, %v607
    %v664 = vpack.c.b16 %v612, %v608
    %v665 = vpack.c.b16 %v613, %v609
    %v666 = vpack.c.b16 %v614, %v610
    %v667 = vpack.c.b16 %v619, %v615
    %v668 = vpack.c.b16 %v620, %v616
    %v669 = vpack.c.b16 %v621, %v617
    %v670 = vpack.c.b16 %v622, %v618
    %v671 = vpack.c.b16 %v627, %v623
    %v672 = vpack.c.b16 %v628, %v624
    %v673 = vpack.c.b16 %v629, %v625
    %v674 = vpack.c.b16 %v630, %v626
    %v675 = vpack.c.b16 %v635, %v631
    %v676 = vpack.c.b16 %v636, %v632
    %v677 = vpack.c.b16 %v637, %v633
    %v678 = vpack.c.b16 %v638, %v634
    %v679 = vpack.c.b16 %v643, %v639
    %v680 = vpack.c.b16 %v644, %v640
    %v681 = vpack.c.b16 %v645, %v641
    %v682 = vpack.c.b16 %v646, %v642
    %v683 = vpack.c.b16 %v651, %v647
    %v684 = vpack.c.b16 %v652, %v648
    %v685 = vpack.c.b16 %v653, %v649
    %v686 = vpack.c.b16 %v654, %v650
    %719 = vmatpush.bf16.msra.mxu0 %v683
    %720 = vmatpush.bf16.msra.mxu0 %v679
    %721 = vmatpush.bf16.msra.mxu0 %v675
    %722 = vmatpush.bf16.msra.mxu0 %v671
    %723 = vmatpush.bf16.msra.mxu0 %v667
    %724 = vmatpush.bf16.msra.mxu0 %v663
    %725 = vmatpush.bf16.msra.mxu0 %v659
    %726 = vmatpush.bf16.msra.mxu0 %v655
    %727 = vmatmul.bf16.gmra.mxu0 0
    %v728 = vpop.f32.mrf.mxu0
    %v729 = vadd.f32 0.0, %v728
    %v730 = vpop.f32.mrf.mxu0
    %731 = vdwg.mxu0
    %732 = vmatpush.bf16.msra.mxu0 %v684
    %733 = vmatpush.bf16.msra.mxu0 %v680
    %734 = vmatpush.bf16.msra.mxu0 %v676
    %735 = vmatpush.bf16.msra.mxu0 %v672
    %736 = vmatpush.bf16.msra.mxu0 %v668
    %737 = vmatpush.bf16.msra.mxu0 %v664
    %738 = vmatpush.bf16.msra.mxu0 %v660
    %739 = vmatpush.bf16.msra.mxu0 %v656
    %740 = vmatmul.bf16.gmra.mxu0 0
    %v741 = vpop.f32.mrf.mxu0
    %v742 = vadd.f32 0.0, %v741
    %v743 = vpop.f32.mrf.mxu0
    %744 = vdwg.mxu0
    %745 = vmatpush.bf16.msra.mxu0 %v685
    %746 = vmatpush.bf16.msra.mxu0 %v681
    %747 = vmatpush.bf16.msra.mxu0 %v677
    %748 = vmatpush.bf16.msra.mxu0 %v673
    %749 = vmatpush.bf16.msra.mxu0 %v669
    %750 = vmatpush.bf16.msra.mxu0 %v665
    %751 = vmatpush.bf16.msra.mxu0 %v661
    %752 = vmatpush.bf16.msra.mxu0 %v657
    %753 = vmatmul.bf16.gmra.mxu0 0
    %v754 = vpop.f32.mrf.mxu0
    %v755 = vadd.f32 0.0, %v754
    %v756 = vpop.f32.mrf.mxu0
    %757 = vdwg.mxu0
    %758 = vmatpush.bf16.msra.mxu0 %v686
    %759 = vmatpush.bf16.msra.mxu0 %v682
    %760 = vmatpush.bf16.msra.mxu0 %v678
    %761 = vmatpush.bf16.msra.mxu0 %v674
    %762 = vmatpush.bf16.msra.mxu0 %v670
    %763 = vmatpush.bf16.msra.mxu0 %v666
    %764 = vmatpush.bf16.msra.mxu0 %v662
    %765 = vmatpush.bf16.msra.mxu0 %v658
    %766 = vmatmul.bf16.gmra.mxu0 0
    %v767 = vpop.f32.mrf.mxu0
    %v768 = vadd.f32 0.0, %v767
    %v769 = vpop.f32.mrf.mxu0
    %770 = vdwg.mxu0
    %v771 = vadd.f32 %v555, %v729
    %v772 = vadd.f32 %v556, %v742
    %v773 = vadd.f32 %v557, %v755
    %v774 = vadd.f32 %v558, %v768
    %v775 = vmul.f32 %v771, 0.5
    %v776 = vmul.f32 %v772, 0.5
    %v777 = vmul.f32 %v773, 0.5
    %v778 = vtanh.pop %v775
    %v779 = vtanh.pop %v776
    %v780 = vtanh.pop %v777
    %v781 = vmul.f32 %v778, 0.5
    %v782 = vmul.f32 %v779, 0.5
    %v783 = vmul.f32 %v780, 0.5
    %v784 = vadd.f32 %v781, 0.5
    %v785 = vadd.f32 %v782, 0.5
    %v786 = vadd.f32 %v783, 0.5
    %v787 = vtanh.pop %v774
    %v788 = vmul.f32 %v785, 0.0
    %v789 = vmul.f32 %v784, %v787
    %v790 = vadd.f32 %v788, %v789
    %v791 = vtanh.pop %v790
    %v792 = vmul.f32 %v786, %v791
    %793 = vst [vmem:[#allocation2] sm:$0xff] %v792
    %s794 = scalar_lea.vmem [#allocation3], 32
    %v795 = vld [vmem:[%s794] sm:$0xff]
    %v796 = vld [vmem:[%s794 + $0x8] sm:$0xff]
    %v797 = vld [vmem:[%s794 + $0x10] sm:$0xff]
    %v798 = vld [vmem:[%s794 + $0x18] sm:$0xff]
    %v799 = vpack.c.bf16 %v792, %v792
    %800 = vmatpush.bf16.msra.mxu0 %v683
    %801 = vmatpush.bf16.msra.mxu0 %v679
    %802 = vmatpush.bf16.msra.mxu0 %v675
    %803 = vmatpush.bf16.msra.mxu0 %v671
    %804 = vmatpush.bf16.msra.mxu0 %v667
    %805 = vmatpush.bf16.msra.mxu0 %v663
    %806 = vmatpush.bf16.msra.mxu0 %v659
    %807 = vmatpush.bf16.msra.mxu0 %v655
    %808 = vmatmul.bf16.gmra.mxu0 %v799
    %v809 = vpop.f32.mrf.mxu0
    %v810 = vadd.f32 0.0, %v809
    %v811 = vpop.f32.mrf.mxu0
    %812 = vdwg.mxu0
    %813 = vmatpush.bf16.msra.mxu0 %v684
    %814 = vmatpush.bf16.msra.mxu0 %v680
    %815 = vmatpush.bf16.msra.mxu0 %v676
    %816 = vmatpush.bf16.msra.mxu0 %v672
    %817 = vmatpush.bf16.msra.mxu0 %v668
    %818 = vmatpush.bf16.msra.mxu0 %v664
    %819 = vmatpush.bf16.msra.mxu0 %v660
    %820 = vmatpush.bf16.msra.mxu0 %v656
    %821 = vmatmul.bf16.gmra.mxu0 %v799
    %v822 = vpop.f32.mrf.mxu0
    %v823 = vadd.f32 0.0, %v822
    %v824 = vpop.f32.mrf.mxu0
    %825 = vdwg.mxu0
    %826 = vmatpush.bf16.msra.mxu0 %v685
    %827 = vmatpush.bf16.msra.mxu0 %v681
    %828 = vmatpush.bf16.msra.mxu0 %v677
    %829 = vmatpush.bf16.msra.mxu0 %v673
    %830 = vmatpush.bf16.msra.mxu0 %v669
    %831 = vmatpush.bf16.msra.mxu0 %v665
    %832 = vmatpush.bf16.msra.mxu0 %v661
    %833 = vmatpush.bf16.msra.mxu0 %v657
    %834 = vmatmul.bf16.gmra.mxu0 %v799
    %v835 = vpop.f32.mrf.mxu0
    %v836 = vadd.f32 0.0, %v835
    %v837 = vpop.f32.mrf.mxu0
    %838 = vdwg.mxu0
    %839 = vmatpush.bf16.msra.mxu0 %v686
    %840 = vmatpush.bf16.msra.mxu0 %v682
    %841 = vmatpush.bf16.msra.mxu0 %v678
    %842 = vmatpush.bf16.msra.mxu0 %v674
    %843 = vmatpush.bf16.msra.mxu0 %v670
    %844 = vmatpush.bf16.msra.mxu0 %v666
    %845 = vmatpush.bf16.msra.mxu0 %v662
    %846 = vmatpush.bf16.msra.mxu0 %v658
    %847 = vmatmul.bf16.gmra.mxu0 %v799
    %v848 = vpop.f32.mrf.mxu0
    %v849 = vadd.f32 0.0, %v848
    %v850 = vpop.f32.mrf.mxu0
    %851 = vdwg.mxu0
    %v852 = vadd.f32 %v795, %v810
    %v853 = vadd.f32 %v796, %v823
    %v854 = vadd.f32 %v797, %v836
    %v855 = vadd.f32 %v798, %v849
    %v856 = vmul.f32 %v852, 0.5
    %v857 = vmul.f32 %v853, 0.5
    %v858 = vmul.f32 %v854, 0.5
    %v859 = vtanh.pop %v856
    %v860 = vtanh.pop %v857
    %v861 = vtanh.pop %v858
    %v862 = vmul.f32 %v859, 0.5
    %v863 = vmul.f32 %v860, 0.5
    %v864 = vmul.f32 %v861, 0.5
    %v865 = vadd.f32 %v862, 0.5
    %v866 = vadd.f32 %v863, 0.5
    %v867 = vadd.f32 %v864, 0.5
    %v868 = vtanh.pop %v855
    %v869 = vmul.f32 %v866, %v790
    %v870 = vmul.f32 %v865, %v868
    %v871 = vadd.f32 %v869, %v870
    %v872 = vtanh.pop %v871
    %v873 = vmul.f32 %v867, %v872
    %s874 = scalar_lea.vmem [#allocation2], 8
    %875 = vst [vmem:[%s874] sm:$0xff] %v873
    %s876 = scalar_lea.vmem [#allocation3], 64
    %v877 = vld [vmem:[%s876] sm:$0xff]
    %v878 = vld [vmem:[%s876 + $0x8] sm:$0xff]
    %v879 = vld [vmem:[%s876 + $0x10] sm:$0xff]
    %v880 = vld [vmem:[%s876 + $0x18] sm:$0xff]
    %v881 = vpack.c.bf16 %v873, %v873
    %882 = vmatpush.bf16.msra.mxu0 %v683
    %883 = vmatpush.bf16.msra.mxu0 %v679
    %884 = vmatpush.bf16.msra.mxu0 %v675
    %885 = vmatpush.bf16.msra.mxu0 %v671
    %886 = vmatpush.bf16.msra.mxu0 %v667
    %887 = vmatpush.bf16.msra.mxu0 %v663
    %888 = vmatpush.bf16.msra.mxu0 %v659
    %889 = vmatpush.bf16.msra.mxu0 %v655
    %890 = vmatmul.bf16.gmra.mxu0 %v881
    %v891 = vpop.f32.mrf.mxu0
    %v892 = vadd.f32 0.0, %v891
    %v893 = vpop.f32.mrf.mxu0
    %894 = vdwg.mxu0
    %895 = vmatpush.bf16.msra.mxu0 %v684
    %896 = vmatpush.bf16.msra.mxu0 %v680
    %897 = vmatpush.bf16.msra.mxu0 %v676
    %898 = vmatpush.bf16.msra.mxu0 %v672
    %899 = vmatpush.bf16.msra.mxu0 %v668
    %900 = vmatpush.bf16.msra.mxu0 %v664
    %901 = vmatpush.bf16.msra.mxu0 %v660
    %902 = vmatpush.bf16.msra.mxu0 %v656
    %903 = vmatmul.bf16.gmra.mxu0 %v881
    %v904 = vpop.f32.mrf.mxu0
    %v905 = vadd.f32 0.0, %v904
    %v906 = vpop.f32.mrf.mxu0
    %907 = vdwg.mxu0
    %908 = vmatpush.bf16.msra.mxu0 %v685
    %909 = vmatpush.bf16.msra.mxu0 %v681
    %910 = vmatpush.bf16.msra.mxu0 %v677
    %911 = vmatpush.bf16.msra.mxu0 %v673
    %912 = vmatpush.bf16.msra.mxu0 %v669
    %913 = vmatpush.bf16.msra.mxu0 %v665
    %914 = vmatpush.bf16.msra.mxu0 %v661
    %915 = vmatpush.bf16.msra.mxu0 %v657
    %916 = vmatmul.bf16.gmra.mxu0 %v881
    %v917 = vpop.f32.mrf.mxu0
    %v918 = vadd.f32 0.0, %v917
    %v919 = vpop.f32.mrf.mxu0
    %920 = vdwg.mxu0
    %921 = vmatpush.bf16.msra.mxu0 %v686
    %922 = vmatpush.bf16.msra.mxu0 %v682
    %923 = vmatpush.bf16.msra.mxu0 %v678
    %924 = vmatpush.bf16.msra.mxu0 %v674
    %925 = vmatpush.bf16.msra.mxu0 %v670
    %926 = vmatpush.bf16.msra.mxu0 %v666
    %927 = vmatpush.bf16.msra.mxu0 %v662
    %928 = vmatpush.bf16.msra.mxu0 %v658
    %929 = vmatmul.bf16.gmra.mxu0 %v881
    %v930 = vpop.f32.mrf.mxu0
    %v931 = vadd.f32 0.0, %v930
    %v932 = vpop.f32.mrf.mxu0
    %933 = vdwg.mxu0
    %v934 = vadd.f32 %v877, %v892
    %v935 = vadd.f32 %v878, %v905
    %v936 = vadd.f32 %v879, %v918
    %v937 = vadd.f32 %v880, %v931
    %v938 = vmul.f32 %v934, 0.5
    %v939 = vmul.f32 %v935, 0.5
    %v940 = vmul.f32 %v936, 0.5
    %v941 = vtanh.pop %v938
    %v942 = vtanh.pop %v939
    %v943 = vtanh.pop %v940
    %v944 = vmul.f32 %v941, 0.5
    %v945 = vmul.f32 %v942, 0.5
    %v946 = vmul.f32 %v943, 0.5
    %v947 = vadd.f32 %v944, 0.5
    %v948 = vadd.f32 %v945, 0.5
    %v949 = vadd.f32 %v946, 0.5
    %v950 = vtanh.pop %v937
    %v951 = vmul.f32 %v948, %v871
    %v952 = vmul.f32 %v947, %v950
    %v953 = vadd.f32 %v951, %v952
    %v954 = vtanh.pop %v953
    %v955 = vmul.f32 %v949, %v954
    %s956 = scalar_lea.vmem [#allocation2], 16
    %957 = vst [vmem:[%s956] sm:$0xff] %v955
    %s958 = scalar_lea.vmem [#allocation3], 96
    %v959 = vld [vmem:[%s958] sm:$0xff]
    %v960 = vld [vmem:[%s958 + $0x8] sm:$0xff]
    %v961 = vld [vmem:[%s958 + $0x10] sm:$0xff]
    %v962 = vld [vmem:[%s958 + $0x18] sm:$0xff]
    %v963 = vpack.c.bf16 %v955, %v955
    %964 = vmatpush.bf16.msra.mxu0 %v683
    %965 = vmatpush.bf16.msra.mxu0 %v679
    %966 = vmatpush.bf16.msra.mxu0 %v675
    %967 = vmatpush.bf16.msra.mxu0 %v671
    %968 = vmatpush.bf16.msra.mxu0 %v667
    %969 = vmatpush.bf16.msra.mxu0 %v663
    %970 = vmatpush.bf16.msra.mxu0 %v659
    %971 = vmatpush.bf16.msra.mxu0 %v655
    %972 = vmatmul.bf16.gmra.mxu0 %v963
    %v973 = vpop.f32.mrf.mxu0
    %v974 = vadd.f32 0.0, %v973
    %v975 = vpop.f32.mrf.mxu0
    %976 = vdwg.mxu0
    %977 = vmatpush.bf16.msra.mxu0 %v684
    %978 = vmatpush.bf16.msra.mxu0 %v680
    %979 = vmatpush.bf16.msra.mxu0 %v676
    %980 = vmatpush.bf16.msra.mxu0 %v672
    %981 = vmatpush.bf16.msra.mxu0 %v668
    %982 = vmatpush.bf16.msra.mxu0 %v664
    %983 = vmatpush.bf16.msra.mxu0 %v660
    %984 = vmatpush.bf16.msra.mxu0 %v656
    %985 = vmatmul.bf16.gmra.mxu0 %v963
    %v986 = vpop.f32.mrf.mxu0
    %v987 = vadd.f32 0.0, %v986
    %v988 = vpop.f32.mrf.mxu0
    %989 = vdwg.mxu0
    %990 = vmatpush.bf16.msra.mxu0 %v685
    %991 = vmatpush.bf16.msra.mxu0 %v681
    %992 = vmatpush.bf16.msra.mxu0 %v677
    %993 = vmatpush.bf16.msra.mxu0 %v673
    %994 = vmatpush.bf16.msra.mxu0 %v669
    %995 = vmatpush.bf16.msra.mxu0 %v665
    %996 = vmatpush.bf16.msra.mxu0 %v661
    %997 = vmatpush.bf16.msra.mxu0 %v657
    %998 = vmatmul.bf16.gmra.mxu0 %v963
    %v999 = vpop.f32.mrf.mxu0
    %v1000 = vadd.f32 0.0, %v999
    %v1001 = vpop.f32.mrf.mxu0
    %1002 = vdwg.mxu0
    %1003 = vmatpush.bf16.msra.mxu0 %v686
    %1004 = vmatpush.bf16.msra.mxu0 %v682
    %1005 = vmatpush.bf16.msra.mxu0 %v678
    %1006 = vmatpush.bf16.msra.mxu0 %v674
    %1007 = vmatpush.bf16.msra.mxu0 %v670
    %1008 = vmatpush.bf16.msra.mxu0 %v666
    %1009 = vmatpush.bf16.msra.mxu0 %v662
    %1010 = vmatpush.bf16.msra.mxu0 %v658
    %1011 = vmatmul.bf16.gmra.mxu0 %v963
    %v1012 = vpop.f32.mrf.mxu0
    %v1013 = vadd.f32 0.0, %v1012
    %v1014 = vpop.f32.mrf.mxu0
    %1015 = vdwg.mxu0
    %v1016 = vadd.f32 %v959, %v974
    %v1017 = vadd.f32 %v960, %v987
    %v1018 = vadd.f32 %v961, %v1000
    %v1019 = vadd.f32 %v962, %v1013
    %v1020 = vmul.f32 %v1016, 0.5
    %v1021 = vmul.f32 %v1017, 0.5
    %v1022 = vmul.f32 %v1018, 0.5
    %v1023 = vtanh.pop %v1020
    %v1024 = vtanh.pop %v1021
    %v1025 = vtanh.pop %v1022
    %v1026 = vmul.f32 %v1023, 0.5
    %v1027 = vmul.f32 %v1024, 0.5
    %v1028 = vmul.f32 %v1025, 0.5
    %v1029 = vadd.f32 %v1026, 0.5
    %v1030 = vadd.f32 %v1027, 0.5
    %v1031 = vadd.f32 %v1028, 0.5
    %v1032 = vtanh.pop %v1019
    %v1033 = vmul.f32 %v1030, %v953
    %v1034 = vmul.f32 %v1029, %v1032
    %v1035 = vadd.f32 %v1033, %v1034
    %v1036 = vtanh.pop %v1035
    %v1037 = vmul.f32 %v1031, %v1036
    %s1038 = scalar_lea.vmem [#allocation2], 24
    %1039 = vst [vmem:[%s1038] sm:$0xff] %v1037
    %s1040 = scalar_lea.vmem [#allocation3], 128
    %v1041 = vld [vmem:[%s1040] sm:$0xff]
    %v1042 = vld [vmem:[%s1040 + $0x8] sm:$0xff]
    %v1043 = vld [vmem:[%s1040 + $0x10] sm:$0xff]
    %v1044 = vld [vmem:[%s1040 + $0x18] sm:$0xff]
    %v1045 = vpack.c.bf16 %v1037, %v1037
    %1046 = vmatpush.bf16.msra.mxu0 %v683
    %1047 = vmatpush.bf16.msra.mxu0 %v679
    %1048 = vmatpush.bf16.msra.mxu0 %v675
    %1049 = vmatpush.bf16.msra.mxu0 %v671
    %1050 = vmatpush.bf16.msra.mxu0 %v667
    %1051 = vmatpush.bf16.msra.mxu0 %v663
    %1052 = vmatpush.bf16.msra.mxu0 %v659
    %1053 = vmatpush.bf16.msra.mxu0 %v655
    %1054 = vmatmul.bf16.gmra.mxu0 %v1045
    %v1055 = vpop.f32.mrf.mxu0
    %v1056 = vadd.f32 0.0, %v1055
    %v1057 = vpop.f32.mrf.mxu0
    %1058 = vdwg.mxu0
    %1059 = vmatpush.bf16.msra.mxu0 %v684
    %1060 = vmatpush.bf16.msra.mxu0 %v680
    %1061 = vmatpush.bf16.msra.mxu0 %v676
    %1062 = vmatpush.bf16.msra.mxu0 %v672
    %1063 = vmatpush.bf16.msra.mxu0 %v668
    %1064 = vmatpush.bf16.msra.mxu0 %v664
    %1065 = vmatpush.bf16.msra.mxu0 %v660
    %1066 = vmatpush.bf16.msra.mxu0 %v656
    %1067 = vmatmul.bf16.gmra.mxu0 %v1045
    %v1068 = vpop.f32.mrf.mxu0
    %v1069 = vadd.f32 0.0, %v1068
    %v1070 = vpop.f32.mrf.mxu0
    %1071 = vdwg.mxu0
    %1072 = vmatpush.bf16.msra.mxu0 %v685
    %1073 = vmatpush.bf16.msra.mxu0 %v681
    %1074 = vmatpush.bf16.msra.mxu0 %v677
    %1075 = vmatpush.bf16.msra.mxu0 %v673
    %1076 = vmatpush.bf16.msra.mxu0 %v669
    %1077 = vmatpush.bf16.msra.mxu0 %v665
    %1078 = vmatpush.bf16.msra.mxu0 %v661
    %1079 = vmatpush.bf16.msra.mxu0 %v657
    %1080 = vmatmul.bf16.gmra.mxu0 %v1045
    %v1081 = vpop.f32.mrf.mxu0
    %v1082 = vadd.f32 0.0, %v1081
    %v1083 = vpop.f32.mrf.mxu0
    %1084 = vdwg.mxu0
    %1085 = vmatpush.bf16.msra.mxu0 %v686
    %1086 = vmatpush.bf16.msra.mxu0 %v682
    %1087 = vmatpush.bf16.msra.mxu0 %v678
    %1088 = vmatpush.bf16.msra.mxu0 %v674
    %1089 = vmatpush.bf16.msra.mxu0 %v670
    %1090 = vmatpush.bf16.msra.mxu0 %v666
    %1091 = vmatpush.bf16.msra.mxu0 %v662
    %1092 = vmatpush.bf16.msra.mxu0 %v658
    %1093 = vmatmul.bf16.gmra.mxu0 %v1045
    %v1094 = vpop.f32.mrf.mxu0
    %v1095 = vadd.f32 0.0, %v1094
    %v1096 = vpop.f32.mrf.mxu0
    %1097 = vdwg.mxu0
    %v1098 = vadd.f32 %v1041, %v1056
    %v1099 = vadd.f32 %v1042, %v1069
    %v1100 = vadd.f32 %v1043, %v1082
    %v1101 = vadd.f32 %v1044, %v1095
    %v1102 = vmul.f32 %v1098, 0.5
    %v1103 = vmul.f32 %v1099, 0.5
    %v1104 = vmul.f32 %v1100, 0.5
    %v1105 = vtanh.pop %v1102
    %v1106 = vtanh.pop %v1103
    %v1107 = vtanh.pop %v1104
    %v1108 = vmul.f32 %v1105, 0.5
    %v1109 = vmul.f32 %v1106, 0.5
    %v1110 = vmul.f32 %v1107, 0.5
    %v1111 = vadd.f32 %v1108, 0.5
    %v1112 = vadd.f32 %v1109, 0.5
    %v1113 = vadd.f32 %v1110, 0.5
    %v1114 = vtanh.pop %v1101
    %v1115 = vmul.f32 %v1112, %v1035
    %v1116 = vmul.f32 %v1111, %v1114
    %v1117 = vadd.f32 %v1115, %v1116
    %v1118 = vtanh.pop %v1117
    %v1119 = vmul.f32 %v1113, %v1118
    %s1120 = scalar_lea.vmem [#allocation2], 32
    %1121 = vst [vmem:[%s1120] sm:$0xff] %v1119
    %s1122 = scalar_lea.vmem [#allocation3], 160
    %v1123 = vld [vmem:[%s1122] sm:$0xff]
    %v1124 = vld [vmem:[%s1122 + $0x8] sm:$0xff]
    %v1125 = vld [vmem:[%s1122 + $0x10] sm:$0xff]
    %v1126 = vld [vmem:[%s1122 + $0x18] sm:$0xff]
    %v1127 = vpack.c.bf16 %v1119, %v1119
    %1128 = vmatpush.bf16.msra.mxu0 %v683
    %1129 = vmatpush.bf16.msra.mxu0 %v679
    %1130 = vmatpush.bf16.msra.mxu0 %v675
    %1131 = vmatpush.bf16.msra.mxu0 %v671
    %1132 = vmatpush.bf16.msra.mxu0 %v667
    %1133 = vmatpush.bf16.msra.mxu0 %v663
    %1134 = vmatpush.bf16.msra.mxu0 %v659
    %1135 = vmatpush.bf16.msra.mxu0 %v655
    %1136 = vmatmul.bf16.gmra.mxu0 %v1127
    %v1137 = vpop.f32.mrf.mxu0
    %v1138 = vadd.f32 0.0, %v1137
    %v1139 = vpop.f32.mrf.mxu0
    %1140 = vdwg.mxu0
    %1141 = vmatpush.bf16.msra.mxu0 %v684
    %1142 = vmatpush.bf16.msra.mxu0 %v680
    %1143 = vmatpush.bf16.msra.mxu0 %v676
    %1144 = vmatpush.bf16.msra.mxu0 %v672
    %1145 = vmatpush.bf16.msra.mxu0 %v668
    %1146 = vmatpush.bf16.msra.mxu0 %v664
    %1147 = vmatpush.bf16.msra.mxu0 %v660
    %1148 = vmatpush.bf16.msra.mxu0 %v656
    %1149 = vmatmul.bf16.gmra.mxu0 %v1127
    %v1150 = vpop.f32.mrf.mxu0
    %v1151 = vadd.f32 0.0, %v1150
    %v1152 = vpop.f32.mrf.mxu0
    %1153 = vdwg.mxu0
    %1154 = vmatpush.bf16.msra.mxu0 %v685
    %1155 = vmatpush.bf16.msra.mxu0 %v681
    %1156 = vmatpush.bf16.msra.mxu0 %v677
    %1157 = vmatpush.bf16.msra.mxu0 %v673
    %1158 = vmatpush.bf16.msra.mxu0 %v669
    %1159 = vmatpush.bf16.msra.mxu0 %v665
    %1160 = vmatpush.bf16.msra.mxu0 %v661
    %1161 = vmatpush.bf16.msra.mxu0 %v657
    %1162 = vmatmul.bf16.gmra.mxu0 %v1127
    %v1163 = vpop.f32.mrf.mxu0
    %v1164 = vadd.f32 0.0, %v1163
    %v1165 = vpop.f32.mrf.mxu0
    %1166 = vdwg.mxu0
    %1167 = vmatpush.bf16.msra.mxu0 %v686
    %1168 = vmatpush.bf16.msra.mxu0 %v682
    %1169 = vmatpush.bf16.msra.mxu0 %v678
    %1170 = vmatpush.bf16.msra.mxu0 %v674
    %1171 = vmatpush.bf16.msra.mxu0 %v670
    %1172 = vmatpush.bf16.msra.mxu0 %v666
    %1173 = vmatpush.bf16.msra.mxu0 %v662
    %1174 = vmatpush.bf16.msra.mxu0 %v658
    %1175 = vmatmul.bf16.gmra.mxu0 %v1127
    %v1176 = vpop.f32.mrf.mxu0
    %v1177 = vadd.f32 0.0, %v1176
    %v1178 = vpop.f32.mrf.mxu0
    %1179 = vdwg.mxu0
    %v1180 = vadd.f32 %v1123, %v1138
    %v1181 = vadd.f32 %v1124, %v1151
    %v1182 = vadd.f32 %v1125, %v1164
    %v1183 = vadd.f32 %v1126, %v1177
    %v1184 = vmul.f32 %v1180, 0.5
    %v1185 = vmul.f32 %v1181, 0.5
    %v1186 = vmul.f32 %v1182, 0.5
    %v1187 = vtanh.pop %v1184
    %v1188 = vtanh.pop %v1185
    %v1189 = vtanh.pop %v1186
    %v1190 = vmul.f32 %v1187, 0.5
    %v1191 = vmul.f32 %v1188, 0.5
    %v1192 = vmul.f32 %v1189, 0.5
    %v1193 = vadd.f32 %v1190, 0.5
    %v1194 = vadd.f32 %v1191, 0.5
    %v1195 = vadd.f32 %v1192, 0.5
    %v1196 = vtanh.pop %v1183
    %v1197 = vmul.f32 %v1194, %v1117
    %v1198 = vmul.f32 %v1193, %v1196
    %v1199 = vadd.f32 %v1197, %v1198
    %v1200 = vtanh.pop %v1199
    %v1201 = vmul.f32 %v1195, %v1200
    %s1202 = scalar_lea.vmem [#allocation2], 40
    %1203 = vst [vmem:[%s1202] sm:$0xff] %v1201
    %s1204 = scalar_lea.vmem [#allocation3], 192
    %v1205 = vld [vmem:[%s1204] sm:$0xff]
    %v1206 = vld [vmem:[%s1204 + $0x8] sm:$0xff]
    %v1207 = vld [vmem:[%s1204 + $0x10] sm:$0xff]
    %v1208 = vld [vmem:[%s1204 + $0x18] sm:$0xff]
    %v1209 = vpack.c.bf16 %v1201, %v1201
    %1210 = vmatpush.bf16.msra.mxu0 %v683
    %1211 = vmatpush.bf16.msra.mxu0 %v679
    %1212 = vmatpush.bf16.msra.mxu0 %v675
    %1213 = vmatpush.bf16.msra.mxu0 %v671
    %1214 = vmatpush.bf16.msra.mxu0 %v667
    %1215 = vmatpush.bf16.msra.mxu0 %v663
    %1216 = vmatpush.bf16.msra.mxu0 %v659
    %1217 = vmatpush.bf16.msra.mxu0 %v655
    %1218 = vmatmul.bf16.gmra.mxu0 %v1209
    %v1219 = vpop.f32.mrf.mxu0
    %v1220 = vadd.f32 0.0, %v1219
    %v1221 = vpop.f32.mrf.mxu0
    %1222 = vdwg.mxu0
    %1223 = vmatpush.bf16.msra.mxu0 %v684
    %1224 = vmatpush.bf16.msra.mxu0 %v680
    %1225 = vmatpush.bf16.msra.mxu0 %v676
    %1226 = vmatpush.bf16.msra.mxu0 %v672
    %1227 = vmatpush.bf16.msra.mxu0 %v668
    %1228 = vmatpush.bf16.msra.mxu0 %v664
    %1229 = vmatpush.bf16.msra.mxu0 %v660
    %1230 = vmatpush.bf16.msra.mxu0 %v656
    %1231 = vmatmul.bf16.gmra.mxu0 %v1209
    %v1232 = vpop.f32.mrf.mxu0
    %v1233 = vadd.f32 0.0, %v1232
    %v1234 = vpop.f32.mrf.mxu0
    %1235 = vdwg.mxu0
    %1236 = vmatpush.bf16.msra.mxu0 %v685
    %1237 = vmatpush.bf16.msra.mxu0 %v681
    %1238 = vmatpush.bf16.msra.mxu0 %v677
    %1239 = vmatpush.bf16.msra.mxu0 %v673
    %1240 = vmatpush.bf16.msra.mxu0 %v669
    %1241 = vmatpush.bf16.msra.mxu0 %v665
    %1242 = vmatpush.bf16.msra.mxu0 %v661
    %1243 = vmatpush.bf16.msra.mxu0 %v657
    %1244 = vmatmul.bf16.gmra.mxu0 %v1209
    %v1245 = vpop.f32.mrf.mxu0
    %v1246 = vadd.f32 0.0, %v1245
    %v1247 = vpop.f32.mrf.mxu0
    %1248 = vdwg.mxu0
    %1249 = vmatpush.bf16.msra.mxu0 %v686
    %1250 = vmatpush.bf16.msra.mxu0 %v682
    %1251 = vmatpush.bf16.msra.mxu0 %v678
    %1252 = vmatpush.bf16.msra.mxu0 %v674
    %1253 = vmatpush.bf16.msra.mxu0 %v670
    %1254 = vmatpush.bf16.msra.mxu0 %v666
    %1255 = vmatpush.bf16.msra.mxu0 %v662
    %1256 = vmatpush.bf16.msra.mxu0 %v658
    %1257 = vmatmul.bf16.gmra.mxu0 %v1209
    %v1258 = vpop.f32.mrf.mxu0
    %v1259 = vadd.f32 0.0, %v1258
    %v1260 = vpop.f32.mrf.mxu0
    %1261 = vdwg.mxu0
    %v1262 = vadd.f32 %v1205, %v1220
    %v1263 = vadd.f32 %v1206, %v1233
    %v1264 = vadd.f32 %v1207, %v1246
    %v1265 = vadd.f32 %v1208, %v1259
    %v1266 = vmul.f32 %v1262, 0.5
    %v1267 = vmul.f32 %v1263, 0.5
    %v1268 = vmul.f32 %v1264, 0.5
    %v1269 = vtanh.pop %v1266
    %v1270 = vtanh.pop %v1267
    %v1271 = vtanh.pop %v1268
    %v1272 = vmul.f32 %v1269, 0.5
    %v1273 = vmul.f32 %v1270, 0.5
    %v1274 = vmul.f32 %v1271, 0.5
    %v1275 = vadd.f32 %v1272, 0.5
    %v1276 = vadd.f32 %v1273, 0.5
    %v1277 = vadd.f32 %v1274, 0.5
    %v1278 = vtanh.pop %v1265
    %v1279 = vmul.f32 %v1276, %v1199
    %v1280 = vmul.f32 %v1275, %v1278
    %v1281 = vadd.f32 %v1279, %v1280
    %v1282 = vtanh.pop %v1281
    %v1283 = vmul.f32 %v1277, %v1282
    %s1284 = scalar_lea.vmem [#allocation2], 48
    %1285 = vst [vmem:[%s1284] sm:$0xff] %v1283
    %s1286 = scalar_lea.vmem [#allocation3], 224
    %v1287 = vld [vmem:[%s1286] sm:$0xff]
    %v1288 = vld [vmem:[%s1286 + $0x8] sm:$0xff]
    %v1289 = vld [vmem:[%s1286 + $0x10] sm:$0xff]
    %v1290 = vld [vmem:[%s1286 + $0x18] sm:$0xff]
    %v1291 = vpack.c.bf16 %v1283, %v1283
    %1292 = vmatpush.bf16.msra.mxu0 %v683
    %1293 = vmatpush.bf16.msra.mxu0 %v679
    %1294 = vmatpush.bf16.msra.mxu0 %v675
    %1295 = vmatpush.bf16.msra.mxu0 %v671
    %1296 = vmatpush.bf16.msra.mxu0 %v667
    %1297 = vmatpush.bf16.msra.mxu0 %v663
    %1298 = vmatpush.bf16.msra.mxu0 %v659
    %1299 = vmatpush.bf16.msra.mxu0 %v655
    %1300 = vmatmul.bf16.gmra.mxu0 %v1291
    %v1301 = vpop.f32.mrf.mxu0
    %v1302 = vadd.f32 0.0, %v1301
    %v1303 = vpop.f32.mrf.mxu0
    %1304 = vdwg.mxu0
    %1305 = vmatpush.bf16.msra.mxu0 %v684
    %1306 = vmatpush.bf16.msra.mxu0 %v680
    %1307 = vmatpush.bf16.msra.mxu0 %v676
    %1308 = vmatpush.bf16.msra.mxu0 %v672
    %1309 = vmatpush.bf16.msra.mxu0 %v668
    %1310 = vmatpush.bf16.msra.mxu0 %v664
    %1311 = vmatpush.bf16.msra.mxu0 %v660
    %1312 = vmatpush.bf16.msra.mxu0 %v656
    %1313 = vmatmul.bf16.gmra.mxu0 %v1291
    %v1314 = vpop.f32.mrf.mxu0
    %v1315 = vadd.f32 0.0, %v1314
    %v1316 = vpop.f32.mrf.mxu0
    %1317 = vdwg.mxu0
    %1318 = vmatpush.bf16.msra.mxu0 %v685
    %1319 = vmatpush.bf16.msra.mxu0 %v681
    %1320 = vmatpush.bf16.msra.mxu0 %v677
    %1321 = vmatpush.bf16.msra.mxu0 %v673
    %1322 = vmatpush.bf16.msra.mxu0 %v669
    %1323 = vmatpush.bf16.msra.mxu0 %v665
    %1324 = vmatpush.bf16.msra.mxu0 %v661
    %1325 = vmatpush.bf16.msra.mxu0 %v657
    %1326 = vmatmul.bf16.gmra.mxu0 %v1291
    %v1327 = vpop.f32.mrf.mxu0
    %v1328 = vadd.f32 0.0, %v1327
    %v1329 = vpop.f32.mrf.mxu0
    %1330 = vdwg.mxu0
    %1331 = vmatpush.bf16.msra.mxu0 %v686
    %1332 = vmatpush.bf16.msra.mxu0 %v682
    %1333 = vmatpush.bf16.msra.mxu0 %v678
    %1334 = vmatpush.bf16.msra.mxu0 %v674
    %1335 = vmatpush.bf16.msra.mxu0 %v670
    %1336 = vmatpush.bf16.msra.mxu0 %v666
    %1337 = vmatpush.bf16.msra.mxu0 %v662
    %1338 = vmatpush.bf16.msra.mxu0 %v658
    %1339 = vmatmul.bf16.gmra.mxu0 %v1291
    %v1340 = vpop.f32.mrf.mxu0
    %v1341 = vadd.f32 0.0, %v1340
    %v1342 = vpop.f32.mrf.mxu0
    %1343 = vdwg.mxu0
    %v1344 = vadd.f32 %v1287, %v1302
    %v1345 = vadd.f32 %v1288, %v1315
    %v1346 = vadd.f32 %v1289, %v1328
    %v1347 = vadd.f32 %v1290, %v1341
    %v1348 = vmul.f32 %v1344, 0.5
    %v1349 = vmul.f32 %v1345, 0.5
    %v1350 = vmul.f32 %v1346, 0.5
    %v1351 = vtanh.pop %v1348
    %v1352 = vtanh.pop %v1349
    %v1353 = vtanh.pop %v1350
    %v1354 = vmul.f32 %v1351, 0.5
    %v1355 = vmul.f32 %v1352, 0.5
    %v1356 = vmul.f32 %v1353, 0.5
    %v1357 = vadd.f32 %v1354, 0.5
    %v1358 = vadd.f32 %v1355, 0.5
    %v1359 = vadd.f32 %v1356, 0.5
    %v1360 = vtanh.pop %v1347
    %v1361 = vmul.f32 %v1358, %v1281
    %v1362 = vmul.f32 %v1357, %v1360
    %v1363 = vadd.f32 %v1361, %v1362
    %v1364 = vtanh.pop %v1363
    %v1365 = vmul.f32 %v1359, %v1364
    %s1366 = scalar_lea.vmem [#allocation2], 56
    %1367 = vst [vmem:[%s1366] sm:$0xff] %v1365
    %1368 = vst [vmem:[#allocation4] sm:$0xff] %v1365
    %v1369 = vld [vmem:[#allocation13] sm:$0xff]
    %v1370 = vld [vmem:[#allocation13 + $0x8] sm:$0xff]
    %v1371 = vld [vmem:[#allocation13 + $0x10] sm:$0xff]
    %v1372 = vld [vmem:[#allocation13 + $0x18] sm:$0xff]
    %v1373 = vld [vmem:[#allocation13 + $0x20] sm:$0xff]
    %v1374 = vld [vmem:[#allocation13 + $0x28] sm:$0xff]
    %v1375 = vld [vmem:[#allocation13 + $0x30] sm:$0xff]
    %v1376 = vld [vmem:[#allocation13 + $0x38] sm:$0xff]
    %v1377 = vld [vmem:[#allocation13 + $0x40] sm:$0xff]
    %v1378 = vld [vmem:[#allocation13 + $0x48] sm:$0xff]
    %v1379 = vld [vmem:[#allocation13 + $0x50] sm:$0xff]
    %v1380 = vld [vmem:[#allocation13 + $0x58] sm:$0xff]
    %v1381 = vld [vmem:[#allocation13 + $0x60] sm:$0xff]
    %v1382 = vld [vmem:[#allocation13 + $0x68] sm:$0xff]
    %v1383 = vld [vmem:[#allocation13 + $0x70] sm:$0xff]
    %v1384 = vld [vmem:[#allocation13 + $0x78] sm:$0xff]
    %v1385 = vld [vmem:[#allocation13 + $0x80] sm:$0xff]
    %v1386 = vld [vmem:[#allocation13 + $0x88] sm:$0xff]
    %v1387 = vld [vmem:[#allocation13 + $0x90] sm:$0xff]
    %v1388 = vld [vmem:[#allocation13 + $0x98] sm:$0xff]
    %v1389 = vld [vmem:[#allocation13 + $0xa0] sm:$0xff]
    %v1390 = vld [vmem:[#allocation13 + $0xa8] sm:$0xff]
    %v1391 = vld [vmem:[#allocation13 + $0xb0] sm:$0xff]
    %v1392 = vld [vmem:[#allocation13 + $0xb8] sm:$0xff]
    %v1393 = vld [vmem:[#allocation13 + $0xc0] sm:$0xff]
    %v1394 = vld [vmem:[#allocation13 + $0xc8] sm:$0xff]
    %v1395 = vld [vmem:[#allocation13 + $0xd0] sm:$0xff]
    %v1396 = vld [vmem:[#allocation13 + $0xd8] sm:$0xff]
    %v1397 = vld [vmem:[#allocation13 + $0xe0] sm:$0xff]
    %v1398 = vld [vmem:[#allocation13 + $0xe8] sm:$0xff]
    %v1399 = vld [vmem:[#allocation13 + $0xf0] sm:$0xff]
    %v1400 = vld [vmem:[#allocation13 + $0xf8] sm:$0xff]
    %v1401 = vld [vmem:[#allocation14] sm:$0xff]
    %v1402 = vld [vmem:[#allocation14 + $0x8] sm:$0xff]
    %v1403 = vld [vmem:[#allocation14 + $0x10] sm:$0xff]
    %v1404 = vld [vmem:[#allocation14 + $0x18] sm:$0xff]
    %v1405 = vld [vmem:[#allocation14 + $0x20] sm:$0xff]
    %v1406 = vld [vmem:[#allocation14 + $0x28] sm:$0xff]
    %v1407 = vld [vmem:[#allocation14 + $0x30] sm:$0xff]
    %v1408 = vld [vmem:[#allocation14 + $0x38] sm:$0xff]
    %v1409 = vld [vmem:[#allocation14 + $0x40] sm:$0xff]
    %v1410 = vld [vmem:[#allocation14 + $0x48] sm:$0xff]
    %v1411 = vld [vmem:[#allocation14 + $0x50] sm:$0xff]
    %v1412 = vld [vmem:[#allocation14 + $0x58] sm:$0xff]
    %v1413 = vld [vmem:[#allocation14 + $0x60] sm:$0xff]
    %v1414 = vld [vmem:[#allocation14 + $0x68] sm:$0xff]
    %v1415 = vld [vmem:[#allocation14 + $0x70] sm:$0xff]
    %v1416 = vld [vmem:[#allocation14 + $0x78] sm:$0xff]
    %v1417 = vld [vmem:[#allocation14 + $0x80] sm:$0xff]
    %v1418 = vld [vmem:[#allocation14 + $0x88] sm:$0xff]
    %v1419 = vld [vmem:[#allocation14 + $0x90] sm:$0xff]
    %v1420 = vld [vmem:[#allocation14 + $0x98] sm:$0xff]
    %v1421 = vld [vmem:[#allocation14 + $0xa0] sm:$0xff]
    %v1422 = vld [vmem:[#allocation14 + $0xa8] sm:$0xff]
    %v1423 = vld [vmem:[#allocation14 + $0xb0] sm:$0xff]
    %v1424 = vld [vmem:[#allocation14 + $0xb8] sm:$0xff]
    %v1425 = vld [vmem:[#allocation14 + $0xc0] sm:$0xff]
    %v1426 = vld [vmem:[#allocation14 + $0xc8] sm:$0xff]
    %v1427 = vld [vmem:[#allocation14 + $0xd0] sm:$0xff]
    %v1428 = vld [vmem:[#allocation14 + $0xd8] sm:$0xff]
    %v1429 = vld [vmem:[#allocation14 + $0xe0] sm:$0xff]
    %v1430 = vld [vmem:[#allocation14 + $0xe8] sm:$0xff]
    %v1431 = vld [vmem:[#allocation14 + $0xf0] sm:$0xff]
    %v1432 = vld [vmem:[#allocation14 + $0xf8] sm:$0xff]
    %v1433 = vld [vmem:[%s6] sm:$0xf]
    %v1434 = vld [vmem:[#allocation2] sm:$0xff]
    %v1435 = vld [vmem:[#allocation2 + $0x8] sm:$0xff]
    %v1436 = vld [vmem:[#allocation2 + $0x10] sm:$0xff]
    %v1437 = vld [vmem:[#allocation2 + $0x18] sm:$0xff]
    %v1438 = vld [vmem:[#allocation2 + $0x20] sm:$0xff]
    %v1439 = vld [vmem:[#allocation2 + $0x28] sm:$0xff]
    %v1440 = vld [vmem:[#allocation2 + $0x30] sm:$0xff]
    %v1441 = vld [vmem:[#allocation2 + $0x38] sm:$0xff]
    %v1442 = vpack.c.bf16 %v1435, %v1434
    %v1443 = vpack.c.bf16 %v1437, %v1436
    %v1444 = vpack.c.bf16 %v1439, %v1438
    %v1445 = vpack.c.bf16 %v1441, %v1440
    %v1447 = vperm.slane %v1433, 0
    %v1448 = vperm.slane %v1433, 1
    %v1449 = vperm.slane %v1433, 2
    %v1450 = vperm.slane %v1433, 3
    %v1487 = vunpack.c.l.b16 %v1369
    %v1488 = vunpack.c.h.b16 %v1369
    %v1489 = vunpack.c.l.b16 %v1370
    %v1490 = vunpack.c.h.b16 %v1370
    %v1491 = vunpack.c.l.b16 %v1371
    %v1492 = vunpack.c.h.b16 %v1371
    %v1493 = vunpack.c.l.b16 %v1372
    %v1494 = vunpack.c.h.b16 %v1372
    %v1495 = vunpack.c.l.b16 %v1373
    %v1496 = vunpack.c.h.b16 %v1373
    %v1497 = vunpack.c.l.b16 %v1374
    %v1498 = vunpack.c.h.b16 %v1374
    %v1499 = vunpack.c.l.b16 %v1375
    %v1500 = vunpack.c.h.b16 %v1375
    %v1501 = vunpack.c.l.b16 %v1376
    %v1502 = vunpack.c.h.b16 %v1376
    %v1503 = vunpack.c.l.b16 %v1377
    %v1504 = vunpack.c.h.b16 %v1377
    %v1505 = vunpack.c.l.b16 %v1378
    %v1506 = vunpack.c.h.b16 %v1378
    %v1507 = vunpack.c.l.b16 %v1379
    %v1508 = vunpack.c.h.b16 %v1379
    %v1509 = vunpack.c.l.b16 %v1380
    %v1510 = vunpack.c.h.b16 %v1380
    %v1511 = vunpack.c.l.b16 %v1381
    %v1512 = vunpack.c.h.b16 %v1381
    %v1513 = vunpack.c.l.b16 %v1382
    %v1514 = vunpack.c.h.b16 %v1382
    %v1515 = vunpack.c.l.b16 %v1383
    %v1516 = vunpack.c.h.b16 %v1383
    %v1517 = vunpack.c.l.b16 %v1384
    %v1518 = vunpack.c.h.b16 %v1384
    %v1519 = vunpack.c.l.b16 %v1385
    %v1520 = vunpack.c.h.b16 %v1385
    %v1521 = vunpack.c.l.b16 %v1386
    %v1522 = vunpack.c.h.b16 %v1386
    %v1523 = vunpack.c.l.b16 %v1387
    %v1524 = vunpack.c.h.b16 %v1387
    %v1525 = vunpack.c.l.b16 %v1388
    %v1526 = vunpack.c.h.b16 %v1388
    %v1527 = vunpack.c.l.b16 %v1389
    %v1528 = vunpack.c.h.b16 %v1389
    %v1529 = vunpack.c.l.b16 %v1390
    %v1530 = vunpack.c.h.b16 %v1390
    %v1531 = vunpack.c.l.b16 %v1391
    %v1532 = vunpack.c.h.b16 %v1391
    %v1533 = vunpack.c.l.b16 %v1392
    %v1534 = vunpack.c.h.b16 %v1392
    %v1535 = vunpack.c.l.b16 %v1393
    %v1536 = vunpack.c.h.b16 %v1393
    %v1537 = vunpack.c.l.b16 %v1394
    %v1538 = vunpack.c.h.b16 %v1394
    %v1539 = vunpack.c.l.b16 %v1395
    %v1540 = vunpack.c.h.b16 %v1395
    %v1541 = vunpack.c.l.b16 %v1396
    %v1542 = vunpack.c.h.b16 %v1396
    %v1543 = vunpack.c.l.b16 %v1397
    %v1544 = vunpack.c.h.b16 %v1397
    %v1545 = vunpack.c.l.b16 %v1398
    %v1546 = vunpack.c.h.b16 %v1398
    %v1547 = vunpack.c.l.b16 %v1399
    %v1548 = vunpack.c.h.b16 %v1399
    %v1549 = vunpack.c.l.b16 %v1400
    %v1550 = vunpack.c.h.b16 %v1400
    %v1551 = vpack.c.b16 %v1491, %v1487
    %v1552 = vpack.c.b16 %v1492, %v1488
    %v1553 = vpack.c.b16 %v1493, %v1489
    %v1554 = vpack.c.b16 %v1494, %v1490
    %v1555 = vpack.c.b16 %v1499, %v1495
    %v1556 = vpack.c.b16 %v1500, %v1496
    %v1557 = vpack.c.b16 %v1501, %v1497
    %v1558 = vpack.c.b16 %v1502, %v1498
    %v1559 = vpack.c.b16 %v1507, %v1503
    %v1560 = vpack.c.b16 %v1508, %v1504
    %v1561 = vpack.c.b16 %v1509, %v1505
    %v1562 = vpack.c.b16 %v1510, %v1506
    %v1563 = vpack.c.b16 %v1515, %v1511
    %v1564 = vpack.c.b16 %v1516, %v1512
    %v1565 = vpack.c.b16 %v1517, %v1513
    %v1566 = vpack.c.b16 %v1518, %v1514
    %v1567 = vpack.c.b16 %v1523, %v1519
    %v1568 = vpack.c.b16 %v1524, %v1520
    %v1569 = vpack.c.b16 %v1525, %v1521
    %v1570 = vpack.c.b16 %v1526, %v1522
    %v1571 = vpack.c.b16 %v1531, %v1527
    %v1572 = vpack.c.b16 %v1532, %v1528
    %v1573 = vpack.c.b16 %v1533, %v1529
    %v1574 = vpack.c.b16 %v1534, %v1530
    %v1575 = vpack.c.b16 %v1539, %v1535
    %v1576 = vpack.c.b16 %v1540, %v1536
    %v1577 = vpack.c.b16 %v1541, %v1537
    %v1578 = vpack.c.b16 %v1542, %v1538
    %v1579 = vpack.c.b16 %v1547, %v1543
    %v1580 = vpack.c.b16 %v1548, %v1544
    %v1581 = vpack.c.b16 %v1549, %v1545
    %v1582 = vpack.c.b16 %v1550, %v1546
    %1615 = vmatpush.bf16.msra.mxu0 %v1579
    %1616 = vmatpush.bf16.msra.mxu0 %v1575
    %1617 = vmatpush.bf16.msra.mxu0 %v1571
    %1618 = vmatpush.bf16.msra.mxu0 %v1567
    %1619 = vmatpush.bf16.msra.mxu0 %v1563
    %1620 = vmatpush.bf16.msra.mxu0 %v1559
    %1621 = vmatpush.bf16.msra.mxu0 %v1555
    %1622 = vmatpush.bf16.msra.mxu0 %v1551
    %1623 = vmatmul.bf16.gmra.mxu0 %v1442
    %v1624 = vpop.f32.mrf.mxu0
    %v1625 = vadd.f32 %v1447, %v1624
    %v1626 = vpop.f32.mrf.mxu0
    %v1627 = vadd.f32 %v1447, %v1626
    %1628 = vmatmul.bf16.gmra.mxu0 %v1443
    %v1629 = vpop.f32.mrf.mxu0
    %v1630 = vadd.f32 %v1447, %v1629
    %v1631 = vpop.f32.mrf.mxu0
    %v1632 = vadd.f32 %v1447, %v1631
    %1633 = vmatmul.bf16.gmra.mxu0 %v1444
    %v1634 = vpop.f32.mrf.mxu0
    %v1635 = vadd.f32 %v1447, %v1634
    %v1636 = vpop.f32.mrf.mxu0
    %v1637 = vadd.f32 %v1447, %v1636
    %1638 = vmatmul.bf16.gmra.mxu0 %v1445
    %v1639 = vpop.f32.mrf.mxu0
    %v1640 = vadd.f32 %v1447, %v1639
    %v1641 = vpop.f32.mrf.mxu0
    %v1642 = vadd.f32 %v1447, %v1641
    %1643 = vdwg.mxu0
    %1644 = vmatpush.bf16.msra.mxu0 %v1580
    %1645 = vmatpush.bf16.msra.mxu0 %v1576
    %1646 = vmatpush.bf16.msra.mxu0 %v1572
    %1647 = vmatpush.bf16.msra.mxu0 %v1568
    %1648 = vmatpush.bf16.msra.mxu0 %v1564
    %1649 = vmatpush.bf16.msra.mxu0 %v1560
    %1650 = vmatpush.bf16.msra.mxu0 %v1556
    %1651 = vmatpush.bf16.msra.mxu0 %v1552
    %1652 = vmatmul.bf16.gmra.mxu0 %v1442
    %v1653 = vpop.f32.mrf.mxu0
    %v1654 = vadd.f32 %v1448, %v1653
    %v1655 = vpop.f32.mrf.mxu0
    %v1656 = vadd.f32 %v1448, %v1655
    %1657 = vmatmul.bf16.gmra.mxu0 %v1443
    %v1658 = vpop.f32.mrf.mxu0
    %v1659 = vadd.f32 %v1448, %v1658
    %v1660 = vpop.f32.mrf.mxu0
    %v1661 = vadd.f32 %v1448, %v1660
    %1662 = vmatmul.bf16.gmra.mxu0 %v1444
    %v1663 = vpop.f32.mrf.mxu0
    %v1664 = vadd.f32 %v1448, %v1663
    %v1665 = vpop.f32.mrf.mxu0
    %v1666 = vadd.f32 %v1448, %v1665
    %1667 = vmatmul.bf16.gmra.mxu0 %v1445
    %v1668 = vpop.f32.mrf.mxu0
    %v1669 = vadd.f32 %v1448, %v1668
    %v1670 = vpop.f32.mrf.mxu0
    %v1671 = vadd.f32 %v1448, %v1670
    %1672 = vdwg.mxu0
    %1673 = vmatpush.bf16.msra.mxu0 %v1581
    %1674 = vmatpush.bf16.msra.mxu0 %v1577
    %1675 = vmatpush.bf16.msra.mxu0 %v1573
    %1676 = vmatpush.bf16.msra.mxu0 %v1569
    %1677 = vmatpush.bf16.msra.mxu0 %v1565
    %1678 = vmatpush.bf16.msra.mxu0 %v1561
    %1679 = vmatpush.bf16.msra.mxu0 %v1557
    %1680 = vmatpush.bf16.msra.mxu0 %v1553
    %1681 = vmatmul.bf16.gmra.mxu0 %v1442
    %v1682 = vpop.f32.mrf.mxu0
    %v1683 = vadd.f32 %v1449, %v1682
    %v1684 = vpop.f32.mrf.mxu0
    %v1685 = vadd.f32 %v1449, %v1684
    %1686 = vmatmul.bf16.gmra.mxu0 %v1443
    %v1687 = vpop.f32.mrf.mxu0
    %v1688 = vadd.f32 %v1449, %v1687
    %v1689 = vpop.f32.mrf.mxu0
    %v1690 = vadd.f32 %v1449, %v1689
    %1691 = vmatmul.bf16.gmra.mxu0 %v1444
    %v1692 = vpop.f32.mrf.mxu0
    %v1693 = vadd.f32 %v1449, %v1692
    %v1694 = vpop.f32.mrf.mxu0
    %v1695 = vadd.f32 %v1449, %v1694
    %1696 = vmatmul.bf16.gmra.mxu0 %v1445
    %v1697 = vpop.f32.mrf.mxu0
    %v1698 = vadd.f32 %v1449, %v1697
    %v1699 = vpop.f32.mrf.mxu0
    %v1700 = vadd.f32 %v1449, %v1699
    %1701 = vdwg.mxu0
    %1702 = vmatpush.bf16.msra.mxu0 %v1582
    %1703 = vmatpush.bf16.msra.mxu0 %v1578
    %1704 = vmatpush.bf16.msra.mxu0 %v1574
    %1705 = vmatpush.bf16.msra.mxu0 %v1570
    %1706 = vmatpush.bf16.msra.mxu0 %v1566
    %1707 = vmatpush.bf16.msra.mxu0 %v1562
    %1708 = vmatpush.bf16.msra.mxu0 %v1558
    %1709 = vmatpush.bf16.msra.mxu0 %v1554
    %1710 = vmatmul.bf16.gmra.mxu0 %v1442
    %v1711 = vpop.f32.mrf.mxu0
    %v1712 = vadd.f32 %v1450, %v1711
    %v1713 = vpop.f32.mrf.mxu0
    %v1714 = vadd.f32 %v1450, %v1713
    %1715 = vmatmul.bf16.gmra.mxu0 %v1443
    %v1716 = vpop.f32.mrf.mxu0
    %v1717 = vadd.f32 %v1450, %v1716
    %v1718 = vpop.f32.mrf.mxu0
    %v1719 = vadd.f32 %v1450, %v1718
    %1720 = vmatmul.bf16.gmra.mxu0 %v1444
    %v1721 = vpop.f32.mrf.mxu0
    %v1722 = vadd.f32 %v1450, %v1721
    %v1723 = vpop.f32.mrf.mxu0
    %v1724 = vadd.f32 %v1450, %v1723
    %1725 = vmatmul.bf16.gmra.mxu0 %v1445
    %v1726 = vpop.f32.mrf.mxu0
    %v1727 = vadd.f32 %v1450, %v1726
    %v1728 = vpop.f32.mrf.mxu0
    %v1729 = vadd.f32 %v1450, %v1728
    %1730 = vdwg.mxu0
    %1731 = vst [vmem:[#allocation3] sm:$0xff] %v1625
    %1732 = vst [vmem:[#allocation3 + $0x8] sm:$0xff] %v1654
    %1733 = vst [vmem:[#allocation3 + $0x10] sm:$0xff] %v1683
    %1734 = vst [vmem:[#allocation3 + $0x18] sm:$0xff] %v1712
    %1735 = vst [vmem:[#allocation3 + $0x20] sm:$0xff] %v1627
    %1736 = vst [vmem:[#allocation3 + $0x28] sm:$0xff] %v1656
    %1737 = vst [vmem:[#allocation3 + $0x30] sm:$0xff] %v1685
    %1738 = vst [vmem:[#allocation3 + $0x38] sm:$0xff] %v1714
    %1739 = vst [vmem:[#allocation3 + $0x40] sm:$0xff] %v1630
    %1740 = vst [vmem:[#allocation3 + $0x48] sm:$0xff] %v1659
    %1741 = vst [vmem:[#allocation3 + $0x50] sm:$0xff] %v1688
    %1742 = vst [vmem:[#allocation3 + $0x58] sm:$0xff] %v1717
    %1743 = vst [vmem:[#allocation3 + $0x60] sm:$0xff] %v1632
    %1744 = vst [vmem:[#allocation3 + $0x68] sm:$0xff] %v1661
    %1745 = vst [vmem:[#allocation3 + $0x70] sm:$0xff] %v1690
    %1746 = vst [vmem:[#allocation3 + $0x78] sm:$0xff] %v1719
    %1747 = vst [vmem:[#allocation3 + $0x80] sm:$0xff] %v1635
    %1748 = vst [vmem:[#allocation3 + $0x88] sm:$0xff] %v1664
    %1749 = vst [vmem:[#allocation3 + $0x90] sm:$0xff] %v1693
    %1750 = vst [vmem:[#allocation3 + $0x98] sm:$0xff] %v1722
    %1751 = vst [vmem:[#allocation3 + $0xa0] sm:$0xff] %v1637
    %1752 = vst [vmem:[#allocation3 + $0xa8] sm:$0xff] %v1666
    %1753 = vst [vmem:[#allocation3 + $0xb0] sm:$0xff] %v1695
    %1754 = vst [vmem:[#allocation3 + $0xb8] sm:$0xff] %v1724
    %1755 = vst [vmem:[#allocation3 + $0xc0] sm:$0xff] %v1640
    %1756 = vst [vmem:[#allocation3 + $0xc8] sm:$0xff] %v1669
    %1757 = vst [vmem:[#allocation3 + $0xd0] sm:$0xff] %v1698
    %1758 = vst [vmem:[#allocation3 + $0xd8] sm:$0xff] %v1727
    %1759 = vst [vmem:[#allocation3 + $0xe0] sm:$0xff] %v1642
    %1760 = vst [vmem:[#allocation3 + $0xe8] sm:$0xff] %v1671
    %1761 = vst [vmem:[#allocation3 + $0xf0] sm:$0xff] %v1700
    %1762 = vst [vmem:[#allocation3 + $0xf8] sm:$0xff] %v1729
    %v1763 = vld [vmem:[#allocation3] sm:$0xff]
    %v1764 = vld [vmem:[#allocation3 + $0x8] sm:$0xff]
    %v1765 = vld [vmem:[#allocation3 + $0x10] sm:$0xff]
    %v1766 = vld [vmem:[#allocation3 + $0x18] sm:$0xff]
    %v1799 = vunpack.c.l.b16 %v1401
    %v1800 = vunpack.c.h.b16 %v1401
    %v1801 = vunpack.c.l.b16 %v1402
    %v1802 = vunpack.c.h.b16 %v1402
    %v1803 = vunpack.c.l.b16 %v1403
    %v1804 = vunpack.c.h.b16 %v1403
    %v1805 = vunpack.c.l.b16 %v1404
    %v1806 = vunpack.c.h.b16 %v1404
    %v1807 = vunpack.c.l.b16 %v1405
    %v1808 = vunpack.c.h.b16 %v1405
    %v1809 = vunpack.c.l.b16 %v1406
    %v1810 = vunpack.c.h.b16 %v1406
    %v1811 = vunpack.c.l.b16 %v1407
    %v1812 = vunpack.c.h.b16 %v1407
    %v1813 = vunpack.c.l.b16 %v1408
    %v1814 = vunpack.c.h.b16 %v1408
    %v1815 = vunpack.c.l.b16 %v1409
    %v1816 = vunpack.c.h.b16 %v1409
    %v1817 = vunpack.c.l.b16 %v1410
    %v1818 = vunpack.c.h.b16 %v1410
    %v1819 = vunpack.c.l.b16 %v1411
    %v1820 = vunpack.c.h.b16 %v1411
    %v1821 = vunpack.c.l.b16 %v1412
    %v1822 = vunpack.c.h.b16 %v1412
    %v1823 = vunpack.c.l.b16 %v1413
    %v1824 = vunpack.c.h.b16 %v1413
    %v1825 = vunpack.c.l.b16 %v1414
    %v1826 = vunpack.c.h.b16 %v1414
    %v1827 = vunpack.c.l.b16 %v1415
    %v1828 = vunpack.c.h.b16 %v1415
    %v1829 = vunpack.c.l.b16 %v1416
    %v1830 = vunpack.c.h.b16 %v1416
    %v1831 = vunpack.c.l.b16 %v1417
    %v1832 = vunpack.c.h.b16 %v1417
    %v1833 = vunpack.c.l.b16 %v1418
    %v1834 = vunpack.c.h.b16 %v1418
    %v1835 = vunpack.c.l.b16 %v1419
    %v1836 = vunpack.c.h.b16 %v1419
    %v1837 = vunpack.c.l.b16 %v1420
    %v1838 = vunpack.c.h.b16 %v1420
    %v1839 = vunpack.c.l.b16 %v1421
    %v1840 = vunpack.c.h.b16 %v1421
    %v1841 = vunpack.c.l.b16 %v1422
    %v1842 = vunpack.c.h.b16 %v1422
    %v1843 = vunpack.c.l.b16 %v1423
    %v1844 = vunpack.c.h.b16 %v1423
    %v1845 = vunpack.c.l.b16 %v1424
    %v1846 = vunpack.c.h.b16 %v1424
    %v1847 = vunpack.c.l.b16 %v1425
    %v1848 = vunpack.c.h.b16 %v1425
    %v1849 = vunpack.c.l.b16 %v1426
    %v1850 = vunpack.c.h.b16 %v1426
    %v1851 = vunpack.c.l.b16 %v1427
    %v1852 = vunpack.c.h.b16 %v1427
    %v1853 = vunpack.c.l.b16 %v1428
    %v1854 = vunpack.c.h.b16 %v1428
    %v1855 = vunpack.c.l.b16 %v1429
    %v1856 = vunpack.c.h.b16 %v1429
    %v1857 = vunpack.c.l.b16 %v1430
    %v1858 = vunpack.c.h.b16 %v1430
    %v1859 = vunpack.c.l.b16 %v1431
    %v1860 = vunpack.c.h.b16 %v1431
    %v1861 = vunpack.c.l.b16 %v1432
    %v1862 = vunpack.c.h.b16 %v1432
    %v1863 = vpack.c.b16 %v1803, %v1799
    %v1864 = vpack.c.b16 %v1804, %v1800
    %v1865 = vpack.c.b16 %v1805, %v1801
    %v1866 = vpack.c.b16 %v1806, %v1802
    %v1867 = vpack.c.b16 %v1811, %v1807
    %v1868 = vpack.c.b16 %v1812, %v1808
    %v1869 = vpack.c.b16 %v1813, %v1809
    %v1870 = vpack.c.b16 %v1814, %v1810
    %v1871 = vpack.c.b16 %v1819, %v1815
    %v1872 = vpack.c.b16 %v1820, %v1816
    %v1873 = vpack.c.b16 %v1821, %v1817
    %v1874 = vpack.c.b16 %v1822, %v1818
    %v1875 = vpack.c.b16 %v1827, %v1823
    %v1876 = vpack.c.b16 %v1828, %v1824
    %v1877 = vpack.c.b16 %v1829, %v1825
    %v1878 = vpack.c.b16 %v1830, %v1826
    %v1879 = vpack.c.b16 %v1835, %v1831
    %v1880 = vpack.c.b16 %v1836, %v1832
    %v1881 = vpack.c.b16 %v1837, %v1833
    %v1882 = vpack.c.b16 %v1838, %v1834
    %v1883 = vpack.c.b16 %v1843, %v1839
    %v1884 = vpack.c.b16 %v1844, %v1840
    %v1885 = vpack.c.b16 %v1845, %v1841
    %v1886 = vpack.c.b16 %v1846, %v1842
    %v1887 = vpack.c.b16 %v1851, %v1847
    %v1888 = vpack.c.b16 %v1852, %v1848
    %v1889 = vpack.c.b16 %v1853, %v1849
    %v1890 = vpack.c.b16 %v1854, %v1850
    %v1891 = vpack.c.b16 %v1859, %v1855
    %v1892 = vpack.c.b16 %v1860, %v1856
    %v1893 = vpack.c.b16 %v1861, %v1857
    %v1894 = vpack.c.b16 %v1862, %v1858
    %1927 = vmatpush.bf16.msra.mxu0 %v1891
    %1928 = vmatpush.bf16.msra.mxu0 %v1887
    %1929 = vmatpush.bf16.msra.mxu0 %v1883
    %1930 = vmatpush.bf16.msra.mxu0 %v1879
    %1931 = vmatpush.bf16.msra.mxu0 %v1875
    %1932 = vmatpush.bf16.msra.mxu0 %v1871
    %1933 = vmatpush.bf16.msra.mxu0 %v1867
    %1934 = vmatpush.bf16.msra.mxu0 %v1863
    %1935 = vmatmul.bf16.gmra.mxu0 0
    %v1936 = vpop.f32.mrf.mxu0
    %v1937 = vadd.f32 0.0, %v1936
    %v1938 = vpop.f32.mrf.mxu0
    %1939 = vdwg.mxu0
    %1940 = vmatpush.bf16.msra.mxu0 %v1892
    %1941 = vmatpush.bf16.msra.mxu0 %v1888
    %1942 = vmatpush.bf16.msra.mxu0 %v1884
    %1943 = vmatpush.bf16.msra.mxu0 %v1880
    %1944 = vmatpush.bf16.msra.mxu0 %v1876
    %1945 = vmatpush.bf16.msra.mxu0 %v1872
    %1946 = vmatpush.bf16.msra.mxu0 %v1868
    %1947 = vmatpush.bf16.msra.mxu0 %v1864
    %1948 = vmatmul.bf16.gmra.mxu0 0
    %v1949 = vpop.f32.mrf.mxu0
    %v1950 = vadd.f32 0.0, %v1949
    %v1951 = vpop.f32.mrf.mxu0
    %1952 = vdwg.mxu0
    %1953 = vmatpush.bf16.msra.mxu0 %v1893
    %1954 = vmatpush.bf16.msra.mxu0 %v1889
    %1955 = vmatpush.bf16.msra.mxu0 %v1885
    %1956 = vmatpush.bf16.msra.mxu0 %v1881
    %1957 = vmatpush.bf16.msra.mxu0 %v1877
    %1958 = vmatpush.bf16.msra.mxu0 %v1873
    %1959 = vmatpush.bf16.msra.mxu0 %v1869
    %1960 = vmatpush.bf16.msra.mxu0 %v1865
    %1961 = vmatmul.bf16.gmra.mxu0 0
    %v1962 = vpop.f32.mrf.mxu0
    %v1963 = vadd.f32 0.0, %v1962
    %v1964 = vpop.f32.mrf.mxu0
    %1965 = vdwg.mxu0
    %1966 = vmatpush.bf16.msra.mxu0 %v1894
    %1967 = vmatpush.bf16.msra.mxu0 %v1890
    %1968 = vmatpush.bf16.msra.mxu0 %v1886
    %1969 = vmatpush.bf16.msra.mxu0 %v1882
    %1970 = vmatpush.bf16.msra.mxu0 %v1878
    %1971 = vmatpush.bf16.msra.mxu0 %v1874
    %1972 = vmatpush.bf16.msra.mxu0 %v1870
    %1973 = vmatpush.bf16.msra.mxu0 %v1866
    %1974 = vmatmul.bf16.gmra.mxu0 0
    %v1975 = vpop.f32.mrf.mxu0
    %v1976 = vadd.f32 0.0, %v1975
    %v1977 = vpop.f32.mrf.mxu0
    %1978 = vdwg.mxu0
    %v1979 = vadd.f32 %v1763, %v1937
    %v1980 = vadd.f32 %v1764, %v1950
    %v1981 = vadd.f32 %v1765, %v1963
    %v1982 = vadd.f32 %v1766, %v1976
    %v1983 = vmul.f32 %v1979, 0.5
    %v1984 = vmul.f32 %v1980, 0.5
    %v1985 = vmul.f32 %v1981, 0.5
    %v1986 = vtanh.pop %v1983
    %v1987 = vtanh.pop %v1984
    %v1988 = vtanh.pop %v1985
    %v1989 = vmul.f32 %v1986, 0.5
    %v1990 = vmul.f32 %v1987, 0.5
    %v1991 = vmul.f32 %v1988, 0.5
    %v1992 = vadd.f32 %v1989, 0.5
    %v1993 = vadd.f32 %v1990, 0.5
    %v1994 = vadd.f32 %v1991, 0.5
    %v1995 = vtanh.pop %v1982
    %v1996 = vmul.f32 %v1993, 0.0
    %v1997 = vmul.f32 %v1992, %v1995
    %v1998 = vadd.f32 %v1996, %v1997
    %v1999 = vtanh.pop %v1998
    %v2000 = vmul.f32 %v1994, %v1999
    %v2001 = vld [vmem:[%s794] sm:$0xff]
    %v2002 = vld [vmem:[%s794 + $0x8] sm:$0xff]
    %v2003 = vld [vmem:[%s794 + $0x10] sm:$0xff]
    %v2004 = vld [vmem:[%s794 + $0x18] sm:$0xff]
    %v2005 = vpack.c.bf16 %v2000, %v2000
    %2006 = vmatpush.bf16.msra.mxu0 %v1891
    %2007 = vmatpush.bf16.msra.mxu0 %v1887
    %2008 = vmatpush.bf16.msra.mxu0 %v1883
    %2009 = vmatpush.bf16.msra.mxu0 %v1879
    %2010 = vmatpush.bf16.msra.mxu0 %v1875
    %2011 = vmatpush.bf16.msra.mxu0 %v1871
    %2012 = vmatpush.bf16.msra.mxu0 %v1867
    %2013 = vmatpush.bf16.msra.mxu0 %v1863
    %2014 = vmatmul.bf16.gmra.mxu0 %v2005
    %v2015 = vpop.f32.mrf.mxu0
    %v2016 = vadd.f32 0.0, %v2015
    %v2017 = vpop.f32.mrf.mxu0
    %2018 = vdwg.mxu0
    %2019 = vmatpush.bf16.msra.mxu0 %v1892
    %2020 = vmatpush.bf16.msra.mxu0 %v1888
    %2021 = vmatpush.bf16.msra.mxu0 %v1884
    %2022 = vmatpush.bf16.msra.mxu0 %v1880
    %2023 = vmatpush.bf16.msra.mxu0 %v1876
    %2024 = vmatpush.bf16.msra.mxu0 %v1872
    %2025 = vmatpush.bf16.msra.mxu0 %v1868
    %2026 = vmatpush.bf16.msra.mxu0 %v1864
    %2027 = vmatmul.bf16.gmra.mxu0 %v2005
    %v2028 = vpop.f32.mrf.mxu0
    %v2029 = vadd.f32 0.0, %v2028
    %v2030 = vpop.f32.mrf.mxu0
    %2031 = vdwg.mxu0
    %2032 = vmatpush.bf16.msra.mxu0 %v1893
    %2033 = vmatpush.bf16.msra.mxu0 %v1889
    %2034 = vmatpush.bf16.msra.mxu0 %v1885
    %2035 = vmatpush.bf16.msra.mxu0 %v1881
    %2036 = vmatpush.bf16.msra.mxu0 %v1877
    %2037 = vmatpush.bf16.msra.mxu0 %v1873
    %2038 = vmatpush.bf16.msra.mxu0 %v1869
    %2039 = vmatpush.bf16.msra.mxu0 %v1865
    %2040 = vmatmul.bf16.gmra.mxu0 %v2005
    %v2041 = vpop.f32.mrf.mxu0
    %v2042 = vadd.f32 0.0, %v2041
    %v2043 = vpop.f32.mrf.mxu0
    %2044 = vdwg.mxu0
    %2045 = vmatpush.bf16.msra.mxu0 %v1894
    %2046 = vmatpush.bf16.msra.mxu0 %v1890
    %2047 = vmatpush.bf16.msra.mxu0 %v1886
    %2048 = vmatpush.bf16.msra.mxu0 %v1882
    %2049 = vmatpush.bf16.msra.mxu0 %v1878
    %2050 = vmatpush.bf16.msra.mxu0 %v1874
    %2051 = vmatpush.bf16.msra.mxu0 %v1870
    %2052 = vmatpush.bf16.msra.mxu0 %v1866
    %2053 = vmatmul.bf16.gmra.mxu0 %v2005
    %v2054 = vpop.f32.mrf.mxu0
    %v2055 = vadd.f32 0.0, %v2054
    %v2056 = vpop.f32.mrf.mxu0
    %2057 = vdwg.mxu0
    %v2058 = vadd.f32 %v2001, %v2016
    %v2059 = vadd.f32 %v2002, %v2029
    %v2060 = vadd.f32 %v2003, %v2042
    %v2061 = vadd.f32 %v2004, %v2055
    %v2062 = vmul.f32 %v2058, 0.5
    %v2063 = vmul.f32 %v2059, 0.5
    %v2064 = vmul.f32 %v2060, 0.5
    %v2065 = vtanh.pop %v2062
    %v2066 = vtanh.pop %v2063
    %v2067 = vtanh.pop %v2064
    %v2068 = vmul.f32 %v2065, 0.5
    %v2069 = vmul.f32 %v2066, 0.5
    %v2070 = vmul.f32 %v2067, 0.5
    %v2071 = vadd.f32 %v2068, 0.5
    %v2072 = vadd.f32 %v2069, 0.5
    %v2073 = vadd.f32 %v2070, 0.5
    %v2074 = vtanh.pop %v2061
    %v2075 = vmul.f32 %v2072, %v1998
    %v2076 = vmul.f32 %v2071, %v2074
    %v2077 = vadd.f32 %v2075, %v2076
    %v2078 = vtanh.pop %v2077
    %v2079 = vmul.f32 %v2073, %v2078
    %v2080 = vld [vmem:[%s876] sm:$0xff]
    %v2081 = vld [vmem:[%s876 + $0x8] sm:$0xff]
    %v2082 = vld [vmem:[%s876 + $0x10] sm:$0xff]
    %v2083 = vld [vmem:[%s876 + $0x18] sm:$0xff]
    %v2084 = vpack.c.bf16 %v2079, %v2079
    %2085 = vmatpush.bf16.msra.mxu0 %v1891
    %2086 = vmatpush.bf16.msra.mxu0 %v1887
    %2087 = vmatpush.bf16.msra.mxu0 %v1883
    %2088 = vmatpush.bf16.msra.mxu0 %v1879
    %2089 = vmatpush.bf16.msra.mxu0 %v1875
    %2090 = vmatpush.bf16.msra.mxu0 %v1871
    %2091 = vmatpush.bf16.msra.mxu0 %v1867
    %2092 = vmatpush.bf16.msra.mxu0 %v1863
    %2093 = vmatmul.bf16.gmra.mxu0 %v2084
    %v2094 = vpop.f32.mrf.mxu0
    %v2095 = vadd.f32 0.0, %v2094
    %v2096 = vpop.f32.mrf.mxu0
    %2097 = vdwg.mxu0
    %2098 = vmatpush.bf16.msra.mxu0 %v1892
    %2099 = vmatpush.bf16.msra.mxu0 %v1888
    %2100 = vmatpush.bf16.msra.mxu0 %v1884
    %2101 = vmatpush.bf16.msra.mxu0 %v1880
    %2102 = vmatpush.bf16.msra.mxu0 %v1876
    %2103 = vmatpush.bf16.msra.mxu0 %v1872
    %2104 = vmatpush.bf16.msra.mxu0 %v1868
    %2105 = vmatpush.bf16.msra.mxu0 %v1864
    %2106 = vmatmul.bf16.gmra.mxu0 %v2084
    %v2107 = vpop.f32.mrf.mxu0
    %v2108 = vadd.f32 0.0, %v2107
    %v2109 = vpop.f32.mrf.mxu0
    %2110 = vdwg.mxu0
    %2111 = vmatpush.bf16.msra.mxu0 %v1893
    %2112 = vmatpush.bf16.msra.mxu0 %v1889
    %2113 = vmatpush.bf16.msra.mxu0 %v1885
    %2114 = vmatpush.bf16.msra.mxu0 %v1881
    %2115 = vmatpush.bf16.msra.mxu0 %v1877
    %2116 = vmatpush.bf16.msra.mxu0 %v1873
    %2117 = vmatpush.bf16.msra.mxu0 %v1869
    %2118 = vmatpush.bf16.msra.mxu0 %v1865
    %2119 = vmatmul.bf16.gmra.mxu0 %v2084
    %v2120 = vpop.f32.mrf.mxu0
    %v2121 = vadd.f32 0.0, %v2120
    %v2122 = vpop.f32.mrf.mxu0
    %2123 = vdwg.mxu0
    %2124 = vmatpush.bf16.msra.mxu0 %v1894
    %2125 = vmatpush.bf16.msra.mxu0 %v1890
    %2126 = vmatpush.bf16.msra.mxu0 %v1886
    %2127 = vmatpush.bf16.msra.mxu0 %v1882
    %2128 = vmatpush.bf16.msra.mxu0 %v1878
    %2129 = vmatpush.bf16.msra.mxu0 %v1874
    %2130 = vmatpush.bf16.msra.mxu0 %v1870
    %2131 = vmatpush.bf16.msra.mxu0 %v1866
    %2132 = vmatmul.bf16.gmra.mxu0 %v2084
    %v2133 = vpop.f32.mrf.mxu0
    %v2134 = vadd.f32 0.0, %v2133
    %v2135 = vpop.f32.mrf.mxu0
    %2136 = vdwg.mxu0
    %v2137 = vadd.f32 %v2080, %v2095
    %v2138 = vadd.f32 %v2081, %v2108
    %v2139 = vadd.f32 %v2082, %v2121
    %v2140 = vadd.f32 %v2083, %v2134
    %v2141 = vmul.f32 %v2137, 0.5
    %v2142 = vmul.f32 %v2138, 0.5
    %v2143 = vmul.f32 %v2139, 0.5
    %v2144 = vtanh.pop %v2141
    %v2145 = vtanh.pop %v2142
    %v2146 = vtanh.pop %v2143
    %v2147 = vmul.f32 %v2144, 0.5
    %v2148 = vmul.f32 %v2145, 0.5
    %v2149 = vmul.f32 %v2146, 0.5
    %v2150 = vadd.f32 %v2147, 0.5
    %v2151 = vadd.f32 %v2148, 0.5
    %v2152 = vadd.f32 %v2149, 0.5
    %v2153 = vtanh.pop %v2140
    %v2154 = vmul.f32 %v2151, %v2077
    %v2155 = vmul.f32 %v2150, %v2153
    %v2156 = vadd.f32 %v2154, %v2155
    %v2157 = vtanh.pop %v2156
    %v2158 = vmul.f32 %v2152, %v2157
    %v2159 = vld [vmem:[%s958] sm:$0xff]
    %v2160 = vld [vmem:[%s958 + $0x8] sm:$0xff]
    %v2161 = vld [vmem:[%s958 + $0x10] sm:$0xff]
    %v2162 = vld [vmem:[%s958 + $0x18] sm:$0xff]
    %v2163 = vpack.c.bf16 %v2158, %v2158
    %2164 = vmatpush.bf16.msra.mxu0 %v1891
    %2165 = vmatpush.bf16.msra.mxu0 %v1887
    %2166 = vmatpush.bf16.msra.mxu0 %v1883
    %2167 = vmatpush.bf16.msra.mxu0 %v1879
    %2168 = vmatpush.bf16.msra.mxu0 %v1875
    %2169 = vmatpush.bf16.msra.mxu0 %v1871
    %2170 = vmatpush.bf16.msra.mxu0 %v1867
    %2171 = vmatpush.bf16.msra.mxu0 %v1863
    %2172 = vmatmul.bf16.gmra.mxu0 %v2163
    %v2173 = vpop.f32.mrf.mxu0
    %v2174 = vadd.f32 0.0, %v2173
    %v2175 = vpop.f32.mrf.mxu0
    %2176 = vdwg.mxu0
    %2177 = vmatpush.bf16.msra.mxu0 %v1892
    %2178 = vmatpush.bf16.msra.mxu0 %v1888
    %2179 = vmatpush.bf16.msra.mxu0 %v1884
    %2180 = vmatpush.bf16.msra.mxu0 %v1880
    %2181 = vmatpush.bf16.msra.mxu0 %v1876
    %2182 = vmatpush.bf16.msra.mxu0 %v1872
    %2183 = vmatpush.bf16.msra.mxu0 %v1868
    %2184 = vmatpush.bf16.msra.mxu0 %v1864
    %2185 = vmatmul.bf16.gmra.mxu0 %v2163
    %v2186 = vpop.f32.mrf.mxu0
    %v2187 = vadd.f32 0.0, %v2186
    %v2188 = vpop.f32.mrf.mxu0
    %2189 = vdwg.mxu0
    %2190 = vmatpush.bf16.msra.mxu0 %v1893
    %2191 = vmatpush.bf16.msra.mxu0 %v1889
    %2192 = vmatpush.bf16.msra.mxu0 %v1885
    %2193 = vmatpush.bf16.msra.mxu0 %v1881
    %2194 = vmatpush.bf16.msra.mxu0 %v1877
    %2195 = vmatpush.bf16.msra.mxu0 %v1873
    %2196 = vmatpush.bf16.msra.mxu0 %v1869
    %2197 = vmatpush.bf16.msra.mxu0 %v1865
    %2198 = vmatmul.bf16.gmra.mxu0 %v2163
    %v2199 = vpop.f32.mrf.mxu0
    %v2200 = vadd.f32 0.0, %v2199
    %v2201 = vpop.f32.mrf.mxu0
    %2202 = vdwg.mxu0
    %2203 = vmatpush.bf16.msra.mxu0 %v1894
    %2204 = vmatpush.bf16.msra.mxu0 %v1890
    %2205 = vmatpush.bf16.msra.mxu0 %v1886
    %2206 = vmatpush.bf16.msra.mxu0 %v1882
    %2207 = vmatpush.bf16.msra.mxu0 %v1878
    %2208 = vmatpush.bf16.msra.mxu0 %v1874
    %2209 = vmatpush.bf16.msra.mxu0 %v1870
    %2210 = vmatpush.bf16.msra.mxu0 %v1866
    %2211 = vmatmul.bf16.gmra.mxu0 %v2163
    %v2212 = vpop.f32.mrf.mxu0
    %v2213 = vadd.f32 0.0, %v2212
    %v2214 = vpop.f32.mrf.mxu0
    %2215 = vdwg.mxu0
    %v2216 = vadd.f32 %v2159, %v2174
    %v2217 = vadd.f32 %v2160, %v2187
    %v2218 = vadd.f32 %v2161, %v2200
    %v2219 = vadd.f32 %v2162, %v2213
    %v2220 = vmul.f32 %v2216, 0.5
    %v2221 = vmul.f32 %v2217, 0.5
    %v2222 = vmul.f32 %v2218, 0.5
    %v2223 = vtanh.pop %v2220
    %v2224 = vtanh.pop %v2221
    %v2225 = vtanh.pop %v2222
    %v2226 = vmul.f32 %v2223, 0.5
    %v2227 = vmul.f32 %v2224, 0.5
    %v2228 = vmul.f32 %v2225, 0.5
    %v2229 = vadd.f32 %v2226, 0.5
    %v2230 = vadd.f32 %v2227, 0.5
    %v2231 = vadd.f32 %v2228, 0.5
    %v2232 = vtanh.pop %v2219
    %v2233 = vmul.f32 %v2230, %v2156
    %v2234 = vmul.f32 %v2229, %v2232
    %v2235 = vadd.f32 %v2233, %v2234
    %v2236 = vtanh.pop %v2235
    %v2237 = vmul.f32 %v2231, %v2236
    %v2238 = vld [vmem:[%s1040] sm:$0xff]
    %v2239 = vld [vmem:[%s1040 + $0x8] sm:$0xff]
    %v2240 = vld [vmem:[%s1040 + $0x10] sm:$0xff]
    %v2241 = vld [vmem:[%s1040 + $0x18] sm:$0xff]
    %v2242 = vpack.c.bf16 %v2237, %v2237
    %2243 = vmatpush.bf16.msra.mxu0 %v1891
    %2244 = vmatpush.bf16.msra.mxu0 %v1887
    %2245 = vmatpush.bf16.msra.mxu0 %v1883
    %2246 = vmatpush.bf16.msra.mxu0 %v1879
    %2247 = vmatpush.bf16.msra.mxu0 %v1875
    %2248 = vmatpush.bf16.msra.mxu0 %v1871
    %2249 = vmatpush.bf16.msra.mxu0 %v1867
    %2250 = vmatpush.bf16.msra.mxu0 %v1863
    %2251 = vmatmul.bf16.gmra.mxu0 %v2242
    %v2252 = vpop.f32.mrf.mxu0
    %v2253 = vadd.f32 0.0, %v2252
    %v2254 = vpop.f32.mrf.mxu0
    %2255 = vdwg.mxu0
    %2256 = vmatpush.bf16.msra.mxu0 %v1892
    %2257 = vmatpush.bf16.msra.mxu0 %v1888
    %2258 = vmatpush.bf16.msra.mxu0 %v1884
    %2259 = vmatpush.bf16.msra.mxu0 %v1880
    %2260 = vmatpush.bf16.msra.mxu0 %v1876
    %2261 = vmatpush.bf16.msra.mxu0 %v1872
    %2262 = vmatpush.bf16.msra.mxu0 %v1868
    %2263 = vmatpush.bf16.msra.mxu0 %v1864
    %2264 = vmatmul.bf16.gmra.mxu0 %v2242
    %v2265 = vpop.f32.mrf.mxu0
    %v2266 = vadd.f32 0.0, %v2265
    %v2267 = vpop.f32.mrf.mxu0
    %2268 = vdwg.mxu0
    %2269 = vmatpush.bf16.msra.mxu0 %v1893
    %2270 = vmatpush.bf16.msra.mxu0 %v1889
    %2271 = vmatpush.bf16.msra.mxu0 %v1885
    %2272 = vmatpush.bf16.msra.mxu0 %v1881
    %2273 = vmatpush.bf16.msra.mxu0 %v1877
    %2274 = vmatpush.bf16.msra.mxu0 %v1873
    %2275 = vmatpush.bf16.msra.mxu0 %v1869
    %2276 = vmatpush.bf16.msra.mxu0 %v1865
    %2277 = vmatmul.bf16.gmra.mxu0 %v2242
    %v2278 = vpop.f32.mrf.mxu0
    %v2279 = vadd.f32 0.0, %v2278
    %v2280 = vpop.f32.mrf.mxu0
    %2281 = vdwg.mxu0
    %2282 = vmatpush.bf16.msra.mxu0 %v1894
    %2283 = vmatpush.bf16.msra.mxu0 %v1890
    %2284 = vmatpush.bf16.msra.mxu0 %v1886
    %2285 = vmatpush.bf16.msra.mxu0 %v1882
    %2286 = vmatpush.bf16.msra.mxu0 %v1878
    %2287 = vmatpush.bf16.msra.mxu0 %v1874
    %2288 = vmatpush.bf16.msra.mxu0 %v1870
    %2289 = vmatpush.bf16.msra.mxu0 %v1866
    %2290 = vmatmul.bf16.gmra.mxu0 %v2242
    %v2291 = vpop.f32.mrf.mxu0
    %v2292 = vadd.f32 0.0, %v2291
    %v2293 = vpop.f32.mrf.mxu0
    %2294 = vdwg.mxu0
    %v2295 = vadd.f32 %v2238, %v2253
    %v2296 = vadd.f32 %v2239, %v2266
    %v2297 = vadd.f32 %v2240, %v2279
    %v2298 = vadd.f32 %v2241, %v2292
    %v2299 = vmul.f32 %v2295, 0.5
    %v2300 = vmul.f32 %v2296, 0.5
    %v2301 = vmul.f32 %v2297, 0.5
    %v2302 = vtanh.pop %v2299
    %v2303 = vtanh.pop %v2300
    %v2304 = vtanh.pop %v2301
    %v2305 = vmul.f32 %v2302, 0.5
    %v2306 = vmul.f32 %v2303, 0.5
    %v2307 = vmul.f32 %v2304, 0.5
    %v2308 = vadd.f32 %v2305, 0.5
    %v2309 = vadd.f32 %v2306, 0.5
    %v2310 = vadd.f32 %v2307, 0.5
    %v2311 = vtanh.pop %v2298
    %v2312 = vmul.f32 %v2309, %v2235
    %v2313 = vmul.f32 %v2308, %v2311
    %v2314 = vadd.f32 %v2312, %v2313
    %v2315 = vtanh.pop %v2314
    %v2316 = vmul.f32 %v2310, %v2315
    %v2317 = vld [vmem:[%s1122] sm:$0xff]
    %v2318 = vld [vmem:[%s1122 + $0x8] sm:$0xff]
    %v2319 = vld [vmem:[%s1122 + $0x10] sm:$0xff]
    %v2320 = vld [vmem:[%s1122 + $0x18] sm:$0xff]
    %v2321 = vpack.c.bf16 %v2316, %v2316
    %2322 = vmatpush.bf16.msra.mxu0 %v1891
    %2323 = vmatpush.bf16.msra.mxu0 %v1887
    %2324 = vmatpush.bf16.msra.mxu0 %v1883
    %2325 = vmatpush.bf16.msra.mxu0 %v1879
    %2326 = vmatpush.bf16.msra.mxu0 %v1875
    %2327 = vmatpush.bf16.msra.mxu0 %v1871
    %2328 = vmatpush.bf16.msra.mxu0 %v1867
    %2329 = vmatpush.bf16.msra.mxu0 %v1863
    %2330 = vmatmul.bf16.gmra.mxu0 %v2321
    %v2331 = vpop.f32.mrf.mxu0
    %v2332 = vadd.f32 0.0, %v2331
    %v2333 = vpop.f32.mrf.mxu0
    %2334 = vdwg.mxu0
    %2335 = vmatpush.bf16.msra.mxu0 %v1892
    %2336 = vmatpush.bf16.msra.mxu0 %v1888
    %2337 = vmatpush.bf16.msra.mxu0 %v1884
    %2338 = vmatpush.bf16.msra.mxu0 %v1880
    %2339 = vmatpush.bf16.msra.mxu0 %v1876
    %2340 = vmatpush.bf16.msra.mxu0 %v1872
    %2341 = vmatpush.bf16.msra.mxu0 %v1868
    %2342 = vmatpush.bf16.msra.mxu0 %v1864
    %2343 = vmatmul.bf16.gmra.mxu0 %v2321
    %v2344 = vpop.f32.mrf.mxu0
    %v2345 = vadd.f32 0.0, %v2344
    %v2346 = vpop.f32.mrf.mxu0
    %2347 = vdwg.mxu0
    %2348 = vmatpush.bf16.msra.mxu0 %v1893
    %2349 = vmatpush.bf16.msra.mxu0 %v1889
    %2350 = vmatpush.bf16.msra.mxu0 %v1885
    %2351 = vmatpush.bf16.msra.mxu0 %v1881
    %2352 = vmatpush.bf16.msra.mxu0 %v1877
    %2353 = vmatpush.bf16.msra.mxu0 %v1873
    %2354 = vmatpush.bf16.msra.mxu0 %v1869
    %2355 = vmatpush.bf16.msra.mxu0 %v1865
    %2356 = vmatmul.bf16.gmra.mxu0 %v2321
    %v2357 = vpop.f32.mrf.mxu0
    %v2358 = vadd.f32 0.0, %v2357
    %v2359 = vpop.f32.mrf.mxu0
    %2360 = vdwg.mxu0
    %2361 = vmatpush.bf16.msra.mxu0 %v1894
    %2362 = vmatpush.bf16.msra.mxu0 %v1890
    %2363 = vmatpush.bf16.msra.mxu0 %v1886
    %2364 = vmatpush.bf16.msra.mxu0 %v1882
    %2365 = vmatpush.bf16.msra.mxu0 %v1878
    %2366 = vmatpush.bf16.msra.mxu0 %v1874
    %2367 = vmatpush.bf16.msra.mxu0 %v1870
    %2368 = vmatpush.bf16.msra.mxu0 %v1866
    %2369 = vmatmul.bf16.gmra.mxu0 %v2321
    %v2370 = vpop.f32.mrf.mxu0
    %v2371 = vadd.f32 0.0, %v2370
    %v2372 = vpop.f32.mrf.mxu0
    %2373 = vdwg.mxu0
    %v2374 = vadd.f32 %v2317, %v2332
    %v2375 = vadd.f32 %v2318, %v2345
    %v2376 = vadd.f32 %v2319, %v2358
    %v2377 = vadd.f32 %v2320, %v2371
    %v2378 = vmul.f32 %v2374, 0.5
    %v2379 = vmul.f32 %v2375, 0.5
    %v2380 = vmul.f32 %v2376, 0.5
    %v2381 = vtanh.pop %v2378
    %v2382 = vtanh.pop %v2379
    %v2383 = vtanh.pop %v2380
    %v2384 = vmul.f32 %v2381, 0.5
    %v2385 = vmul.f32 %v2382, 0.5
    %v2386 = vmul.f32 %v2383, 0.5
    %v2387 = vadd.f32 %v2384, 0.5
    %v2388 = vadd.f32 %v2385, 0.5
    %v2389 = vadd.f32 %v2386, 0.5
    %v2390 = vtanh.pop %v2377
    %v2391 = vmul.f32 %v2388, %v2314
    %v2392 = vmul.f32 %v2387, %v2390
    %v2393 = vadd.f32 %v2391, %v2392
    %v2394 = vtanh.pop %v2393
    %v2395 = vmul.f32 %v2389, %v2394
    %v2396 = vld [vmem:[%s1204] sm:$0xff]
    %v2397 = vld [vmem:[%s1204 + $0x8] sm:$0xff]
    %v2398 = vld [vmem:[%s1204 + $0x10] sm:$0xff]
    %v2399 = vld [vmem:[%s1204 + $0x18] sm:$0xff]
    %v2400 = vpack.c.bf16 %v2395, %v2395
    %2401 = vmatpush.bf16.msra.mxu0 %v1891
    %2402 = vmatpush.bf16.msra.mxu0 %v1887
    %2403 = vmatpush.bf16.msra.mxu0 %v1883
    %2404 = vmatpush.bf16.msra.mxu0 %v1879
    %2405 = vmatpush.bf16.msra.mxu0 %v1875
    %2406 = vmatpush.bf16.msra.mxu0 %v1871
    %2407 = vmatpush.bf16.msra.mxu0 %v1867
    %2408 = vmatpush.bf16.msra.mxu0 %v1863
    %2409 = vmatmul.bf16.gmra.mxu0 %v2400
    %v2410 = vpop.f32.mrf.mxu0
    %v2411 = vadd.f32 0.0, %v2410
    %v2412 = vpop.f32.mrf.mxu0
    %2413 = vdwg.mxu0
    %2414 = vmatpush.bf16.msra.mxu0 %v1892
    %2415 = vmatpush.bf16.msra.mxu0 %v1888
    %2416 = vmatpush.bf16.msra.mxu0 %v1884
    %2417 = vmatpush.bf16.msra.mxu0 %v1880
    %2418 = vmatpush.bf16.msra.mxu0 %v1876
    %2419 = vmatpush.bf16.msra.mxu0 %v1872
    %2420 = vmatpush.bf16.msra.mxu0 %v1868
    %2421 = vmatpush.bf16.msra.mxu0 %v1864
    %2422 = vmatmul.bf16.gmra.mxu0 %v2400
    %v2423 = vpop.f32.mrf.mxu0
    %v2424 = vadd.f32 0.0, %v2423
    %v2425 = vpop.f32.mrf.mxu0
    %2426 = vdwg.mxu0
    %2427 = vmatpush.bf16.msra.mxu0 %v1893
    %2428 = vmatpush.bf16.msra.mxu0 %v1889
    %2429 = vmatpush.bf16.msra.mxu0 %v1885
    %2430 = vmatpush.bf16.msra.mxu0 %v1881
    %2431 = vmatpush.bf16.msra.mxu0 %v1877
    %2432 = vmatpush.bf16.msra.mxu0 %v1873
    %2433 = vmatpush.bf16.msra.mxu0 %v1869
    %2434 = vmatpush.bf16.msra.mxu0 %v1865
    %2435 = vmatmul.bf16.gmra.mxu0 %v2400
    %v2436 = vpop.f32.mrf.mxu0
    %v2437 = vadd.f32 0.0, %v2436
    %v2438 = vpop.f32.mrf.mxu0
    %2439 = vdwg.mxu0
    %2440 = vmatpush.bf16.msra.mxu0 %v1894
    %2441 = vmatpush.bf16.msra.mxu0 %v1890
    %2442 = vmatpush.bf16.msra.mxu0 %v1886
    %2443 = vmatpush.bf16.msra.mxu0 %v1882
    %2444 = vmatpush.bf16.msra.mxu0 %v1878
    %2445 = vmatpush.bf16.msra.mxu0 %v1874
    %2446 = vmatpush.bf16.msra.mxu0 %v1870
    %2447 = vmatpush.bf16.msra.mxu0 %v1866
    %2448 = vmatmul.bf16.gmra.mxu0 %v2400
    %v2449 = vpop.f32.mrf.mxu0
    %v2450 = vadd.f32 0.0, %v2449
    %v2451 = vpop.f32.mrf.mxu0
    %2452 = vdwg.mxu0
    %v2453 = vadd.f32 %v2396, %v2411
    %v2454 = vadd.f32 %v2397, %v2424
    %v2455 = vadd.f32 %v2398, %v2437
    %v2456 = vadd.f32 %v2399, %v2450
    %v2457 = vmul.f32 %v2453, 0.5
    %v2458 = vmul.f32 %v2454, 0.5
    %v2459 = vmul.f32 %v2455, 0.5
    %v2460 = vtanh.pop %v2457
    %v2461 = vtanh.pop %v2458
    %v2462 = vtanh.pop %v2459
    %v2463 = vmul.f32 %v2460, 0.5
    %v2464 = vmul.f32 %v2461, 0.5
    %v2465 = vmul.f32 %v2462, 0.5
    %v2466 = vadd.f32 %v2463, 0.5
    %v2467 = vadd.f32 %v2464, 0.5
    %v2468 = vadd.f32 %v2465, 0.5
    %v2469 = vtanh.pop %v2456
    %v2470 = vmul.f32 %v2467, %v2393
    %v2471 = vmul.f32 %v2466, %v2469
    %v2472 = vadd.f32 %v2470, %v2471
    %v2473 = vtanh.pop %v2472
    %v2474 = vmul.f32 %v2468, %v2473
    %v2475 = vld [vmem:[%s1286] sm:$0xff]
    %v2476 = vld [vmem:[%s1286 + $0x8] sm:$0xff]
    %v2477 = vld [vmem:[%s1286 + $0x10] sm:$0xff]
    %v2478 = vld [vmem:[%s1286 + $0x18] sm:$0xff]
    %v2479 = vpack.c.bf16 %v2474, %v2474
    %2480 = vmatpush.bf16.msra.mxu0 %v1891
    %2481 = vmatpush.bf16.msra.mxu0 %v1887
    %2482 = vmatpush.bf16.msra.mxu0 %v1883
    %2483 = vmatpush.bf16.msra.mxu0 %v1879
    %2484 = vmatpush.bf16.msra.mxu0 %v1875
    %2485 = vmatpush.bf16.msra.mxu0 %v1871
    %2486 = vmatpush.bf16.msra.mxu0 %v1867
    %2487 = vmatpush.bf16.msra.mxu0 %v1863
    %2488 = vmatmul.bf16.gmra.mxu0 %v2479
    %v2489 = vpop.f32.mrf.mxu0
    %v2490 = vadd.f32 0.0, %v2489
    %v2491 = vpop.f32.mrf.mxu0
    %2492 = vdwg.mxu0
    %2493 = vmatpush.bf16.msra.mxu0 %v1892
    %2494 = vmatpush.bf16.msra.mxu0 %v1888
    %2495 = vmatpush.bf16.msra.mxu0 %v1884
    %2496 = vmatpush.bf16.msra.mxu0 %v1880
    %2497 = vmatpush.bf16.msra.mxu0 %v1876
    %2498 = vmatpush.bf16.msra.mxu0 %v1872
    %2499 = vmatpush.bf16.msra.mxu0 %v1868
    %2500 = vmatpush.bf16.msra.mxu0 %v1864
    %2501 = vmatmul.bf16.gmra.mxu0 %v2479
    %v2502 = vpop.f32.mrf.mxu0
    %v2503 = vadd.f32 0.0, %v2502
    %v2504 = vpop.f32.mrf.mxu0
    %2505 = vdwg.mxu0
    %2506 = vmatpush.bf16.msra.mxu0 %v1893
    %2507 = vmatpush.bf16.msra.mxu0 %v1889
    %2508 = vmatpush.bf16.msra.mxu0 %v1885
    %2509 = vmatpush.bf16.msra.mxu0 %v1881
    %2510 = vmatpush.bf16.msra.mxu0 %v1877
    %2511 = vmatpush.bf16.msra.mxu0 %v1873
    %2512 = vmatpush.bf16.msra.mxu0 %v1869
    %2513 = vmatpush.bf16.msra.mxu0 %v1865
    %2514 = vmatmul.bf16.gmra.mxu0 %v2479
    %v2515 = vpop.f32.mrf.mxu0
    %v2516 = vadd.f32 0.0, %v2515
    %v2517 = vpop.f32.mrf.mxu0
    %2518 = vdwg.mxu0
    %2519 = vmatpush.bf16.msra.mxu0 %v1894
    %2520 = vmatpush.bf16.msra.mxu0 %v1890
    %2521 = vmatpush.bf16.msra.mxu0 %v1886
    %2522 = vmatpush.bf16.msra.mxu0 %v1882
    %2523 = vmatpush.bf16.msra.mxu0 %v1878
    %2524 = vmatpush.bf16.msra.mxu0 %v1874
    %2525 = vmatpush.bf16.msra.mxu0 %v1870
    %2526 = vmatpush.bf16.msra.mxu0 %v1866
    %2527 = vmatmul.bf16.gmra.mxu0 %v2479
    %v2528 = vpop.f32.mrf.mxu0
    %v2529 = vadd.f32 0.0, %v2528
    %v2530 = vpop.f32.mrf.mxu0
    %2531 = vdwg.mxu0
    %v2532 = vadd.f32 %v2475, %v2490
    %v2533 = vadd.f32 %v2476, %v2503
    %v2534 = vadd.f32 %v2477, %v2516
    %v2535 = vadd.f32 %v2478, %v2529
    %v2536 = vmul.f32 %v2532, 0.5
    %v2537 = vmul.f32 %v2533, 0.5
    %v2538 = vmul.f32 %v2534, 0.5
    %v2539 = vtanh.pop %v2536
    %v2540 = vtanh.pop %v2537
    %v2541 = vtanh.pop %v2538
    %v2542 = vmul.f32 %v2539, 0.5
    %v2543 = vmul.f32 %v2540, 0.5
    %v2544 = vmul.f32 %v2541, 0.5
    %v2545 = vadd.f32 %v2542, 0.5
    %v2546 = vadd.f32 %v2543, 0.5
    %v2547 = vadd.f32 %v2544, 0.5
    %v2548 = vtanh.pop %v2535
    %v2549 = vmul.f32 %v2546, %v2472
    %v2550 = vmul.f32 %v2545, %v2548
    %v2551 = vadd.f32 %v2549, %v2550
    %v2552 = vtanh.pop %v2551
    %v2553 = vmul.f32 %v2547, %v2552
    %2554 = vst [vmem:[#allocation4 + $0x8] sm:$0xff] %v2553
    %v2555 = vld [vmem:[#allocation4] sm:$0xff]
    %v2556 = vld [vmem:[#allocation4 + $0x8] sm:$0xff]
    %v2557 = vpack.c.bf16 %v2556, %v2555
    %v2558 = vld [vmem:[#allocation16] sm:$0xf]
    %v2559 = vld [vmem:[#allocation16 + $0x4] sm:$0xf]
    %v2560 = vld [vmem:[#allocation16 + $0x8] sm:$0xf]
    %v2561 = vld [vmem:[#allocation16 + $0xc] sm:$0xf]
    %v2562 = vld [vmem:[#allocation16 + $0x10] sm:$0xf]
    %v2563 = vld [vmem:[#allocation16 + $0x14] sm:$0xf]
    %v2564 = vld [vmem:[#allocation16 + $0x18] sm:$0xf]
    %v2565 = vld [vmem:[#allocation16 + $0x1c] sm:$0xf]
    %v2566 = vld [vmem:[#allocation16 + $0x20] sm:$0xf]
    %v2567 = vld [vmem:[#allocation16 + $0x24] sm:$0xf]
    %v2568 = vld [vmem:[#allocation16 + $0x28] sm:$0xf]
    %v2569 = vld [vmem:[#allocation16 + $0x2c] sm:$0xf]
    %v2570 = vld [vmem:[#allocation16 + $0x30] sm:$0xf]
    %v2571 = vld [vmem:[#allocation16 + $0x34] sm:$0xf]
    %v2572 = vld [vmem:[#allocation16 + $0x38] sm:$0xf]
    %v2573 = vld [vmem:[#allocation16 + $0x3c] sm:$0xf]
    %v2574 = vld [vmem:[%s8] sm:$0x1]
    %v2576 = vperm.slane %v2574, 0
    %v2594 = vunpack.c.l.b16 %v2558
    %v2595 = vunpack.c.l.b16 %v2559
    %v2596 = vunpack.c.l.b16 %v2560
    %v2597 = vunpack.c.l.b16 %v2561
    %v2598 = vunpack.c.l.b16 %v2562
    %v2599 = vunpack.c.l.b16 %v2563
    %v2600 = vunpack.c.l.b16 %v2564
    %v2601 = vunpack.c.l.b16 %v2565
    %v2602 = vunpack.c.l.b16 %v2566
    %v2603 = vunpack.c.l.b16 %v2567
    %v2604 = vunpack.c.l.b16 %v2568
    %v2605 = vunpack.c.l.b16 %v2569
    %v2606 = vunpack.c.l.b16 %v2570
    %v2607 = vunpack.c.l.b16 %v2571
    %v2608 = vunpack.c.l.b16 %v2572
    %v2609 = vunpack.c.l.b16 %v2573
    %v2610 = vpack.c.b16 %v2595, %v2594
    %v2611 = vpack.c.b16 %v2597, %v2596
    %v2612 = vpack.c.b16 %v2599, %v2598
    %v2613 = vpack.c.b16 %v2601, %v2600
    %v2614 = vpack.c.b16 %v2603, %v2602
    %v2615 = vpack.c.b16 %v2605, %v2604
    %v2616 = vpack.c.b16 %v2607, %v2606
    %v2617 = vpack.c.b16 %v2609, %v2608
    %2626 = vmatpush.bf16.msra.mxu0 %v2617
    %2627 = vmatpush.bf16.msra.mxu0 %v2616
    %2628 = vmatpush.bf16.msra.mxu0 %v2615
    %2629 = vmatpush.bf16.msra.mxu0 %v2614
    %2630 = vmatpush.bf16.msra.mxu0 %v2613
    %2631 = vmatpush.bf16.msra.mxu0 %v2612
    %2632 = vmatpush.bf16.msra.mxu0 %v2611
    %2633 = vmatpush.bf16.msra.mxu0 %v2610
    %2634 = vmatmul.bf16.gmra.mxu0 %v2557
    %v2635 = vpop.f32.mrf.mxu0
    %v2636 = vadd.f32 %v2576, %v2635
    %v2637 = vpop.f32.mrf.mxu0
    %v2638 = vadd.f32 %v2576, %v2637
    %2639 = vdwg.mxu0
    %2640 = vst [vmem:[#allocation17] sm:$0xff] %v2636
    %2641 = vst [vmem:[#allocation17 + $0x8] sm:$0xff] %v2638
    // Predicated region
    $region66: #{tpu_custom_call.1} parent=1 // pred_check
      _
    $region67: #{tpu_custom_call.1} parent=1 // pred_check_branch
      %2643 = sbr.rel (0) target = $region69
    $region68: #{tpu_custom_call.1} parent=1 // pred_region
      %2645 = vsyncadd [#allocation7], 0
      %s2646 = sshll.u32 [#allocation17], 4
      %s2647 = int_to_ptr.vmem [resolvable:$true] %s2646
      %s2648 = sshll.u32 %s9, 4
      %s2649 = int_to_ptr.hbm [resolvable:$true] %s2648
      %2654 = dma.vmem_to_hbm [thread:$0]  %s2647, 256, %s2649, [#allocation7], 128, 128, 8
    $region69: #{tpu_custom_call.1} parent=1 // pred_fallthru
      _
    // Predicated region
    $region70: #{tpu_custom_call.1} parent=1 // pred_check
      _
    $region71: #{tpu_custom_call.1} parent=1 // pred_check_branch
      %2656 = sbr.rel (0) target = $region73
    $region72: #{tpu_custom_call.1} parent=1 // pred_region
      %2658 = dma.done [#allocation7], 256
    $region73: #{tpu_custom_call.1} parent=1 // pred_fallthru
      _
    %2659 = vsyncpa [#allocation6], 1
    %2660 = vsyncpa [#allocation9], 1
    %2661 = vsyncpa [#allocation12], 1
    %2662 = vsyncpa [#allocation15], 1
    %2663 = vsyncpa [#allocation7], 1

</llo_original>
